<compile_context>
chip_gen: v7x
topology: tpu7x:2x2x1
jax: 0.10.0
libtpu: 0.0.40
codegen_flags: <defaults>
</compile_context>

<pallas_src>
import functools

import jax
import jax.numpy as jnp
from jax import lax
from jax.experimental import pallas as pl
from jax.experimental.pallas import tpu as pltpu

BN_EPS = 1e-5


# ----------------------------------------------------------------------------
# Fused forward kernel.
# Inputs : x (Cin, B*HW) f32, conv1 w (16, 9*Cin) bf16, bn1 g/b (16,1) f32,
#          per BasicBlock: convA w (16,144) bf16, bnA g/b, convB w, bnB g/b,
#          fc weight (16, 128) bf16 (class-padded), fc bias (1, 128) f32.
# Outputs: extracted_features (16, B*HW) f32, padded logits (B, 128) f32.
# ----------------------------------------------------------------------------
def _fused_forward_kernel(*refs, num_blocks, B, H, W):
    n_in = 4 + 6 * num_blocks + 2
    in_refs = refs[:n_in]
    feat_ref, logits_ref = refs[n_in], refs[n_in + 1]

    it = iter(in_refs)
    x_ref = next(it)
    w1_ref, g1_ref, b1_ref = next(it), next(it), next(it)
    blocks = [tuple(next(it) for _ in range(6)) for _ in range(num_blocks)]
    fcw_ref, fcb_ref = next(it), next(it)

    HW = H * W
    BHW = B * HW
    inv_n = 1.0 / float(BHW)

    # ---- boundary-validity masks: computed once, reused by all 5 convs. ----
    pos = lax.broadcasted_iota(jnp.int32, (1, BHW), 1)
    in_img = pos % HW                       # flat position within one image
    col = pos % W                           # x coordinate
    row_ok = {-1: in_img >= W, 0: None, 1: in_img < (HW - W)}   # y+oy in [0,H)
    col_ok = {-1: col >= 1, 0: None, 1: col < (W - 1)}          # x+ox in [0,W)
    tap_offsets, tap_masks = [], []
    for oy in (-1, 0, 1):
        for ox in (-1, 0, 1):
            tap_offsets.append(oy * W + ox)
            r, c = row_ok[oy], col_ok[ox]
            if r is None:
                tap_masks.append(c)
            elif c is None:
                tap_masks.append(r)
            else:
                tap_masks.append(jnp.logical_and(r, c))

    def conv3x3_bn(act, w_ref, g_ref, b_ref, residual=None):
        """act: (Cin, B*HW) f32 -> relu(bn(conv(act)) [+ residual]), (Cout, B*HW) f32."""
        taps = []
        for off, mask in zip(tap_offsets, tap_masks):
            # tap[p] = act[p + off]; wrapped / cross-image values land only on
            # masked (out-of-image) positions and are zeroed.
            t = act if off == 0 else pltpu.roll(act, (-off) % BHW, 1)
            if mask is not None:
                t = jnp.where(mask, t, 0.0)
            taps.append(t.astype(jnp.bfloat16))
        patches = jnp.concatenate(taps, axis=0)              # (9*Cin, B*HW) bf16

        # Single MXU matmul: (Cout, 9*Cin) x (9*Cin, B*HW) -> f32 accumulator.
        acc = jnp.dot(w_ref[...], patches, preferred_element_type=jnp.float32)

        # BatchNorm2d with batch statistics (training-mode default), two-pass var.
        mean = jnp.sum(acc, axis=1, keepdims=True) * inv_n    # (Cout, 1)
        cen = acc - mean
        var = jnp.sum(cen * cen, axis=1, keepdims=True) * inv_n
        y = cen * (g_ref[...] * lax.rsqrt(var + BN_EPS)) + b_ref[...]

        if residual is not None:
            y = y + residual
        return jnp.maximum(y, 0.0)

    # conv1 -> bn1 -> relu  (= extracted_features)
    h = conv3x3_bn(x_ref[...], w1_ref, g1_ref, b1_ref)
    feat_ref[...] = h                                         # lane-dense vst

    # layer1: BasicBlocks (conv-bn-relu-conv-bn + identity -> relu)
    # TODO(synk): on v7x, benchmark a 9-tap MRB-accumulate formulation (nine
    # K=Cin matmuls, no patches concat) against this single K=9*Cin im2col.
    for (wa, ga, ba, wb, gb, bb) in blocks:
        out = conv3x3_bn(h, wa, ga, ba)
        h = conv3x3_bn(out, wb, gb, bb, residual=h)

    # global average pool (per image, lane-aligned 256-wide slices) -> fc
    pooled = jnp.concatenate(
        [jnp.sum(h[:, b * HW:(b + 1) * HW], axis=1, keepdims=True)
         for b in range(B)], axis=1) * (1.0 / HW)             # (C, B) f32
    logits = lax.dot_general(
        pooled.astype(jnp.bfloat16), fcw_ref[...],
        dimension_numbers=(((0,), (0,)), ((), ())),
        preferred_element_type=jnp.float32)                   # (B, 128)
    logits_ref[...] = logits + fcb_ref[...]


# ----------------------------------------------------------------------------
# Wrapper: parameter packing + one pallas_call (everything fits in VMEM).
# ----------------------------------------------------------------------------
def resnet_client_gkt_forward(params, x_nchw, num_classes=10):
    B, Cin, H, W = x_nchw.shape
    C = 16
    HW = H * W
    BHW = B * HW
    ncp = max(128, ((num_classes + 127) // 128) * 128)        # lane-dense logits
    nb = len(params["layer1"])

    def flat_w(w):
        # (Cout, Cin, 3, 3) -> (Cout, 9*Cin), tap-major / channel-minor, bf16.
        return jnp.transpose(w, (0, 2, 3, 1)).reshape(w.shape[0], -1).astype(jnp.bfloat16)

    def bn_p(p):
        return p.reshape(C, 1).astype(jnp.float32)

    # Channel-major, lane-dense input layout: (Cin, B*H*W).
    x_cbhw = jnp.transpose(x_nchw.astype(jnp.float32), (1, 0, 2, 3)).reshape(Cin, BHW)

    inputs = [x_cbhw,
              flat_w(params["conv1_w"]), bn_p(params["bn1_g"]), bn_p(params["bn1_b"])]
    for blk in params["layer1"]:
        inputs += [flat_w(blk["conv1_w"]), bn_p(blk["bn1_g"]), bn_p(blk["bn1_b"]),
                   flat_w(blk["conv2_w"]), bn_p(blk["bn2_g"]), bn_p(blk["bn2_b"])]

    # fc weight stored (in_features, classes), zero-padded to 128 lanes, bf16.
    fcw = (jnp.zeros((C, ncp), jnp.float32)
           .at[:, :num_classes].set(params["fc_w"].astype(jnp.float32))
           .astype(jnp.bfloat16))
    fcb = (jnp.zeros((1, ncp), jnp.float32)
           .at[:, :num_classes].set(params["fc_b"].astype(jnp.float32)))
    inputs += [fcw, fcb]

    kernel = functools.partial(_fused_forward_kernel, num_blocks=nb, B=B, H=H, W=W)

    flops = 2 * BHW * C * 9 * (Cin + nb * 2 * C) + 2 * B * C * ncp
    bytes_accessed = (sum(int(a.size) * a.dtype.itemsize for a in inputs)
                      + C * BHW * 4 + B * ncp * 4)
    vmem = pl.BlockSpec(memory_space=pltpu.MemorySpace.VMEM)

    feats, logits_pad = pl.pallas_call(
        kernel,
        out_shape=(jax.ShapeDtypeStruct((C, BHW), jnp.float32),
                   jax.ShapeDtypeStruct((B, ncp), jnp.float32)),
        in_specs=[vmem] * len(inputs),
        out_specs=(vmem, vmem),
        cost_estimate=pl.CostEstimate(flops=int(flops),
                                      transcendentals=(1 + 2 * nb) * C,
                                      bytes_accessed=int(bytes_accessed)),
    )(*inputs)

    logits = logits_pad[:, :num_classes]
    extracted_features = jnp.transpose(feats.reshape(C, B, H, W), (1, 0, 2, 3))
    return logits, extracted_features


# ----------------------------------------------------------------------------
# Pure-JAX (f32, XLA) reference for correctness checking.
# ----------------------------------------------------------------------------
def _reference_forward(params, x):
    def conv(h, w):
        return lax.conv_general_dilated(h, w, window_strides=(1, 1),
                                        padding=((1, 1), (1, 1)),
                                        dimension_numbers=("NCHW", "OIHW", "NCHW"))

    def bn(h, g, b):
        mean = jnp.mean(h, axis=(0, 2, 3), keepdims=True)
        var = jnp.mean((h - mean) ** 2, axis=(0, 2, 3), keepdims=True)
        return (h - mean) * (g.reshape(1, -1, 1, 1) * lax.rsqrt(var + BN_EPS)) \
            + b.reshape(1, -1, 1, 1)

    h = jax.nn.relu(bn(conv(x, params["conv1_w"]), params["bn1_g"], params["bn1_b"]))
    feat = h
    for blk in params["layer1"]:
        out = jax.nn.relu(bn(conv(h, blk["conv1_w"]), blk["bn1_g"], blk["bn1_b"]))
        out = bn(conv(out, blk["conv2_w"]), blk["bn2_g"], blk["bn2_b"]) + h
        h = jax.nn.relu(out)
    pooled = jnp.mean(h, axis=(2, 3))
    logits = pooled @ params["fc_w"] + params["fc_b"]
    return logits, feat


# ----------------------------------------------------------------------------
# Parameter init (deterministic, mirrors the module's __init__ shapes/inits).
# ----------------------------------------------------------------------------
def init_params(key, num_blocks=2, num_classes=10):
    inplanes = 16
    keys = jax.random.split(key, 1 + 2 * num_blocks + 2)
    ki = iter(keys)

    def kaiming_conv(k, cin, cout):
        # kaiming_normal_, mode='fan_out', nonlinearity='relu'
        fan_out = 3 * 3 * cout
        std = (2.0 / fan_out) ** 0.5
        return std * jax.random.normal(k, (cout, cin, 3, 3), jnp.float32)

    params = {
        "conv1_w": kaiming_conv(next(ki), 3, inplanes),
        "bn1_g": jnp.ones((inplanes,), jnp.float32),
        "bn1_b": jnp.zeros((inplanes,), jnp.float32),
        "layer1": [],
    }
    for _ in range(num_blocks):  # BasicBlock(16 -> 16), stride 1, no downsample
        params["layer1"].append({
            "conv1_w": kaiming_conv(next(ki), inplanes, inplanes),
            "bn1_g": jnp.ones((inplanes,), jnp.float32),
            "bn1_b": jnp.zeros((inplanes,), jnp.float32),
            "conv2_w": kaiming_conv(next(ki), inplanes, inplanes),
            "bn2_g": jnp.ones((inplanes,), jnp.float32),
            "bn2_b": jnp.zeros((inplanes,), jnp.float32),
        })
    # nn.Linear default init: U(-1/sqrt(fan_in), 1/sqrt(fan_in))
    bound = 1.0 / (inplanes ** 0.5)
    params["fc_w"] = jax.random.uniform(next(ki), (inplanes, num_classes),
                                        jnp.float32, -bound, bound)
    params["fc_b"] = jax.random.uniform(next(ki), (num_classes,),
                                        jnp.float32, -bound, bound)
    return params


if __name__ == "__main__":
    key = jax.random.PRNGKey(0)
    pkey, xkey = jax.random.split(key)

    params = init_params(pkey, num_blocks=2, num_classes=10)
    x = jax.random.normal(xkey, (2, 3, 16, 16), jnp.float32)   # NCHW like PyTorch

    fwd = jax.jit(functools.partial(resnet_client_gkt_forward, params))
    logits, feats = fwd(x)
    jax.block_until_ready((logits, feats))

    assert logits.shape == (2, 10), logits.shape
    assert feats.shape == (2, 16, 16, 16), feats.shape
    assert bool(jnp.all(jnp.isfinite(logits))) and bool(jnp.all(jnp.isfinite(feats)))

    # Correctness vs the pure-JAX f32 reference (kernel uses bf16 MXU operands,
    # so allow a few-percent relative tolerance).
    ref_logits, ref_feats = _reference_forward(params, x)

    def rel_err(a, b):
        return float(jnp.linalg.norm((a - b).ravel())
                     / (jnp.linalg.norm(b.ravel()) + 1e-12))

    assert rel_err(feats, ref_feats) < 6e-2, ("feature mismatch", rel_err(feats, ref_feats))
    assert rel_err(logits, ref_logits) < 8e-2, ("logit mismatch", rel_err(logits, ref_logits))
    print("KERNEL_OK")
</pallas_src>

<mosaic_0001>
module attributes {stable_mosaic.version = 11 : i64} {
  func.func @_fused_forward_kernel(%arg0: memref<3x512xf32, #tpu.memory_space<vmem>>, %arg1: memref<16x27xbf16, #tpu.memory_space<vmem>>, %arg2: memref<16x1xf32, #tpu.memory_space<vmem>>, %arg3: memref<16x1xf32, #tpu.memory_space<vmem>>, %arg4: memref<16x144xbf16, #tpu.memory_space<vmem>>, %arg5: memref<16x1xf32, #tpu.memory_space<vmem>>, %arg6: memref<16x1xf32, #tpu.memory_space<vmem>>, %arg7: memref<16x144xbf16, #tpu.memory_space<vmem>>, %arg8: memref<16x1xf32, #tpu.memory_space<vmem>>, %arg9: memref<16x1xf32, #tpu.memory_space<vmem>>, %arg10: memref<16x144xbf16, #tpu.memory_space<vmem>>, %arg11: memref<16x1xf32, #tpu.memory_space<vmem>>, %arg12: memref<16x1xf32, #tpu.memory_space<vmem>>, %arg13: memref<16x144xbf16, #tpu.memory_space<vmem>>, %arg14: memref<16x1xf32, #tpu.memory_space<vmem>>, %arg15: memref<16x1xf32, #tpu.memory_space<vmem>>, %arg16: memref<16x128xbf16, #tpu.memory_space<vmem>>, %arg17: memref<1x128xf32, #tpu.memory_space<vmem>>, %arg18: memref<16x512xf32, #tpu.memory_space<vmem>>, %arg19: memref<2x128xf32, #tpu.memory_space<vmem>>) attributes {dimension_semantics = [], scalar_prefetch = 0 : i64, scratch_operands = 0 : i64, tpu.core_type = #tpu.core_type<tc>} {
    %0 = tpu.iota {dimensions = array<i32: 1>} : vector<1x512xi32>
    %c256_i32 = arith.constant 256 : i32
    %c0_i32 = arith.constant 0 : i32
    %1 = arith.cmpi eq, %c256_i32, %c0_i32 : i32
    %c1_i32 = arith.constant 1 : i32
    %2 = arith.select %1, %c1_i32, %c256_i32 : i32
    %3 = vector.broadcast %2 : i32 to vector<1x512xi32>
    %4 = arith.remsi %0, %3 : vector<1x512xi32>
    %c0_i32_0 = arith.constant 0 : i32
    %5 = vector.broadcast %c0_i32_0 : i32 to vector<1x512xi32>
    %6 = arith.cmpi ne, %4, %5 : vector<1x512xi32>
    %c0_i32_1 = arith.constant 0 : i32
    %7 = vector.broadcast %c0_i32_1 : i32 to vector<1x512xi32>
    %8 = arith.cmpi slt, %4, %7 : vector<1x512xi32>
    %c0_i32_2 = arith.constant 0 : i32
    %9 = arith.cmpi slt, %2, %c0_i32_2 : i32
    %10 = vector.broadcast %9 : i1 to vector<1x512xi1>
    %11 = vector.broadcast %10 : vector<1x512xi1> to vector<1x512xi1>
    %12 = arith.xori %8, %11 : vector<1x512xi1>
    %13 = arith.andi %12, %6 : vector<1x512xi1>
    %14 = vector.broadcast %2 : i32 to vector<1x512xi32>
    %15 = arith.addi %4, %14 : vector<1x512xi32>
    %16 = arith.select %13, %15, %4 : vector<1x512xi1>, vector<1x512xi32>
    %c16_i32 = arith.constant 16 : i32
    %c0_i32_3 = arith.constant 0 : i32
    %17 = arith.cmpi eq, %c16_i32, %c0_i32_3 : i32
    %c1_i32_4 = arith.constant 1 : i32
    %18 = arith.select %17, %c1_i32_4, %c16_i32 : i32
    %19 = vector.broadcast %18 : i32 to vector<1x512xi32>
    %20 = arith.remsi %0, %19 : vector<1x512xi32>
    %c0_i32_5 = arith.constant 0 : i32
    %21 = vector.broadcast %c0_i32_5 : i32 to vector<1x512xi32>
    %22 = arith.cmpi ne, %20, %21 : vector<1x512xi32>
    %c0_i32_6 = arith.constant 0 : i32
    %23 = vector.broadcast %c0_i32_6 : i32 to vector<1x512xi32>
    %24 = arith.cmpi slt, %20, %23 : vector<1x512xi32>
    %c0_i32_7 = arith.constant 0 : i32
    %25 = arith.cmpi slt, %18, %c0_i32_7 : i32
    %26 = vector.broadcast %25 : i1 to vector<1x512xi1>
    %27 = vector.broadcast %26 : vector<1x512xi1> to vector<1x512xi1>
    %28 = arith.xori %24, %27 : vector<1x512xi1>
    %29 = arith.andi %28, %22 : vector<1x512xi1>
    %30 = vector.broadcast %18 : i32 to vector<1x512xi32>
    %31 = arith.addi %20, %30 : vector<1x512xi32>
    %32 = arith.select %29, %31, %20 : vector<1x512xi1>, vector<1x512xi32>
    %c16_i32_8 = arith.constant 16 : i32
    %33 = vector.broadcast %c16_i32_8 : i32 to vector<1x512xi32>
    %34 = arith.cmpi sge, %16, %33 : vector<1x512xi32>
    %c240_i32 = arith.constant 240 : i32
    %35 = vector.broadcast %c240_i32 : i32 to vector<1x512xi32>
    %36 = arith.cmpi slt, %16, %35 : vector<1x512xi32>
    %c1_i32_9 = arith.constant 1 : i32
    %37 = vector.broadcast %c1_i32_9 : i32 to vector<1x512xi32>
    %38 = arith.cmpi sge, %32, %37 : vector<1x512xi32>
    %c15_i32 = arith.constant 15 : i32
    %39 = vector.broadcast %c15_i32 : i32 to vector<1x512xi32>
    %40 = arith.cmpi slt, %32, %39 : vector<1x512xi32>
    %41 = arith.andi %34, %38 : vector<1x512xi1>
    %42 = arith.andi %34, %40 : vector<1x512xi1>
    %43 = arith.andi %36, %38 : vector<1x512xi1>
    %44 = arith.andi %36, %40 : vector<1x512xi1>
    %c0 = arith.constant 0 : index
    %c0_10 = arith.constant 0 : index
    %45 = vector.load %arg0[%c0, %c0_10] : memref<3x512xf32, #tpu.memory_space<vmem>>, vector<3x512xf32>
    %c17_i32 = arith.constant 17 : i32
    %46 = tpu.dynamic_rotate %45 by %c17_i32 dim 1 : vector<3x512xf32>, i32 -> vector<3x512xf32>
    %cst = arith.constant 0.000000e+00 : f32
    %47 = vector.shape_cast %41 : vector<1x512xi1> to vector<1x512xi1>
    %48 = vector.broadcast %47 : vector<1x512xi1> to vector<3x512xi1>
    %49 = vector.broadcast %cst : f32 to vector<3x512xf32>
    %50 = arith.select %48, %46, %49 : vector<3x512xi1>, vector<3x512xf32>
    %51 = arith.truncf %50 : vector<3x512xf32> to vector<3x512xbf16>
    %c16_i32_11 = arith.constant 16 : i32
    %52 = tpu.dynamic_rotate %45 by %c16_i32_11 dim 1 : vector<3x512xf32>, i32 -> vector<3x512xf32>
    %cst_12 = arith.constant 0.000000e+00 : f32
    %53 = vector.shape_cast %34 : vector<1x512xi1> to vector<1x512xi1>
    %54 = vector.broadcast %53 : vector<1x512xi1> to vector<3x512xi1>
    %55 = vector.broadcast %cst_12 : f32 to vector<3x512xf32>
    %56 = arith.select %54, %52, %55 : vector<3x512xi1>, vector<3x512xf32>
    %57 = arith.truncf %56 : vector<3x512xf32> to vector<3x512xbf16>
    %c15_i32_13 = arith.constant 15 : i32
    %58 = tpu.dynamic_rotate %45 by %c15_i32_13 dim 1 : vector<3x512xf32>, i32 -> vector<3x512xf32>
    %cst_14 = arith.constant 0.000000e+00 : f32
    %59 = vector.shape_cast %42 : vector<1x512xi1> to vector<1x512xi1>
    %60 = vector.broadcast %59 : vector<1x512xi1> to vector<3x512xi1>
    %61 = vector.broadcast %cst_14 : f32 to vector<3x512xf32>
    %62 = arith.select %60, %58, %61 : vector<3x512xi1>, vector<3x512xf32>
    %63 = arith.truncf %62 : vector<3x512xf32> to vector<3x512xbf16>
    %c1_i32_15 = arith.constant 1 : i32
    %64 = tpu.dynamic_rotate %45 by %c1_i32_15 dim 1 : vector<3x512xf32>, i32 -> vector<3x512xf32>
    %cst_16 = arith.constant 0.000000e+00 : f32
    %65 = vector.shape_cast %38 : vector<1x512xi1> to vector<1x512xi1>
    %66 = vector.broadcast %65 : vector<1x512xi1> to vector<3x512xi1>
    %67 = vector.broadcast %cst_16 : f32 to vector<3x512xf32>
    %68 = arith.select %66, %64, %67 : vector<3x512xi1>, vector<3x512xf32>
    %69 = arith.truncf %68 : vector<3x512xf32> to vector<3x512xbf16>
    %70 = arith.truncf %45 : vector<3x512xf32> to vector<3x512xbf16>
    %c511_i32 = arith.constant 511 : i32
    %71 = tpu.dynamic_rotate %45 by %c511_i32 dim 1 : vector<3x512xf32>, i32 -> vector<3x512xf32>
    %cst_17 = arith.constant 0.000000e+00 : f32
    %72 = vector.shape_cast %40 : vector<1x512xi1> to vector<1x512xi1>
    %73 = vector.broadcast %72 : vector<1x512xi1> to vector<3x512xi1>
    %74 = vector.broadcast %cst_17 : f32 to vector<3x512xf32>
    %75 = arith.select %73, %71, %74 : vector<3x512xi1>, vector<3x512xf32>
    %76 = arith.truncf %75 : vector<3x512xf32> to vector<3x512xbf16>
    %c497_i32 = arith.constant 497 : i32
    %77 = tpu.dynamic_rotate %45 by %c497_i32 dim 1 : vector<3x512xf32>, i32 -> vector<3x512xf32>
    %cst_18 = arith.constant 0.000000e+00 : f32
    %78 = vector.shape_cast %43 : vector<1x512xi1> to vector<1x512xi1>
    %79 = vector.broadcast %78 : vector<1x512xi1> to vector<3x512xi1>
    %80 = vector.broadcast %cst_18 : f32 to vector<3x512xf32>
    %81 = arith.select %79, %77, %80 : vector<3x512xi1>, vector<3x512xf32>
    %82 = arith.truncf %81 : vector<3x512xf32> to vector<3x512xbf16>
    %c496_i32 = arith.constant 496 : i32
    %83 = tpu.dynamic_rotate %45 by %c496_i32 dim 1 : vector<3x512xf32>, i32 -> vector<3x512xf32>
    %cst_19 = arith.constant 0.000000e+00 : f32
    %84 = vector.shape_cast %36 : vector<1x512xi1> to vector<1x512xi1>
    %85 = vector.broadcast %84 : vector<1x512xi1> to vector<3x512xi1>
    %86 = vector.broadcast %cst_19 : f32 to vector<3x512xf32>
    %87 = arith.select %85, %83, %86 : vector<3x512xi1>, vector<3x512xf32>
    %88 = arith.truncf %87 : vector<3x512xf32> to vector<3x512xbf16>
    %c495_i32 = arith.constant 495 : i32
    %89 = tpu.dynamic_rotate %45 by %c495_i32 dim 1 : vector<3x512xf32>, i32 -> vector<3x512xf32>
    %cst_20 = arith.constant 0.000000e+00 : f32
    %90 = vector.shape_cast %44 : vector<1x512xi1> to vector<1x512xi1>
    %91 = vector.broadcast %90 : vector<1x512xi1> to vector<3x512xi1>
    %92 = vector.broadcast %cst_20 : f32 to vector<3x512xf32>
    %93 = arith.select %91, %89, %92 : vector<3x512xi1>, vector<3x512xf32>
    %94 = arith.truncf %93 : vector<3x512xf32> to vector<3x512xbf16>
    %95 = tpu.concatenate %51, %57, %63, %69, %70, %76, %82, %88, %94 in 0 : vector<3x512xbf16>, vector<3x512xbf16>, vector<3x512xbf16>, vector<3x512xbf16>, vector<3x512xbf16>, vector<3x512xbf16>, vector<3x512xbf16>, vector<3x512xbf16>, vector<3x512xbf16> -> vector<27x512xbf16>
    %c0_21 = arith.constant 0 : index
    %c0_22 = arith.constant 0 : index
    %96 = vector.load %arg1[%c0_21, %c0_22] : memref<16x27xbf16, #tpu.memory_space<vmem>>, vector<16x27xbf16>
    %cst_23 = arith.constant dense<0.000000e+00> : vector<16x512xf32>
    %97 = tpu.matmul %96, %95, %cst_23 {dimension_numbers = #tpu.dot_dimension_numbers<[1], [0], [0], [1], [0, 0, 1, 1], [], []>} : vector<16x27xbf16>, vector<27x512xbf16>, vector<16x512xf32> -> vector<16x512xf32>
    %cst_24 = arith.constant dense<0.000000e+00> : vector<16xf32>
    %98 = vector.multi_reduction <add>, %97, %cst_24 [1] : vector<16x512xf32> to vector<16xf32>
    %99 = vector.shape_cast %98 : vector<16xf32> to vector<16x1xf32>
    %cst_25 = arith.constant 0.001953125 : f32
    %100 = vector.broadcast %cst_25 : f32 to vector<16x1xf32>
    %101 = arith.mulf %99, %100 : vector<16x1xf32>
    %102 = vector.broadcast %101 : vector<16x1xf32> to vector<16x512xf32>
    %103 = arith.subf %97, %102 : vector<16x512xf32>
    %104 = arith.mulf %103, %103 : vector<16x512xf32>
    %cst_26 = arith.constant dense<0.000000e+00> : vector<16xf32>
    %105 = vector.multi_reduction <add>, %104, %cst_26 [1] : vector<16x512xf32> to vector<16xf32>
    %106 = vector.shape_cast %105 : vector<16xf32> to vector<16x1xf32>
    %cst_27 = arith.constant 0.001953125 : f32
    %107 = vector.broadcast %cst_27 : f32 to vector<16x1xf32>
    %108 = arith.mulf %106, %107 : vector<16x1xf32>
    %c0_28 = arith.constant 0 : index
    %c0_29 = arith.constant 0 : index
    %109 = vector.load %arg2[%c0_28, %c0_29] : memref<16x1xf32, #tpu.memory_space<vmem>>, vector<16x1xf32>
    %cst_30 = arith.constant 9.99999974E-6 : f32
    %110 = vector.broadcast %cst_30 : f32 to vector<16x1xf32>
    %111 = arith.addf %108, %110 : vector<16x1xf32>
    %112 = math.rsqrt %111 : vector<16x1xf32>
    %113 = arith.mulf %109, %112 : vector<16x1xf32>
    %114 = vector.broadcast %113 : vector<16x1xf32> to vector<16x512xf32>
    %115 = arith.mulf %103, %114 : vector<16x512xf32>
    %c0_31 = arith.constant 0 : index
    %c0_32 = arith.constant 0 : index
    %116 = vector.load %arg3[%c0_31, %c0_32] : memref<16x1xf32, #tpu.memory_space<vmem>>, vector<16x1xf32>
    %117 = vector.broadcast %116 : vector<16x1xf32> to vector<16x512xf32>
    %118 = arith.addf %115, %117 : vector<16x512xf32>
    %cst_33 = arith.constant 0.000000e+00 : f32
    %119 = vector.broadcast %cst_33 : f32 to vector<16x512xf32>
    %120 = arith.maximumf %118, %119 : vector<16x512xf32>
    %c0_34 = arith.constant 0 : index
    %c0_35 = arith.constant 0 : index
    %121 = vector.load %arg18[%c0_34, %c0_35] : memref<16x512xf32, #tpu.memory_space<vmem>>, vector<16x512xf32>
    tpu.vector_store %arg18[%c0_34, %c0_35], %120 {strides = array<i32>} : memref<16x512xf32, #tpu.memory_space<vmem>>, vector<16x512xf32>,
    %c17_i32_36 = arith.constant 17 : i32
    %122 = tpu.dynamic_rotate %120 by %c17_i32_36 dim 1 : vector<16x512xf32>, i32 -> vector<16x512xf32>
    %cst_37 = arith.constant 0.000000e+00 : f32
    %123 = vector.shape_cast %41 : vector<1x512xi1> to vector<1x512xi1>
    %124 = vector.broadcast %123 : vector<1x512xi1> to vector<16x512xi1>
    %125 = vector.broadcast %cst_37 : f32 to vector<16x512xf32>
    %126 = arith.select %124, %122, %125 : vector<16x512xi1>, vector<16x512xf32>
    %127 = arith.truncf %126 : vector<16x512xf32> to vector<16x512xbf16>
    %c16_i32_38 = arith.constant 16 : i32
    %128 = tpu.dynamic_rotate %120 by %c16_i32_38 dim 1 : vector<16x512xf32>, i32 -> vector<16x512xf32>
    %cst_39 = arith.constant 0.000000e+00 : f32
    %129 = vector.shape_cast %34 : vector<1x512xi1> to vector<1x512xi1>
    %130 = vector.broadcast %129 : vector<1x512xi1> to vector<16x512xi1>
    %131 = vector.broadcast %cst_39 : f32 to vector<16x512xf32>
    %132 = arith.select %130, %128, %131 : vector<16x512xi1>, vector<16x512xf32>
    %133 = arith.truncf %132 : vector<16x512xf32> to vector<16x512xbf16>
    %c15_i32_40 = arith.constant 15 : i32
    %134 = tpu.dynamic_rotate %120 by %c15_i32_40 dim 1 : vector<16x512xf32>, i32 -> vector<16x512xf32>
    %cst_41 = arith.constant 0.000000e+00 : f32
    %135 = vector.shape_cast %42 : vector<1x512xi1> to vector<1x512xi1>
    %136 = vector.broadcast %135 : vector<1x512xi1> to vector<16x512xi1>
    %137 = vector.broadcast %cst_41 : f32 to vector<16x512xf32>
    %138 = arith.select %136, %134, %137 : vector<16x512xi1>, vector<16x512xf32>
    %139 = arith.truncf %138 : vector<16x512xf32> to vector<16x512xbf16>
    %c1_i32_42 = arith.constant 1 : i32
    %140 = tpu.dynamic_rotate %120 by %c1_i32_42 dim 1 : vector<16x512xf32>, i32 -> vector<16x512xf32>
    %cst_43 = arith.constant 0.000000e+00 : f32
    %141 = vector.shape_cast %38 : vector<1x512xi1> to vector<1x512xi1>
    %142 = vector.broadcast %141 : vector<1x512xi1> to vector<16x512xi1>
    %143 = vector.broadcast %cst_43 : f32 to vector<16x512xf32>
    %144 = arith.select %142, %140, %143 : vector<16x512xi1>, vector<16x512xf32>
    %145 = arith.truncf %144 : vector<16x512xf32> to vector<16x512xbf16>
    %146 = arith.truncf %120 : vector<16x512xf32> to vector<16x512xbf16>
    %c511_i32_44 = arith.constant 511 : i32
    %147 = tpu.dynamic_rotate %120 by %c511_i32_44 dim 1 : vector<16x512xf32>, i32 -> vector<16x512xf32>
    %cst_45 = arith.constant 0.000000e+00 : f32
    %148 = vector.shape_cast %40 : vector<1x512xi1> to vector<1x512xi1>
    %149 = vector.broadcast %148 : vector<1x512xi1> to vector<16x512xi1>
    %150 = vector.broadcast %cst_45 : f32 to vector<16x512xf32>
    %151 = arith.select %149, %147, %150 : vector<16x512xi1>, vector<16x512xf32>
    %152 = arith.truncf %151 : vector<16x512xf32> to vector<16x512xbf16>
    %c497_i32_46 = arith.constant 497 : i32
    %153 = tpu.dynamic_rotate %120 by %c497_i32_46 dim 1 : vector<16x512xf32>, i32 -> vector<16x512xf32>
    %cst_47 = arith.constant 0.000000e+00 : f32
    %154 = vector.shape_cast %43 : vector<1x512xi1> to vector<1x512xi1>
    %155 = vector.broadcast %154 : vector<1x512xi1> to vector<16x512xi1>
    %156 = vector.broadcast %cst_47 : f32 to vector<16x512xf32>
    %157 = arith.select %155, %153, %156 : vector<16x512xi1>, vector<16x512xf32>
    %158 = arith.truncf %157 : vector<16x512xf32> to vector<16x512xbf16>
    %c496_i32_48 = arith.constant 496 : i32
    %159 = tpu.dynamic_rotate %120 by %c496_i32_48 dim 1 : vector<16x512xf32>, i32 -> vector<16x512xf32>
    %cst_49 = arith.constant 0.000000e+00 : f32
    %160 = vector.shape_cast %36 : vector<1x512xi1> to vector<1x512xi1>
    %161 = vector.broadcast %160 : vector<1x512xi1> to vector<16x512xi1>
    %162 = vector.broadcast %cst_49 : f32 to vector<16x512xf32>
    %163 = arith.select %161, %159, %162 : vector<16x512xi1>, vector<16x512xf32>
    %164 = arith.truncf %163 : vector<16x512xf32> to vector<16x512xbf16>
    %c495_i32_50 = arith.constant 495 : i32
    %165 = tpu.dynamic_rotate %120 by %c495_i32_50 dim 1 : vector<16x512xf32>, i32 -> vector<16x512xf32>
    %cst_51 = arith.constant 0.000000e+00 : f32
    %166 = vector.shape_cast %44 : vector<1x512xi1> to vector<1x512xi1>
    %167 = vector.broadcast %166 : vector<1x512xi1> to vector<16x512xi1>
    %168 = vector.broadcast %cst_51 : f32 to vector<16x512xf32>
    %169 = arith.select %167, %165, %168 : vector<16x512xi1>, vector<16x512xf32>
    %170 = arith.truncf %169 : vector<16x512xf32> to vector<16x512xbf16>
    %171 = tpu.concatenate %127, %133, %139, %145, %146, %152, %158, %164, %170 in 0 : vector<16x512xbf16>, vector<16x512xbf16>, vector<16x512xbf16>, vector<16x512xbf16>, vector<16x512xbf16>, vector<16x512xbf16>, vector<16x512xbf16>, vector<16x512xbf16>, vector<16x512xbf16> -> vector<144x512xbf16>
    %c0_52 = arith.constant 0 : index
    %c0_53 = arith.constant 0 : index
    %172 = vector.load %arg4[%c0_52, %c0_53] : memref<16x144xbf16, #tpu.memory_space<vmem>>, vector<16x144xbf16>
    %cst_54 = arith.constant dense<0.000000e+00> : vector<16x512xf32>
    %173 = tpu.matmul %172, %171, %cst_54 {dimension_numbers = #tpu.dot_dimension_numbers<[1], [0], [0], [1], [0, 0, 1, 1], [], []>} : vector<16x144xbf16>, vector<144x512xbf16>, vector<16x512xf32> -> vector<16x512xf32>
    %cst_55 = arith.constant dense<0.000000e+00> : vector<16xf32>
    %174 = vector.multi_reduction <add>, %173, %cst_55 [1] : vector<16x512xf32> to vector<16xf32>
    %175 = vector.shape_cast %174 : vector<16xf32> to vector<16x1xf32>
    %cst_56 = arith.constant 0.001953125 : f32
    %176 = vector.broadcast %cst_56 : f32 to vector<16x1xf32>
    %177 = arith.mulf %175, %176 : vector<16x1xf32>
    %178 = vector.broadcast %177 : vector<16x1xf32> to vector<16x512xf32>
    %179 = arith.subf %173, %178 : vector<16x512xf32>
    %180 = arith.mulf %179, %179 : vector<16x512xf32>
    %cst_57 = arith.constant dense<0.000000e+00> : vector<16xf32>
    %181 = vector.multi_reduction <add>, %180, %cst_57 [1] : vector<16x512xf32> to vector<16xf32>
    %182 = vector.shape_cast %181 : vector<16xf32> to vector<16x1xf32>
    %cst_58 = arith.constant 0.001953125 : f32
    %183 = vector.broadcast %cst_58 : f32 to vector<16x1xf32>
    %184 = arith.mulf %182, %183 : vector<16x1xf32>
    %c0_59 = arith.constant 0 : index
    %c0_60 = arith.constant 0 : index
    %185 = vector.load %arg5[%c0_59, %c0_60] : memref<16x1xf32, #tpu.memory_space<vmem>>, vector<16x1xf32>
    %cst_61 = arith.constant 9.99999974E-6 : f32
    %186 = vector.broadcast %cst_61 : f32 to vector<16x1xf32>
    %187 = arith.addf %184, %186 : vector<16x1xf32>
    %188 = math.rsqrt %187 : vector<16x1xf32>
    %189 = arith.mulf %185, %188 : vector<16x1xf32>
    %190 = vector.broadcast %189 : vector<16x1xf32> to vector<16x512xf32>
    %191 = arith.mulf %179, %190 : vector<16x512xf32>
    %c0_62 = arith.constant 0 : index
    %c0_63 = arith.constant 0 : index
    %192 = vector.load %arg6[%c0_62, %c0_63] : memref<16x1xf32, #tpu.memory_space<vmem>>, vector<16x1xf32>
    %193 = vector.broadcast %192 : vector<16x1xf32> to vector<16x512xf32>
    %194 = arith.addf %191, %193 : vector<16x512xf32>
    %cst_64 = arith.constant 0.000000e+00 : f32
    %195 = vector.broadcast %cst_64 : f32 to vector<16x512xf32>
    %196 = arith.maximumf %194, %195 : vector<16x512xf32>
    %c17_i32_65 = arith.constant 17 : i32
    %197 = tpu.dynamic_rotate %196 by %c17_i32_65 dim 1 : vector<16x512xf32>, i32 -> vector<16x512xf32>
    %cst_66 = arith.constant 0.000000e+00 : f32
    %198 = vector.shape_cast %41 : vector<1x512xi1> to vector<1x512xi1>
    %199 = vector.broadcast %198 : vector<1x512xi1> to vector<16x512xi1>
    %200 = vector.broadcast %cst_66 : f32 to vector<16x512xf32>
    %201 = arith.select %199, %197, %200 : vector<16x512xi1>, vector<16x512xf32>
    %202 = arith.truncf %201 : vector<16x512xf32> to vector<16x512xbf16>
    %c16_i32_67 = arith.constant 16 : i32
    %203 = tpu.dynamic_rotate %196 by %c16_i32_67 dim 1 : vector<16x512xf32>, i32 -> vector<16x512xf32>
    %cst_68 = arith.constant 0.000000e+00 : f32
    %204 = vector.shape_cast %34 : vector<1x512xi1> to vector<1x512xi1>
    %205 = vector.broadcast %204 : vector<1x512xi1> to vector<16x512xi1>
    %206 = vector.broadcast %cst_68 : f32 to vector<16x512xf32>
    %207 = arith.select %205, %203, %206 : vector<16x512xi1>, vector<16x512xf32>
    %208 = arith.truncf %207 : vector<16x512xf32> to vector<16x512xbf16>
    %c15_i32_69 = arith.constant 15 : i32
    %209 = tpu.dynamic_rotate %196 by %c15_i32_69 dim 1 : vector<16x512xf32>, i32 -> vector<16x512xf32>
    %cst_70 = arith.constant 0.000000e+00 : f32
    %210 = vector.shape_cast %42 : vector<1x512xi1> to vector<1x512xi1>
    %211 = vector.broadcast %210 : vector<1x512xi1> to vector<16x512xi1>
    %212 = vector.broadcast %cst_70 : f32 to vector<16x512xf32>
    %213 = arith.select %211, %209, %212 : vector<16x512xi1>, vector<16x512xf32>
    %214 = arith.truncf %213 : vector<16x512xf32> to vector<16x512xbf16>
    %c1_i32_71 = arith.constant 1 : i32
    %215 = tpu.dynamic_rotate %196 by %c1_i32_71 dim 1 : vector<16x512xf32>, i32 -> vector<16x512xf32>
    %cst_72 = arith.constant 0.000000e+00 : f32
    %216 = vector.shape_cast %38 : vector<1x512xi1> to vector<1x512xi1>
    %217 = vector.broadcast %216 : vector<1x512xi1> to vector<16x512xi1>
    %218 = vector.broadcast %cst_72 : f32 to vector<16x512xf32>
    %219 = arith.select %217, %215, %218 : vector<16x512xi1>, vector<16x512xf32>
    %220 = arith.truncf %219 : vector<16x512xf32> to vector<16x512xbf16>
    %221 = arith.truncf %196 : vector<16x512xf32> to vector<16x512xbf16>
    %c511_i32_73 = arith.constant 511 : i32
    %222 = tpu.dynamic_rotate %196 by %c511_i32_73 dim 1 : vector<16x512xf32>, i32 -> vector<16x512xf32>
    %cst_74 = arith.constant 0.000000e+00 : f32
    %223 = vector.shape_cast %40 : vector<1x512xi1> to vector<1x512xi1>
    %224 = vector.broadcast %223 : vector<1x512xi1> to vector<16x512xi1>
    %225 = vector.broadcast %cst_74 : f32 to vector<16x512xf32>
    %226 = arith.select %224, %222, %225 : vector<16x512xi1>, vector<16x512xf32>
    %227 = arith.truncf %226 : vector<16x512xf32> to vector<16x512xbf16>
    %c497_i32_75 = arith.constant 497 : i32
    %228 = tpu.dynamic_rotate %196 by %c497_i32_75 dim 1 : vector<16x512xf32>, i32 -> vector<16x512xf32>
    %cst_76 = arith.constant 0.000000e+00 : f32
    %229 = vector.shape_cast %43 : vector<1x512xi1> to vector<1x512xi1>
    %230 = vector.broadcast %229 : vector<1x512xi1> to vector<16x512xi1>
    %231 = vector.broadcast %cst_76 : f32 to vector<16x512xf32>
    %232 = arith.select %230, %228, %231 : vector<16x512xi1>, vector<16x512xf32>
    %233 = arith.truncf %232 : vector<16x512xf32> to vector<16x512xbf16>
    %c496_i32_77 = arith.constant 496 : i32
    %234 = tpu.dynamic_rotate %196 by %c496_i32_77 dim 1 : vector<16x512xf32>, i32 -> vector<16x512xf32>
    %cst_78 = arith.constant 0.000000e+00 : f32
    %235 = vector.shape_cast %36 : vector<1x512xi1> to vector<1x512xi1>
    %236 = vector.broadcast %235 : vector<1x512xi1> to vector<16x512xi1>
    %237 = vector.broadcast %cst_78 : f32 to vector<16x512xf32>
    %238 = arith.select %236, %234, %237 : vector<16x512xi1>, vector<16x512xf32>
    %239 = arith.truncf %238 : vector<16x512xf32> to vector<16x512xbf16>
    %c495_i32_79 = arith.constant 495 : i32
    %240 = tpu.dynamic_rotate %196 by %c495_i32_79 dim 1 : vector<16x512xf32>, i32 -> vector<16x512xf32>
    %cst_80 = arith.constant 0.000000e+00 : f32
    %241 = vector.shape_cast %44 : vector<1x512xi1> to vector<1x512xi1>
    %242 = vector.broadcast %241 : vector<1x512xi1> to vector<16x512xi1>
    %243 = vector.broadcast %cst_80 : f32 to vector<16x512xf32>
    %244 = arith.select %242, %240, %243 : vector<16x512xi1>, vector<16x512xf32>
    %245 = arith.truncf %244 : vector<16x512xf32> to vector<16x512xbf16>
    %246 = tpu.concatenate %202, %208, %214, %220, %221, %227, %233, %239, %245 in 0 : vector<16x512xbf16>, vector<16x512xbf16>, vector<16x512xbf16>, vector<16x512xbf16>, vector<16x512xbf16>, vector<16x512xbf16>, vector<16x512xbf16>, vector<16x512xbf16>, vector<16x512xbf16> -> vector<144x512xbf16>
    %c0_81 = arith.constant 0 : index
    %c0_82 = arith.constant 0 : index
    %247 = vector.load %arg7[%c0_81, %c0_82] : memref<16x144xbf16, #tpu.memory_space<vmem>>, vector<16x144xbf16>
    %cst_83 = arith.constant dense<0.000000e+00> : vector<16x512xf32>
    %248 = tpu.matmul %247, %246, %cst_83 {dimension_numbers = #tpu.dot_dimension_numbers<[1], [0], [0], [1], [0, 0, 1, 1], [], []>} : vector<16x144xbf16>, vector<144x512xbf16>, vector<16x512xf32> -> vector<16x512xf32>
    %cst_84 = arith.constant dense<0.000000e+00> : vector<16xf32>
    %249 = vector.multi_reduction <add>, %248, %cst_84 [1] : vector<16x512xf32> to vector<16xf32>
    %250 = vector.shape_cast %249 : vector<16xf32> to vector<16x1xf32>
    %cst_85 = arith.constant 0.001953125 : f32
    %251 = vector.broadcast %cst_85 : f32 to vector<16x1xf32>
    %252 = arith.mulf %250, %251 : vector<16x1xf32>
    %253 = vector.broadcast %252 : vector<16x1xf32> to vector<16x512xf32>
    %254 = arith.subf %248, %253 : vector<16x512xf32>
    %255 = arith.mulf %254, %254 : vector<16x512xf32>
    %cst_86 = arith.constant dense<0.000000e+00> : vector<16xf32>
    %256 = vector.multi_reduction <add>, %255, %cst_86 [1] : vector<16x512xf32> to vector<16xf32>
    %257 = vector.shape_cast %256 : vector<16xf32> to vector<16x1xf32>
    %cst_87 = arith.constant 0.001953125 : f32
    %258 = vector.broadcast %cst_87 : f32 to vector<16x1xf32>
    %259 = arith.mulf %257, %258 : vector<16x1xf32>
    %c0_88 = arith.constant 0 : index
    %c0_89 = arith.constant 0 : index
    %260 = vector.load %arg8[%c0_88, %c0_89] : memref<16x1xf32, #tpu.memory_space<vmem>>, vector<16x1xf32>
    %cst_90 = arith.constant 9.99999974E-6 : f32
    %261 = vector.broadcast %cst_90 : f32 to vector<16x1xf32>
    %262 = arith.addf %259, %261 : vector<16x1xf32>
    %263 = math.rsqrt %262 : vector<16x1xf32>
    %264 = arith.mulf %260, %263 : vector<16x1xf32>
    %265 = vector.broadcast %264 : vector<16x1xf32> to vector<16x512xf32>
    %266 = arith.mulf %254, %265 : vector<16x512xf32>
    %c0_91 = arith.constant 0 : index
    %c0_92 = arith.constant 0 : index
    %267 = vector.load %arg9[%c0_91, %c0_92] : memref<16x1xf32, #tpu.memory_space<vmem>>, vector<16x1xf32>
    %268 = vector.broadcast %267 : vector<16x1xf32> to vector<16x512xf32>
    %269 = arith.addf %266, %268 : vector<16x512xf32>
    %270 = arith.addf %269, %120 : vector<16x512xf32>
    %cst_93 = arith.constant 0.000000e+00 : f32
    %271 = vector.broadcast %cst_93 : f32 to vector<16x512xf32>
    %272 = arith.maximumf %270, %271 : vector<16x512xf32>
    %c17_i32_94 = arith.constant 17 : i32
    %273 = tpu.dynamic_rotate %272 by %c17_i32_94 dim 1 : vector<16x512xf32>, i32 -> vector<16x512xf32>
    %cst_95 = arith.constant 0.000000e+00 : f32
    %274 = vector.shape_cast %41 : vector<1x512xi1> to vector<1x512xi1>
    %275 = vector.broadcast %274 : vector<1x512xi1> to vector<16x512xi1>
    %276 = vector.broadcast %cst_95 : f32 to vector<16x512xf32>
    %277 = arith.select %275, %273, %276 : vector<16x512xi1>, vector<16x512xf32>
    %278 = arith.truncf %277 : vector<16x512xf32> to vector<16x512xbf16>
    %c16_i32_96 = arith.constant 16 : i32
    %279 = tpu.dynamic_rotate %272 by %c16_i32_96 dim 1 : vector<16x512xf32>, i32 -> vector<16x512xf32>
    %cst_97 = arith.constant 0.000000e+00 : f32
    %280 = vector.shape_cast %34 : vector<1x512xi1> to vector<1x512xi1>
    %281 = vector.broadcast %280 : vector<1x512xi1> to vector<16x512xi1>
    %282 = vector.broadcast %cst_97 : f32 to vector<16x512xf32>
    %283 = arith.select %281, %279, %282 : vector<16x512xi1>, vector<16x512xf32>
    %284 = arith.truncf %283 : vector<16x512xf32> to vector<16x512xbf16>
    %c15_i32_98 = arith.constant 15 : i32
    %285 = tpu.dynamic_rotate %272 by %c15_i32_98 dim 1 : vector<16x512xf32>, i32 -> vector<16x512xf32>
    %cst_99 = arith.constant 0.000000e+00 : f32
    %286 = vector.shape_cast %42 : vector<1x512xi1> to vector<1x512xi1>
    %287 = vector.broadcast %286 : vector<1x512xi1> to vector<16x512xi1>
    %288 = vector.broadcast %cst_99 : f32 to vector<16x512xf32>
    %289 = arith.select %287, %285, %288 : vector<16x512xi1>, vector<16x512xf32>
    %290 = arith.truncf %289 : vector<16x512xf32> to vector<16x512xbf16>
    %c1_i32_100 = arith.constant 1 : i32
    %291 = tpu.dynamic_rotate %272 by %c1_i32_100 dim 1 : vector<16x512xf32>, i32 -> vector<16x512xf32>
    %cst_101 = arith.constant 0.000000e+00 : f32
    %292 = vector.shape_cast %38 : vector<1x512xi1> to vector<1x512xi1>
    %293 = vector.broadcast %292 : vector<1x512xi1> to vector<16x512xi1>
    %294 = vector.broadcast %cst_101 : f32 to vector<16x512xf32>
    %295 = arith.select %293, %291, %294 : vector<16x512xi1>, vector<16x512xf32>
    %296 = arith.truncf %295 : vector<16x512xf32> to vector<16x512xbf16>
    %297 = arith.truncf %272 : vector<16x512xf32> to vector<16x512xbf16>
    %c511_i32_102 = arith.constant 511 : i32
    %298 = tpu.dynamic_rotate %272 by %c511_i32_102 dim 1 : vector<16x512xf32>, i32 -> vector<16x512xf32>
    %cst_103 = arith.constant 0.000000e+00 : f32
    %299 = vector.shape_cast %40 : vector<1x512xi1> to vector<1x512xi1>
    %300 = vector.broadcast %299 : vector<1x512xi1> to vector<16x512xi1>
    %301 = vector.broadcast %cst_103 : f32 to vector<16x512xf32>
    %302 = arith.select %300, %298, %301 : vector<16x512xi1>, vector<16x512xf32>
    %303 = arith.truncf %302 : vector<16x512xf32> to vector<16x512xbf16>
    %c497_i32_104 = arith.constant 497 : i32
    %304 = tpu.dynamic_rotate %272 by %c497_i32_104 dim 1 : vector<16x512xf32>, i32 -> vector<16x512xf32>
    %cst_105 = arith.constant 0.000000e+00 : f32
    %305 = vector.shape_cast %43 : vector<1x512xi1> to vector<1x512xi1>
    %306 = vector.broadcast %305 : vector<1x512xi1> to vector<16x512xi1>
    %307 = vector.broadcast %cst_105 : f32 to vector<16x512xf32>
    %308 = arith.select %306, %304, %307 : vector<16x512xi1>, vector<16x512xf32>
    %309 = arith.truncf %308 : vector<16x512xf32> to vector<16x512xbf16>
    %c496_i32_106 = arith.constant 496 : i32
    %310 = tpu.dynamic_rotate %272 by %c496_i32_106 dim 1 : vector<16x512xf32>, i32 -> vector<16x512xf32>
    %cst_107 = arith.constant 0.000000e+00 : f32
    %311 = vector.shape_cast %36 : vector<1x512xi1> to vector<1x512xi1>
    %312 = vector.broadcast %311 : vector<1x512xi1> to vector<16x512xi1>
    %313 = vector.broadcast %cst_107 : f32 to vector<16x512xf32>
    %314 = arith.select %312, %310, %313 : vector<16x512xi1>, vector<16x512xf32>
    %315 = arith.truncf %314 : vector<16x512xf32> to vector<16x512xbf16>
    %c495_i32_108 = arith.constant 495 : i32
    %316 = tpu.dynamic_rotate %272 by %c495_i32_108 dim 1 : vector<16x512xf32>, i32 -> vector<16x512xf32>
    %cst_109 = arith.constant 0.000000e+00 : f32
    %317 = vector.shape_cast %44 : vector<1x512xi1> to vector<1x512xi1>
    %318 = vector.broadcast %317 : vector<1x512xi1> to vector<16x512xi1>
    %319 = vector.broadcast %cst_109 : f32 to vector<16x512xf32>
    %320 = arith.select %318, %316, %319 : vector<16x512xi1>, vector<16x512xf32>
    %321 = arith.truncf %320 : vector<16x512xf32> to vector<16x512xbf16>
    %322 = tpu.concatenate %278, %284, %290, %296, %297, %303, %309, %315, %321 in 0 : vector<16x512xbf16>, vector<16x512xbf16>, vector<16x512xbf16>, vector<16x512xbf16>, vector<16x512xbf16>, vector<16x512xbf16>, vector<16x512xbf16>, vector<16x512xbf16>, vector<16x512xbf16> -> vector<144x512xbf16>
    %c0_110 = arith.constant 0 : index
    %c0_111 = arith.constant 0 : index
    %323 = vector.load %arg10[%c0_110, %c0_111] : memref<16x144xbf16, #tpu.memory_space<vmem>>, vector<16x144xbf16>
    %cst_112 = arith.constant dense<0.000000e+00> : vector<16x512xf32>
    %324 = tpu.matmul %323, %322, %cst_112 {dimension_numbers = #tpu.dot_dimension_numbers<[1], [0], [0], [1], [0, 0, 1, 1], [], []>} : vector<16x144xbf16>, vector<144x512xbf16>, vector<16x512xf32> -> vector<16x512xf32>
    %cst_113 = arith.constant dense<0.000000e+00> : vector<16xf32>
    %325 = vector.multi_reduction <add>, %324, %cst_113 [1] : vector<16x512xf32> to vector<16xf32>
    %326 = vector.shape_cast %325 : vector<16xf32> to vector<16x1xf32>
    %cst_114 = arith.constant 0.001953125 : f32
    %327 = vector.broadcast %cst_114 : f32 to vector<16x1xf32>
    %328 = arith.mulf %326, %327 : vector<16x1xf32>
    %329 = vector.broadcast %328 : vector<16x1xf32> to vector<16x512xf32>
    %330 = arith.subf %324, %329 : vector<16x512xf32>
    %331 = arith.mulf %330, %330 : vector<16x512xf32>
    %cst_115 = arith.constant dense<0.000000e+00> : vector<16xf32>
    %332 = vector.multi_reduction <add>, %331, %cst_115 [1] : vector<16x512xf32> to vector<16xf32>
    %333 = vector.shape_cast %332 : vector<16xf32> to vector<16x1xf32>
    %cst_116 = arith.constant 0.001953125 : f32
    %334 = vector.broadcast %cst_116 : f32 to vector<16x1xf32>
    %335 = arith.mulf %333, %334 : vector<16x1xf32>
    %c0_117 = arith.constant 0 : index
    %c0_118 = arith.constant 0 : index
    %336 = vector.load %arg11[%c0_117, %c0_118] : memref<16x1xf32, #tpu.memory_space<vmem>>, vector<16x1xf32>
    %cst_119 = arith.constant 9.99999974E-6 : f32
    %337 = vector.broadcast %cst_119 : f32 to vector<16x1xf32>
    %338 = arith.addf %335, %337 : vector<16x1xf32>
    %339 = math.rsqrt %338 : vector<16x1xf32>
    %340 = arith.mulf %336, %339 : vector<16x1xf32>
    %341 = vector.broadcast %340 : vector<16x1xf32> to vector<16x512xf32>
    %342 = arith.mulf %330, %341 : vector<16x512xf32>
    %c0_120 = arith.constant 0 : index
    %c0_121 = arith.constant 0 : index
    %343 = vector.load %arg12[%c0_120, %c0_121] : memref<16x1xf32, #tpu.memory_space<vmem>>, vector<16x1xf32>
    %344 = vector.broadcast %343 : vector<16x1xf32> to vector<16x512xf32>
    %345 = arith.addf %342, %344 : vector<16x512xf32>
    %cst_122 = arith.constant 0.000000e+00 : f32
    %346 = vector.broadcast %cst_122 : f32 to vector<16x512xf32>
    %347 = arith.maximumf %345, %346 : vector<16x512xf32>
    %c17_i32_123 = arith.constant 17 : i32
    %348 = tpu.dynamic_rotate %347 by %c17_i32_123 dim 1 : vector<16x512xf32>, i32 -> vector<16x512xf32>
    %cst_124 = arith.constant 0.000000e+00 : f32
    %349 = vector.shape_cast %41 : vector<1x512xi1> to vector<1x512xi1>
    %350 = vector.broadcast %349 : vector<1x512xi1> to vector<16x512xi1>
    %351 = vector.broadcast %cst_124 : f32 to vector<16x512xf32>
    %352 = arith.select %350, %348, %351 : vector<16x512xi1>, vector<16x512xf32>
    %353 = arith.truncf %352 : vector<16x512xf32> to vector<16x512xbf16>
    %c16_i32_125 = arith.constant 16 : i32
    %354 = tpu.dynamic_rotate %347 by %c16_i32_125 dim 1 : vector<16x512xf32>, i32 -> vector<16x512xf32>
    %cst_126 = arith.constant 0.000000e+00 : f32
    %355 = vector.shape_cast %34 : vector<1x512xi1> to vector<1x512xi1>
    %356 = vector.broadcast %355 : vector<1x512xi1> to vector<16x512xi1>
    %357 = vector.broadcast %cst_126 : f32 to vector<16x512xf32>
    %358 = arith.select %356, %354, %357 : vector<16x512xi1>, vector<16x512xf32>
    %359 = arith.truncf %358 : vector<16x512xf32> to vector<16x512xbf16>
    %c15_i32_127 = arith.constant 15 : i32
    %360 = tpu.dynamic_rotate %347 by %c15_i32_127 dim 1 : vector<16x512xf32>, i32 -> vector<16x512xf32>
    %cst_128 = arith.constant 0.000000e+00 : f32
    %361 = vector.shape_cast %42 : vector<1x512xi1> to vector<1x512xi1>
    %362 = vector.broadcast %361 : vector<1x512xi1> to vector<16x512xi1>
    %363 = vector.broadcast %cst_128 : f32 to vector<16x512xf32>
    %364 = arith.select %362, %360, %363 : vector<16x512xi1>, vector<16x512xf32>
    %365 = arith.truncf %364 : vector<16x512xf32> to vector<16x512xbf16>
    %c1_i32_129 = arith.constant 1 : i32
    %366 = tpu.dynamic_rotate %347 by %c1_i32_129 dim 1 : vector<16x512xf32>, i32 -> vector<16x512xf32>
    %cst_130 = arith.constant 0.000000e+00 : f32
    %367 = vector.shape_cast %38 : vector<1x512xi1> to vector<1x512xi1>
    %368 = vector.broadcast %367 : vector<1x512xi1> to vector<16x512xi1>
    %369 = vector.broadcast %cst_130 : f32 to vector<16x512xf32>
    %370 = arith.select %368, %366, %369 : vector<16x512xi1>, vector<16x512xf32>
    %371 = arith.truncf %370 : vector<16x512xf32> to vector<16x512xbf16>
    %372 = arith.truncf %347 : vector<16x512xf32> to vector<16x512xbf16>
    %c511_i32_131 = arith.constant 511 : i32
    %373 = tpu.dynamic_rotate %347 by %c511_i32_131 dim 1 : vector<16x512xf32>, i32 -> vector<16x512xf32>
    %cst_132 = arith.constant 0.000000e+00 : f32
    %374 = vector.shape_cast %40 : vector<1x512xi1> to vector<1x512xi1>
    %375 = vector.broadcast %374 : vector<1x512xi1> to vector<16x512xi1>
    %376 = vector.broadcast %cst_132 : f32 to vector<16x512xf32>
    %377 = arith.select %375, %373, %376 : vector<16x512xi1>, vector<16x512xf32>
    %378 = arith.truncf %377 : vector<16x512xf32> to vector<16x512xbf16>
    %c497_i32_133 = arith.constant 497 : i32
    %379 = tpu.dynamic_rotate %347 by %c497_i32_133 dim 1 : vector<16x512xf32>, i32 -> vector<16x512xf32>
    %cst_134 = arith.constant 0.000000e+00 : f32
    %380 = vector.shape_cast %43 : vector<1x512xi1> to vector<1x512xi1>
    %381 = vector.broadcast %380 : vector<1x512xi1> to vector<16x512xi1>
    %382 = vector.broadcast %cst_134 : f32 to vector<16x512xf32>
    %383 = arith.select %381, %379, %382 : vector<16x512xi1>, vector<16x512xf32>
    %384 = arith.truncf %383 : vector<16x512xf32> to vector<16x512xbf16>
    %c496_i32_135 = arith.constant 496 : i32
    %385 = tpu.dynamic_rotate %347 by %c496_i32_135 dim 1 : vector<16x512xf32>, i32 -> vector<16x512xf32>
    %cst_136 = arith.constant 0.000000e+00 : f32
    %386 = vector.shape_cast %36 : vector<1x512xi1> to vector<1x512xi1>
    %387 = vector.broadcast %386 : vector<1x512xi1> to vector<16x512xi1>
    %388 = vector.broadcast %cst_136 : f32 to vector<16x512xf32>
    %389 = arith.select %387, %385, %388 : vector<16x512xi1>, vector<16x512xf32>
    %390 = arith.truncf %389 : vector<16x512xf32> to vector<16x512xbf16>
    %c495_i32_137 = arith.constant 495 : i32
    %391 = tpu.dynamic_rotate %347 by %c495_i32_137 dim 1 : vector<16x512xf32>, i32 -> vector<16x512xf32>
    %cst_138 = arith.constant 0.000000e+00 : f32
    %392 = vector.shape_cast %44 : vector<1x512xi1> to vector<1x512xi1>
    %393 = vector.broadcast %392 : vector<1x512xi1> to vector<16x512xi1>
    %394 = vector.broadcast %cst_138 : f32 to vector<16x512xf32>
    %395 = arith.select %393, %391, %394 : vector<16x512xi1>, vector<16x512xf32>
    %396 = arith.truncf %395 : vector<16x512xf32> to vector<16x512xbf16>
    %397 = tpu.concatenate %353, %359, %365, %371, %372, %378, %384, %390, %396 in 0 : vector<16x512xbf16>, vector<16x512xbf16>, vector<16x512xbf16>, vector<16x512xbf16>, vector<16x512xbf16>, vector<16x512xbf16>, vector<16x512xbf16>, vector<16x512xbf16>, vector<16x512xbf16> -> vector<144x512xbf16>
    %c0_139 = arith.constant 0 : index
    %c0_140 = arith.constant 0 : index
    %398 = vector.load %arg13[%c0_139, %c0_140] : memref<16x144xbf16, #tpu.memory_space<vmem>>, vector<16x144xbf16>
    %cst_141 = arith.constant dense<0.000000e+00> : vector<16x512xf32>
    %399 = tpu.matmul %398, %397, %cst_141 {dimension_numbers = #tpu.dot_dimension_numbers<[1], [0], [0], [1], [0, 0, 1, 1], [], []>} : vector<16x144xbf16>, vector<144x512xbf16>, vector<16x512xf32> -> vector<16x512xf32>
    %cst_142 = arith.constant dense<0.000000e+00> : vector<16xf32>
    %400 = vector.multi_reduction <add>, %399, %cst_142 [1] : vector<16x512xf32> to vector<16xf32>
    %401 = vector.shape_cast %400 : vector<16xf32> to vector<16x1xf32>
    %cst_143 = arith.constant 0.001953125 : f32
    %402 = vector.broadcast %cst_143 : f32 to vector<16x1xf32>
    %403 = arith.mulf %401, %402 : vector<16x1xf32>
    %404 = vector.broadcast %403 : vector<16x1xf32> to vector<16x512xf32>
    %405 = arith.subf %399, %404 : vector<16x512xf32>
    %406 = arith.mulf %405, %405 : vector<16x512xf32>
    %cst_144 = arith.constant dense<0.000000e+00> : vector<16xf32>
    %407 = vector.multi_reduction <add>, %406, %cst_144 [1] : vector<16x512xf32> to vector<16xf32>
    %408 = vector.shape_cast %407 : vector<16xf32> to vector<16x1xf32>
    %cst_145 = arith.constant 0.001953125 : f32
    %409 = vector.broadcast %cst_145 : f32 to vector<16x1xf32>
    %410 = arith.mulf %408, %409 : vector<16x1xf32>
    %c0_146 = arith.constant 0 : index
    %c0_147 = arith.constant 0 : index
    %411 = vector.load %arg14[%c0_146, %c0_147] : memref<16x1xf32, #tpu.memory_space<vmem>>, vector<16x1xf32>
    %cst_148 = arith.constant 9.99999974E-6 : f32
    %412 = vector.broadcast %cst_148 : f32 to vector<16x1xf32>
    %413 = arith.addf %410, %412 : vector<16x1xf32>
    %414 = math.rsqrt %413 : vector<16x1xf32>
    %415 = arith.mulf %411, %414 : vector<16x1xf32>
    %416 = vector.broadcast %415 : vector<16x1xf32> to vector<16x512xf32>
    %417 = arith.mulf %405, %416 : vector<16x512xf32>
    %c0_149 = arith.constant 0 : index
    %c0_150 = arith.constant 0 : index
    %418 = vector.load %arg15[%c0_149, %c0_150] : memref<16x1xf32, #tpu.memory_space<vmem>>, vector<16x1xf32>
    %419 = vector.broadcast %418 : vector<16x1xf32> to vector<16x512xf32>
    %420 = arith.addf %417, %419 : vector<16x512xf32>
    %421 = arith.addf %420, %272 : vector<16x512xf32>
    %cst_151 = arith.constant 0.000000e+00 : f32
    %422 = vector.broadcast %cst_151 : f32 to vector<16x512xf32>
    %423 = arith.maximumf %421, %422 : vector<16x512xf32>
    %424 = vector.extract_strided_slice %423 {offsets = [0, 0], sizes = [16, 256], strides = [1, 1]} : vector<16x512xf32> to vector<16x256xf32>
    %cst_152 = arith.constant dense<0.000000e+00> : vector<16xf32>
    %425 = vector.multi_reduction <add>, %424, %cst_152 [1] : vector<16x256xf32> to vector<16xf32>
    %426 = vector.shape_cast %425 : vector<16xf32> to vector<16x1xf32>
    %427 = vector.extract_strided_slice %423 {offsets = [0, 256], sizes = [16, 256], strides = [1, 1]} : vector<16x512xf32> to vector<16x256xf32>
    %cst_153 = arith.constant dense<0.000000e+00> : vector<16xf32>
    %428 = vector.multi_reduction <add>, %427, %cst_153 [1] : vector<16x256xf32> to vector<16xf32>
    %429 = vector.shape_cast %428 : vector<16xf32> to vector<16x1xf32>
    %430 = tpu.concatenate %426, %429 in 1 : vector<16x1xf32>, vector<16x1xf32> -> vector<16x2xf32>
    %cst_154 = arith.constant 3.906250e-03 : f32
    %431 = vector.broadcast %cst_154 : f32 to vector<16x2xf32>
    %432 = arith.mulf %430, %431 : vector<16x2xf32>
    %433 = arith.truncf %432 : vector<16x2xf32> to vector<16x2xbf16>
    %c0_155 = arith.constant 0 : index
    %c0_156 = arith.constant 0 : index
    %434 = vector.load %arg16[%c0_155, %c0_156] : memref<16x128xbf16, #tpu.memory_space<vmem>>, vector<16x128xbf16>
    %cst_157 = arith.constant dense<0.000000e+00> : vector<2x128xf32>
    %435 = tpu.matmul %433, %434, %cst_157 {dimension_numbers = #tpu.dot_dimension_numbers<[0], [0], [1], [1], [0, 1, 1, 1], [], []>} : vector<16x2xbf16>, vector<16x128xbf16>, vector<2x128xf32> -> vector<2x128xf32>
    %c0_158 = arith.constant 0 : index
    %c0_159 = arith.constant 0 : index
    %436 = vector.load %arg17[%c0_158, %c0_159] : memref<1x128xf32, #tpu.memory_space<vmem>>, vector<1x128xf32>
    %437 = vector.broadcast %436 : vector<1x128xf32> to vector<2x128xf32>
    %438 = arith.addf %435, %437 : vector<2x128xf32>
    %c0_160 = arith.constant 0 : index
    %c0_161 = arith.constant 0 : index
    %439 = vector.load %arg19[%c0_160, %c0_161] : memref<2x128xf32, #tpu.memory_space<vmem>>, vector<2x128xf32>
    tpu.vector_store %arg19[%c0_160, %c0_161], %438 {strides = array<i32>} : memref<2x128xf32, #tpu.memory_space<vmem>>, vector<2x128xf32>,
    return
  }
}

</mosaic_0001>

<llo_original>
// kernel: resnet_client_gkt_forward.1
$region0: #{resnet_client_gkt_forward.1}
  #allocation0 [shape = 'u32[]', space=smem, size = 0x4, offset = 0x4, fixed_abs, tag = 'smem constant byte address 0x4 - core index']
  #allocation1 [shape = 'u32[144,128]{1,0:T(1,128)}', space=vmem, size = 0x12000, scoped, tag = 'internal scratch']
  %s0 = inlined_call_operand.vmem [shape: f32[3,512], index: 0, kind: input, shape index: {}]
  %s1 = inlined_call_operand.vmem [shape: bf16[16,27], index: 1, kind: input, shape index: {}]
  %s2 = inlined_call_operand.vmem [shape: f32[16,1], index: 2, kind: input, shape index: {}, may-alias: {2,5,8,11,14}]
  %s3 = inlined_call_operand.vmem [shape: f32[16,1], index: 3, kind: input, shape index: {}, may-alias: {3,6,9,12,15}]
  %s4 = inlined_call_operand.vmem [shape: bf16[16,144], index: 4, kind: input, shape index: {}]
  %s5 = inlined_call_operand.vmem [shape: f32[16,1], index: 5, kind: input, shape index: {}, may-alias: {2,5,8,11,14}]
  %s6 = inlined_call_operand.vmem [shape: f32[16,1], index: 6, kind: input, shape index: {}, may-alias: {3,6,9,12,15}]
  %s7 = inlined_call_operand.vmem [shape: bf16[16,144], index: 7, kind: input, shape index: {}]
  %s8 = inlined_call_operand.vmem [shape: f32[16,1], index: 8, kind: input, shape index: {}, may-alias: {2,5,8,11,14}]
  %s9 = inlined_call_operand.vmem [shape: f32[16,1], index: 9, kind: input, shape index: {}, may-alias: {3,6,9,12,15}]
  %s10 = inlined_call_operand.vmem [shape: bf16[16,144], index: 10, kind: input, shape index: {}]
  %s11 = inlined_call_operand.vmem [shape: f32[16,1], index: 11, kind: input, shape index: {}, may-alias: {2,5,8,11,14}]
  %s12 = inlined_call_operand.vmem [shape: f32[16,1], index: 12, kind: input, shape index: {}, may-alias: {3,6,9,12,15}]
  %s13 = inlined_call_operand.vmem [shape: bf16[16,144], index: 13, kind: input, shape index: {}]
  %s14 = inlined_call_operand.vmem [shape: f32[16,1], index: 14, kind: input, shape index: {}, may-alias: {2,5,8,11,14}]
  %s15 = inlined_call_operand.vmem [shape: f32[16,1], index: 15, kind: input, shape index: {}, may-alias: {3,6,9,12,15}]
  %s16 = inlined_call_operand.vmem [shape: bf16[16,128], index: 16, kind: input, shape index: {}]
  %s17 = inlined_call_operand.vmem [shape: f32[1,128], index: 17, kind: input, shape index: {}]
  %s18 = inlined_call_operand.vmem [shape: f32[16,512], index: 18, kind: output, shape index: {0}]
  %s19 = inlined_call_operand.hbm [shape: f32[2,128], index: 19, kind: output, shape index: {1}]
  %20 = xla_tuple %s18, %s19
  %s21 = sld [smem:[#allocation0]]
  $region90: #{resnet_client_gkt_forward.1} parent=0
    _
  %s23 = ssub.s32 1, %s21
  %s24 = scalar_select 0, %s23, %s21
  $region1: #{resnet_client_gkt_forward.1} parent=0
    #allocation2 [shape = 'u8[1024]{0}', space=vmem, size = 0x400, scoped, tag = 'output window, operand 1, single buffered']
    #allocation3 [shape = 's32[1]{0}', space=sflag, size = 0x4, scoped, tag = 'scoped memory for resnet_client_gkt_forward.1']
    %25 = vsyncpa [#allocation3], 0
    // Predicated region
    $region2: #{resnet_client_gkt_forward.1} parent=1 // pred_check
      _
    $region3: #{resnet_client_gkt_forward.1} parent=1 // pred_check_branch
      %27 = sbr.rel (0) target = $region5
    $region4: #{resnet_client_gkt_forward.1} parent=1 // pred_region
      _
    $region5: #{resnet_client_gkt_forward.1} parent=1 // pred_fallthru
      _
    // Predicated region
    $region6: #{resnet_client_gkt_forward.1} parent=1 // pred_check
      _
    $region7: #{resnet_client_gkt_forward.1} parent=1 // pred_check_branch
      %29 = sbr.rel (0) target = $region9
    $region8: #{resnet_client_gkt_forward.1} parent=1 // pred_region
      _
    $region9: #{resnet_client_gkt_forward.1} parent=1 // pred_fallthru
      _
    // Predicated region
    $region10: #{resnet_client_gkt_forward.1} parent=1 // pred_check
      _
    $region11: #{resnet_client_gkt_forward.1} parent=1 // pred_check_branch
      %31 = sbr.rel (0) target = $region13
    $region12: #{resnet_client_gkt_forward.1} parent=1 // pred_region
      _
    $region13: #{resnet_client_gkt_forward.1} parent=1 // pred_fallthru
      _
    // Predicated region
    $region14: #{resnet_client_gkt_forward.1} parent=1 // pred_check
      _
    $region15: #{resnet_client_gkt_forward.1} parent=1 // pred_check_branch
      %33 = sbr.rel (0) target = $region17
    $region16: #{resnet_client_gkt_forward.1} parent=1 // pred_region
      _
    $region17: #{resnet_client_gkt_forward.1} parent=1 // pred_fallthru
      _
    // Predicated region
    $region18: #{resnet_client_gkt_forward.1} parent=1 // pred_check
      _
    $region19: #{resnet_client_gkt_forward.1} parent=1 // pred_check_branch
      %35 = sbr.rel (0) target = $region21
    $region20: #{resnet_client_gkt_forward.1} parent=1 // pred_region
      _
    $region21: #{resnet_client_gkt_forward.1} parent=1 // pred_fallthru
      _
    // Predicated region
    $region22: #{resnet_client_gkt_forward.1} parent=1 // pred_check
      _
    $region23: #{resnet_client_gkt_forward.1} parent=1 // pred_check_branch
      %37 = sbr.rel (0) target = $region25
    $region24: #{resnet_client_gkt_forward.1} parent=1 // pred_region
      _
    $region25: #{resnet_client_gkt_forward.1} parent=1 // pred_fallthru
      _
    // Predicated region
    $region26: #{resnet_client_gkt_forward.1} parent=1 // pred_check
      _
    $region27: #{resnet_client_gkt_forward.1} parent=1 // pred_check_branch
      %39 = sbr.rel (0) target = $region29
    $region28: #{resnet_client_gkt_forward.1} parent=1 // pred_region
      _
    $region29: #{resnet_client_gkt_forward.1} parent=1 // pred_fallthru
      _
    // Predicated region
    $region30: #{resnet_client_gkt_forward.1} parent=1 // pred_check
      _
    $region31: #{resnet_client_gkt_forward.1} parent=1 // pred_check_branch
      %41 = sbr.rel (0) target = $region33
    $region32: #{resnet_client_gkt_forward.1} parent=1 // pred_region
      _
    $region33: #{resnet_client_gkt_forward.1} parent=1 // pred_fallthru
      _
    // Predicated region
    $region34: #{resnet_client_gkt_forward.1} parent=1 // pred_check
      _
    $region35: #{resnet_client_gkt_forward.1} parent=1 // pred_check_branch
      %43 = sbr.rel (0) target = $region37
    $region36: #{resnet_client_gkt_forward.1} parent=1 // pred_region
      _
    $region37: #{resnet_client_gkt_forward.1} parent=1 // pred_fallthru
      _
    // Predicated region
    $region38: #{resnet_client_gkt_forward.1} parent=1 // pred_check
      _
    $region39: #{resnet_client_gkt_forward.1} parent=1 // pred_check_branch
      %45 = sbr.rel (0) target = $region41
    $region40: #{resnet_client_gkt_forward.1} parent=1 // pred_region
      _
    $region41: #{resnet_client_gkt_forward.1} parent=1 // pred_fallthru
      _
    // Predicated region
    $region42: #{resnet_client_gkt_forward.1} parent=1 // pred_check
      _
    $region43: #{resnet_client_gkt_forward.1} parent=1 // pred_check_branch
      %47 = sbr.rel (0) target = $region45
    $region44: #{resnet_client_gkt_forward.1} parent=1 // pred_region
      _
    $region45: #{resnet_client_gkt_forward.1} parent=1 // pred_fallthru
      _
    // Predicated region
    $region46: #{resnet_client_gkt_forward.1} parent=1 // pred_check
      _
    $region47: #{resnet_client_gkt_forward.1} parent=1 // pred_check_branch
      %49 = sbr.rel (0) target = $region49
    $region48: #{resnet_client_gkt_forward.1} parent=1 // pred_region
      _
    $region49: #{resnet_client_gkt_forward.1} parent=1 // pred_fallthru
      _
    // Predicated region
    $region50: #{resnet_client_gkt_forward.1} parent=1 // pred_check
      _
    $region51: #{resnet_client_gkt_forward.1} parent=1 // pred_check_branch
      %51 = sbr.rel (0) target = $region53
    $region52: #{resnet_client_gkt_forward.1} parent=1 // pred_region
      _
    $region53: #{resnet_client_gkt_forward.1} parent=1 // pred_fallthru
      _
    // Predicated region
    $region54: #{resnet_client_gkt_forward.1} parent=1 // pred_check
      _
    $region55: #{resnet_client_gkt_forward.1} parent=1 // pred_check_branch
      %53 = sbr.rel (0) target = $region57
    $region56: #{resnet_client_gkt_forward.1} parent=1 // pred_region
      _
    $region57: #{resnet_client_gkt_forward.1} parent=1 // pred_fallthru
      _
    // Predicated region
    $region58: #{resnet_client_gkt_forward.1} parent=1 // pred_check
      _
    $region59: #{resnet_client_gkt_forward.1} parent=1 // pred_check_branch
      %55 = sbr.rel (0) target = $region61
    $region60: #{resnet_client_gkt_forward.1} parent=1 // pred_region
      _
    $region61: #{resnet_client_gkt_forward.1} parent=1 // pred_fallthru
      _
    // Predicated region
    $region62: #{resnet_client_gkt_forward.1} parent=1 // pred_check
      _
    $region63: #{resnet_client_gkt_forward.1} parent=1 // pred_check_branch
      %57 = sbr.rel (0) target = $region65
    $region64: #{resnet_client_gkt_forward.1} parent=1 // pred_region
      _
    $region65: #{resnet_client_gkt_forward.1} parent=1 // pred_fallthru
      _
    // Predicated region
    $region66: #{resnet_client_gkt_forward.1} parent=1 // pred_check
      _
    $region67: #{resnet_client_gkt_forward.1} parent=1 // pred_check_branch
      %59 = sbr.rel (0) target = $region69
    $region68: #{resnet_client_gkt_forward.1} parent=1 // pred_region
      _
    $region69: #{resnet_client_gkt_forward.1} parent=1 // pred_fallthru
      _
    // Predicated region
    $region70: #{resnet_client_gkt_forward.1} parent=1 // pred_check
      _
    $region71: #{resnet_client_gkt_forward.1} parent=1 // pred_check_branch
      %61 = sbr.rel (0) target = $region73
    $region72: #{resnet_client_gkt_forward.1} parent=1 // pred_region
      _
    $region73: #{resnet_client_gkt_forward.1} parent=1 // pred_fallthru
      _
    %v63 = vlaneseq
    %v64 = vand.u32 %v63, 127
    %v65 = vadd.s32 %v64, 128
    %v66 = vadd.s32 %v64, 256
    %v67 = vadd.s32 %v64, 384
    %vm68 = vcmp.lt.s32.totalorder %v64, 0
    %v69 = vsub.s32 0, %v64
    %v70 = vsel %vm68, %v69, %v64
    %v71 = vshrl.u32 %v70, 8
    %v72 = vand.u32 %v70, 255
    %v73 = vsub.s32 0, %v72
    %v74 = vsel %vm68, %v73, %v72
    %vm75 = vcmp.lt.s32.totalorder %v65, 0
    %v76 = vsub.s32 0, %v65
    %v77 = vsel %vm75, %v76, %v65
    %v78 = vshrl.u32 %v77, 8
    %v79 = vand.u32 %v77, 255
    %v80 = vsub.s32 0, %v79
    %v81 = vsel %vm75, %v80, %v79
    %vm82 = vcmp.lt.s32.totalorder %v66, 0
    %v83 = vsub.s32 0, %v66
    %v84 = vsel %vm82, %v83, %v66
    %v85 = vshrl.u32 %v84, 8
    %v86 = vand.u32 %v84, 255
    %v87 = vsub.s32 0, %v86
    %v88 = vsel %vm82, %v87, %v86
    %vm89 = vcmp.lt.s32.totalorder %v67, 0
    %v90 = vsub.s32 0, %v67
    %v91 = vsel %vm89, %v90, %v67
    %v92 = vshrl.u32 %v91, 8
    %v93 = vand.u32 %v91, 255
    %v94 = vsub.s32 0, %v93
    %v95 = vsel %vm89, %v94, %v93
    %vm96 = vcmp.ne.s32.totalorder %v74, 0
    %vm97 = vcmp.ne.s32.totalorder %v81, 0
    %vm98 = vcmp.ne.s32.totalorder %v88, 0
    %vm99 = vcmp.ne.s32.totalorder %v95, 0
    %vm100 = vcmp.lt.s32.totalorder %v74, 0
    %vm101 = vcmp.lt.s32.totalorder %v81, 0
    %vm102 = vcmp.lt.s32.totalorder %v88, 0
    %vm103 = vcmp.lt.s32.totalorder %v95, 0
    %vm104 = vmand %vm100, %vm96
    %vm105 = vmand %vm101, %vm97
    %vm106 = vmand %vm102, %vm98
    %vm107 = vmand %vm103, %vm99
    %v108 = vadd.s32 %v74, 256
    %v109 = vadd.s32 %v81, 256
    %v110 = vadd.s32 %v88, 256
    %v111 = vadd.s32 %v95, 256
    %v112 = vsel %vm104, %v108, %v74
    %v113 = vsel %vm105, %v109, %v81
    %v114 = vsel %vm106, %v110, %v88
    %v115 = vsel %vm107, %v111, %v95
    %vm116 = vcmp.lt.s32.totalorder %v64, 0
    %v117 = vsub.s32 0, %v64
    %v118 = vsel %vm116, %v117, %v64
    %v119 = vshrl.u32 %v118, 4
    %v120 = vand.u32 %v118, 15
    %v121 = vsub.s32 0, %v120
    %v122 = vsel %vm116, %v121, %v120
    %vm123 = vcmp.lt.s32.totalorder %v65, 0
    %v124 = vsub.s32 0, %v65
    %v125 = vsel %vm123, %v124, %v65
    %v126 = vshrl.u32 %v125, 4
    %v127 = vand.u32 %v125, 15
    %v128 = vsub.s32 0, %v127
    %v129 = vsel %vm123, %v128, %v127
    %vm130 = vcmp.lt.s32.totalorder %v66, 0
    %v131 = vsub.s32 0, %v66
    %v132 = vsel %vm130, %v131, %v66
    %v133 = vshrl.u32 %v132, 4
    %v134 = vand.u32 %v132, 15
    %v135 = vsub.s32 0, %v134
    %v136 = vsel %vm130, %v135, %v134
    %vm137 = vcmp.lt.s32.totalorder %v67, 0
    %v138 = vsub.s32 0, %v67
    %v139 = vsel %vm137, %v138, %v67
    %v140 = vshrl.u32 %v139, 4
    %v141 = vand.u32 %v139, 15
    %v142 = vsub.s32 0, %v141
    %v143 = vsel %vm137, %v142, %v141
    %vm144 = vcmp.ne.s32.totalorder %v122, 0
    %vm145 = vcmp.ne.s32.totalorder %v129, 0
    %vm146 = vcmp.ne.s32.totalorder %v136, 0
    %vm147 = vcmp.ne.s32.totalorder %v143, 0
    %vm148 = vcmp.lt.s32.totalorder %v122, 0
    %vm149 = vcmp.lt.s32.totalorder %v129, 0
    %vm150 = vcmp.lt.s32.totalorder %v136, 0
    %vm151 = vcmp.lt.s32.totalorder %v143, 0
    %vm152 = vmand %vm148, %vm144
    %vm153 = vmand %vm149, %vm145
    %vm154 = vmand %vm150, %vm146
    %vm155 = vmand %vm151, %vm147
    %v156 = vadd.s32 %v122, 16
    %v157 = vadd.s32 %v129, 16
    %v158 = vadd.s32 %v136, 16
    %v159 = vadd.s32 %v143, 16
    %v160 = vsel %vm152, %v156, %v122
    %v161 = vsel %vm153, %v157, %v129
    %v162 = vsel %vm154, %v158, %v136
    %v163 = vsel %vm155, %v159, %v143
    %vm164 = vcmp.ge.s32.totalorder %v112, 16
    %vm165 = vcmp.ge.s32.totalorder %v113, 16
    %vm166 = vcmp.ge.s32.totalorder %v114, 16
    %vm167 = vcmp.ge.s32.totalorder %v115, 16
    %vm168 = vcmp.lt.s32.totalorder %v112, 240
    %vm169 = vcmp.lt.s32.totalorder %v113, 240
    %vm170 = vcmp.lt.s32.totalorder %v114, 240
    %vm171 = vcmp.lt.s32.totalorder %v115, 240
    %vm172 = vcmp.ge.s32.totalorder %v160, 1
    %vm173 = vcmp.ge.s32.totalorder %v161, 1
    %vm174 = vcmp.ge.s32.totalorder %v162, 1
    %vm175 = vcmp.ge.s32.totalorder %v163, 1
    %vm176 = vcmp.lt.s32.totalorder %v160, 15
    %vm177 = vcmp.lt.s32.totalorder %v161, 15
    %vm178 = vcmp.lt.s32.totalorder %v162, 15
    %vm179 = vcmp.lt.s32.totalorder %v163, 15
    %vm180 = vmand %vm164, %vm172
    %vm181 = vmand %vm165, %vm173
    %vm182 = vmand %vm166, %vm174
    %vm183 = vmand %vm167, %vm175
    %vm184 = vmand %vm164, %vm176
    %vm185 = vmand %vm165, %vm177
    %vm186 = vmand %vm166, %vm178
    %vm187 = vmand %vm167, %vm179
    %vm188 = vmand %vm168, %vm172
    %vm189 = vmand %vm169, %vm173
    %vm190 = vmand %vm170, %vm174
    %vm191 = vmand %vm171, %vm175
    %vm192 = vmand %vm168, %vm176
    %vm193 = vmand %vm169, %vm177
    %vm194 = vmand %vm170, %vm178
    %vm195 = vmand %vm171, %vm179
    %v196 = vld [vmem:[%s0] sm:$0x77]
    %v197 = vld [vmem:[%s0 + $0x8] sm:$0x77]
    %v200 = vcombine.high %v196, %v196
    %v201 = vcombine.high %v197, %v197
    %204 = vrot.lane.b32.xlu0 %v196, 17
    %v205 = vpop.permute.xlu0 %204
    %206 = vrot.lane.b32.xlu0 %v200, 17
    %v207 = vpop.permute.xlu0 %206
    %208 = vrot.lane.b32.xlu0 %v197, 17
    %v209 = vpop.permute.xlu0 %208
    %210 = vrot.lane.b32.xlu0 %v201, 17
    %v211 = vpop.permute.xlu0 %210
    %vm212 = vcmp.lt.s32.totalorder %v64, 17
    %v213 = vsel %vm212, %v209, %v211
    %v214 = vsel %vm212, %v207, %v209
    %v215 = vsel %vm212, %v205, %v207
    %v216 = vsel %vm212, %v211, %v205
    %v217 = vsel %vm180, 1, 0
    %v218 = vsel %vm181, 1, 0
    %v219 = vsel %vm182, 1, 0
    %v220 = vsel %vm183, 1, 0
    %vm221 = vcmp.eq.s32.totalorder %v217, 1
    %vm222 = vcmp.eq.s32.totalorder %v218, 1
    %vm223 = vcmp.eq.s32.totalorder %v219, 1
    %vm224 = vcmp.eq.s32.totalorder %v220, 1
    %v225 = vsel %vm221, %v216, 0.0
    %v226 = vsel %vm222, %v215, 0.0
    %v227 = vsel %vm223, %v214, 0.0
    %v228 = vsel %vm224, %v213, 0.0
    %v229 = vpack.c.bf16 %v225, %v225
    %v230 = vpack.c.bf16 %v226, %v226
    %v231 = vpack.c.bf16 %v227, %v227
    %v232 = vpack.c.bf16 %v228, %v228
    %233 = vrot.lane.b32.xlu0 %v196, 16
    %v234 = vpop.permute.xlu0 %233
    %235 = vrot.lane.b32.xlu0 %v200, 16
    %v236 = vpop.permute.xlu0 %235
    %237 = vrot.lane.b32.xlu0 %v197, 16
    %v238 = vpop.permute.xlu0 %237
    %239 = vrot.lane.b32.xlu0 %v201, 16
    %v240 = vpop.permute.xlu0 %239
    %vm241 = vcmp.lt.s32.totalorder %v64, 16
    %v242 = vsel %vm241, %v238, %v240
    %v243 = vsel %vm241, %v236, %v238
    %v244 = vsel %vm241, %v234, %v236
    %v245 = vsel %vm241, %v240, %v234
    %v246 = vsel %vm164, 1, 0
    %v247 = vsel %vm165, 1, 0
    %v248 = vsel %vm166, 1, 0
    %v249 = vsel %vm167, 1, 0
    %vm250 = vcmp.eq.s32.totalorder %v246, 1
    %vm251 = vcmp.eq.s32.totalorder %v247, 1
    %vm252 = vcmp.eq.s32.totalorder %v248, 1
    %vm253 = vcmp.eq.s32.totalorder %v249, 1
    %v254 = vsel %vm250, %v245, 0.0
    %v255 = vsel %vm251, %v244, 0.0
    %v256 = vsel %vm252, %v243, 0.0
    %v257 = vsel %vm253, %v242, 0.0
    %v258 = vpack.c.bf16 %v254, %v254
    %v259 = vpack.c.bf16 %v255, %v255
    %v260 = vpack.c.bf16 %v256, %v256
    %v261 = vpack.c.bf16 %v257, %v257
    %262 = vrot.lane.b32.xlu0 %v196, 15
    %v263 = vpop.permute.xlu0 %262
    %264 = vrot.lane.b32.xlu0 %v200, 15
    %v265 = vpop.permute.xlu0 %264
    %266 = vrot.lane.b32.xlu0 %v197, 15
    %v267 = vpop.permute.xlu0 %266
    %268 = vrot.lane.b32.xlu0 %v201, 15
    %v269 = vpop.permute.xlu0 %268
    %vm270 = vcmp.lt.s32.totalorder %v64, 15
    %v271 = vsel %vm270, %v267, %v269
    %v272 = vsel %vm270, %v265, %v267
    %v273 = vsel %vm270, %v263, %v265
    %v274 = vsel %vm270, %v269, %v263
    %v275 = vsel %vm184, 1, 0
    %v276 = vsel %vm185, 1, 0
    %v277 = vsel %vm186, 1, 0
    %v278 = vsel %vm187, 1, 0
    %vm279 = vcmp.eq.s32.totalorder %v275, 1
    %vm280 = vcmp.eq.s32.totalorder %v276, 1
    %vm281 = vcmp.eq.s32.totalorder %v277, 1
    %vm282 = vcmp.eq.s32.totalorder %v278, 1
    %v283 = vsel %vm279, %v274, 0.0
    %v284 = vsel %vm280, %v273, 0.0
    %v285 = vsel %vm281, %v272, 0.0
    %v286 = vsel %vm282, %v271, 0.0
    %v287 = vpack.c.bf16 %v283, %v283
    %v288 = vpack.c.bf16 %v284, %v284
    %v289 = vpack.c.bf16 %v285, %v285
    %v290 = vpack.c.bf16 %v286, %v286
    %291 = vrot.lane.b32.xlu0 %v196, 1
    %v292 = vpop.permute.xlu0 %291
    %293 = vrot.lane.b32.xlu0 %v200, 1
    %v294 = vpop.permute.xlu0 %293
    %295 = vrot.lane.b32.xlu0 %v197, 1
    %v296 = vpop.permute.xlu0 %295
    %297 = vrot.lane.b32.xlu0 %v201, 1
    %v298 = vpop.permute.xlu0 %297
    %vm299 = vcmp.lt.s32.totalorder %v64, 1
    %v300 = vsel %vm299, %v296, %v298
    %v301 = vsel %vm299, %v294, %v296
    %v302 = vsel %vm299, %v292, %v294
    %v303 = vsel %vm299, %v298, %v292
    %v304 = vsel %vm172, 1, 0
    %v305 = vsel %vm173, 1, 0
    %v306 = vsel %vm174, 1, 0
    %v307 = vsel %vm175, 1, 0
    %vm308 = vcmp.eq.s32.totalorder %v304, 1
    %vm309 = vcmp.eq.s32.totalorder %v305, 1
    %vm310 = vcmp.eq.s32.totalorder %v306, 1
    %vm311 = vcmp.eq.s32.totalorder %v307, 1
    %v312 = vsel %vm308, %v303, 0.0
    %v313 = vsel %vm309, %v302, 0.0
    %v314 = vsel %vm310, %v301, 0.0
    %v315 = vsel %vm311, %v300, 0.0
    %v316 = vpack.c.bf16 %v312, %v312
    %v317 = vpack.c.bf16 %v313, %v313
    %v318 = vpack.c.bf16 %v314, %v314
    %v319 = vpack.c.bf16 %v315, %v315
    %v320 = vpack.c.bf16 %v196, %v196
    %v321 = vpack.c.bf16 %v200, %v200
    %v322 = vpack.c.bf16 %v197, %v197
    %v323 = vpack.c.bf16 %v201, %v201
    %324 = vrot.lane.b32.xlu0 %v196, 127
    %v325 = vpop.permute.xlu0 %324
    %326 = vrot.lane.b32.xlu0 %v200, 127
    %v327 = vpop.permute.xlu0 %326
    %328 = vrot.lane.b32.xlu0 %v197, 127
    %v329 = vpop.permute.xlu0 %328
    %330 = vrot.lane.b32.xlu0 %v201, 127
    %v331 = vpop.permute.xlu0 %330
    %vm332 = vcmp.lt.s32.totalorder %v64, 127
    %v333 = vsel %vm332, %v329, %v331
    %v334 = vsel %vm332, %v327, %v329
    %v335 = vsel %vm332, %v325, %v327
    %v336 = vsel %vm332, %v331, %v325
    %v337 = vsel %vm176, 1, 0
    %v338 = vsel %vm177, 1, 0
    %v339 = vsel %vm178, 1, 0
    %v340 = vsel %vm179, 1, 0
    %vm341 = vcmp.eq.s32.totalorder %v337, 1
    %vm342 = vcmp.eq.s32.totalorder %v338, 1
    %vm343 = vcmp.eq.s32.totalorder %v339, 1
    %vm344 = vcmp.eq.s32.totalorder %v340, 1
    %v345 = vsel %vm341, %v335, 0.0
    %v346 = vsel %vm342, %v334, 0.0
    %v347 = vsel %vm343, %v333, 0.0
    %v348 = vsel %vm344, %v336, 0.0
    %v349 = vpack.c.bf16 %v345, %v345
    %v350 = vpack.c.bf16 %v346, %v346
    %v351 = vpack.c.bf16 %v347, %v347
    %v352 = vpack.c.bf16 %v348, %v348
    %353 = vrot.lane.b32.xlu0 %v196, 113
    %v354 = vpop.permute.xlu0 %353
    %355 = vrot.lane.b32.xlu0 %v200, 113
    %v356 = vpop.permute.xlu0 %355
    %357 = vrot.lane.b32.xlu0 %v197, 113
    %v358 = vpop.permute.xlu0 %357
    %359 = vrot.lane.b32.xlu0 %v201, 113
    %v360 = vpop.permute.xlu0 %359
    %vm361 = vcmp.lt.s32.totalorder %v64, 113
    %v362 = vsel %vm361, %v358, %v360
    %v363 = vsel %vm361, %v356, %v358
    %v364 = vsel %vm361, %v354, %v356
    %v365 = vsel %vm361, %v360, %v354
    %v366 = vsel %vm188, 1, 0
    %v367 = vsel %vm189, 1, 0
    %v368 = vsel %vm190, 1, 0
    %v369 = vsel %vm191, 1, 0
    %vm370 = vcmp.eq.s32.totalorder %v366, 1
    %vm371 = vcmp.eq.s32.totalorder %v367, 1
    %vm372 = vcmp.eq.s32.totalorder %v368, 1
    %vm373 = vcmp.eq.s32.totalorder %v369, 1
    %v374 = vsel %vm370, %v364, 0.0
    %v375 = vsel %vm371, %v363, 0.0
    %v376 = vsel %vm372, %v362, 0.0
    %v377 = vsel %vm373, %v365, 0.0
    %v378 = vpack.c.bf16 %v374, %v374
    %v379 = vpack.c.bf16 %v375, %v375
    %v380 = vpack.c.bf16 %v376, %v376
    %v381 = vpack.c.bf16 %v377, %v377
    %382 = vrot.lane.b32.xlu0 %v196, 112
    %v383 = vpop.permute.xlu0 %382
    %384 = vrot.lane.b32.xlu0 %v200, 112
    %v385 = vpop.permute.xlu0 %384
    %386 = vrot.lane.b32.xlu0 %v197, 112
    %v387 = vpop.permute.xlu0 %386
    %388 = vrot.lane.b32.xlu0 %v201, 112
    %v389 = vpop.permute.xlu0 %388
    %vm390 = vcmp.lt.s32.totalorder %v64, 112
    %v391 = vsel %vm390, %v387, %v389
    %v392 = vsel %vm390, %v385, %v387
    %v393 = vsel %vm390, %v383, %v385
    %v394 = vsel %vm390, %v389, %v383
    %v395 = vsel %vm168, 1, 0
    %v396 = vsel %vm169, 1, 0
    %v397 = vsel %vm170, 1, 0
    %v398 = vsel %vm171, 1, 0
    %vm399 = vcmp.eq.s32.totalorder %v395, 1
    %vm400 = vcmp.eq.s32.totalorder %v396, 1
    %vm401 = vcmp.eq.s32.totalorder %v397, 1
    %vm402 = vcmp.eq.s32.totalorder %v398, 1
    %v403 = vsel %vm399, %v393, 0.0
    %v404 = vsel %vm400, %v392, 0.0
    %v405 = vsel %vm401, %v391, 0.0
    %v406 = vsel %vm402, %v394, 0.0
    %v407 = vpack.c.bf16 %v403, %v403
    %v408 = vpack.c.bf16 %v404, %v404
    %v409 = vpack.c.bf16 %v405, %v405
    %v410 = vpack.c.bf16 %v406, %v406
    %411 = vrot.lane.b32.xlu0 %v196, 111
    %v412 = vpop.permute.xlu0 %411
    %413 = vrot.lane.b32.xlu0 %v200, 111
    %v414 = vpop.permute.xlu0 %413
    %415 = vrot.lane.b32.xlu0 %v197, 111
    %v416 = vpop.permute.xlu0 %415
    %417 = vrot.lane.b32.xlu0 %v201, 111
    %v418 = vpop.permute.xlu0 %417
    %vm419 = vcmp.lt.s32.totalorder %v64, 111
    %v420 = vsel %vm419, %v416, %v418
    %v421 = vsel %vm419, %v414, %v416
    %v422 = vsel %vm419, %v412, %v414
    %v423 = vsel %vm419, %v418, %v412
    %v424 = vsel %vm192, 1, 0
    %v425 = vsel %vm193, 1, 0
    %v426 = vsel %vm194, 1, 0
    %v427 = vsel %vm195, 1, 0
    %vm428 = vcmp.eq.s32.totalorder %v424, 1
    %vm429 = vcmp.eq.s32.totalorder %v425, 1
    %vm430 = vcmp.eq.s32.totalorder %v426, 1
    %vm431 = vcmp.eq.s32.totalorder %v427, 1
    %v432 = vsel %vm428, %v422, 0.0
    %v433 = vsel %vm429, %v421, 0.0
    %v434 = vsel %vm430, %v420, 0.0
    %v435 = vsel %vm431, %v423, 0.0
    %v436 = vpack.c.bf16 %v432, %v432
    %v437 = vpack.c.bf16 %v433, %v433
    %v438 = vpack.c.bf16 %v434, %v434
    %v439 = vpack.c.bf16 %v435, %v435
    %v441 = vshrl.u32 %v258, 16
    %v443 = vrot.slane %v441, 6
    %v444 = vshll.u32 %v258, 16
    %v446 = vrot.slane %v444, 7
    %v447 = vor.u32 %v443, %v446
    %v449 = vshrl.u32 %v259, 16
    %v451 = vrot.slane %v449, 6
    %v452 = vshll.u32 %v259, 16
    %v454 = vrot.slane %v452, 7
    %v455 = vor.u32 %v451, %v454
    %v457 = vshrl.u32 %v260, 16
    %v459 = vrot.slane %v457, 6
    %v460 = vshll.u32 %v260, 16
    %v462 = vrot.slane %v460, 7
    %v463 = vor.u32 %v459, %v462
    %v465 = vshrl.u32 %v261, 16
    %v467 = vrot.slane %v465, 6
    %v468 = vshll.u32 %v261, 16
    %v470 = vrot.slane %v468, 7
    %v471 = vor.u32 %v467, %v470
    %v480 = vrot.slane %v287, 5
    %v481 = vrot.slane %v288, 5
    %v482 = vrot.slane %v289, 5
    %v483 = vrot.slane %v290, 5
    %v485 = vshrl.u32 %v316, 16
    %v487 = vrot.slane %v485, 3
    %v488 = vshll.u32 %v316, 16
    %v490 = vrot.slane %v488, 4
    %v491 = vor.u32 %v487, %v490
    %v493 = vshrl.u32 %v317, 16
    %v495 = vrot.slane %v493, 3
    %v496 = vshll.u32 %v317, 16
    %v498 = vrot.slane %v496, 4
    %v499 = vor.u32 %v495, %v498
    %v501 = vshrl.u32 %v318, 16
    %v503 = vrot.slane %v501, 3
    %v504 = vshll.u32 %v318, 16
    %v506 = vrot.slane %v504, 4
    %v507 = vor.u32 %v503, %v506
    %v509 = vshrl.u32 %v319, 16
    %v511 = vrot.slane %v509, 3
    %v512 = vshll.u32 %v319, 16
    %v514 = vrot.slane %v512, 4
    %v515 = vor.u32 %v511, %v514
    %v524 = vrot.slane %v320, 2
    %v525 = vrot.slane %v321, 2
    %v526 = vrot.slane %v322, 2
    %v527 = vrot.slane %v323, 2
    %v529 = vshll.u32 %v349, 16
    %v531 = vrot.slane %v529, 1
    %v533 = vshll.u32 %v350, 16
    %v535 = vrot.slane %v533, 1
    %v537 = vshll.u32 %v351, 16
    %v539 = vrot.slane %v537, 1
    %v541 = vshll.u32 %v352, 16
    %v543 = vrot.slane %v541, 1
    %v544 = vshrl.u32 %v349, 16
    %v546 = vor.u32 %v544, %v531
    %v547 = vshrl.u32 %v350, 16
    %v549 = vor.u32 %v547, %v535
    %v550 = vshrl.u32 %v351, 16
    %v552 = vor.u32 %v550, %v539
    %v553 = vshrl.u32 %v352, 16
    %v555 = vor.u32 %v553, %v543
    %v564 = vrot.slane %v378, 7
    %v565 = vrot.slane %v379, 7
    %v566 = vrot.slane %v380, 7
    %v567 = vrot.slane %v381, 7
    %v569 = vshrl.u32 %v407, 16
    %v571 = vrot.slane %v569, 5
    %v572 = vshll.u32 %v407, 16
    %v574 = vrot.slane %v572, 6
    %v575 = vor.u32 %v571, %v574
    %v577 = vshrl.u32 %v408, 16
    %v579 = vrot.slane %v577, 5
    %v580 = vshll.u32 %v408, 16
    %v582 = vrot.slane %v580, 6
    %v583 = vor.u32 %v579, %v582
    %v585 = vshrl.u32 %v409, 16
    %v587 = vrot.slane %v585, 5
    %v588 = vshll.u32 %v409, 16
    %v590 = vrot.slane %v588, 6
    %v591 = vor.u32 %v587, %v590
    %v593 = vshrl.u32 %v410, 16
    %v595 = vrot.slane %v593, 5
    %v596 = vshll.u32 %v410, 16
    %v598 = vrot.slane %v596, 6
    %v599 = vor.u32 %v595, %v598
    %v608 = vrot.slane %v436, 4
    %v609 = vrot.slane %v437, 4
    %v610 = vrot.slane %v438, 4
    %v611 = vrot.slane %v439, 4
    %vm612 = vcmask 1041408
    %vm613 = vsmask.f32 1280
    %vm614 = vmand %vm612, %vm613
    %v615 = vsel %vm614, %v229, %v447
    %v616 = vsel %vm614, %v230, %v455
    %v617 = vsel %vm614, %v231, %v463
    %v618 = vsel %vm614, %v232, %v471
    %vm619 = vcmask 1042432
    %v622 = vsel %vm619, %v615, %v480
    %v626 = vsel %vm619, %v616, %v481
    %v630 = vsel %vm619, %v617, %v482
    %v634 = vsel %vm619, %v618, %v483
    %vm636 = vcmask 1044480
    %vm637 = vsmask.f32 4352
    %vm638 = vmand %vm636, %vm637
    %v639 = vsel %vm638, %v622, %v491
    %v640 = vsel %vm638, %v626, %v499
    %v641 = vsel %vm638, %v630, %v507
    %v642 = vsel %vm638, %v634, %v515
    %vm643 = vcmask 1045504
    %v646 = vsel %vm643, %v639, %v524
    %v650 = vsel %vm643, %v640, %v525
    %v654 = vsel %vm643, %v641, %v526
    %v658 = vsel %vm643, %v642, %v527
    %vm660 = vcmask 1047552
    %vm661 = vsmask.f32 7424
    %vm662 = vmand %vm660, %vm661
    %v663 = vsel %vm662, %v646, %v531
    %v664 = vsel %vm662, %v650, %v535
    %v665 = vsel %vm662, %v654, %v539
    %v666 = vsel %vm662, %v658, %v543
    %vm667 = vcmask 1040384
    %v670 = vsel %vm667, %v546, %v564
    %v674 = vsel %vm667, %v549, %v565
    %v678 = vsel %vm667, %v552, %v566
    %v682 = vsel %vm667, %v555, %v567
    %vm684 = vcmask 1042432
    %vm685 = vsmask.f32 2304
    %vm686 = vmand %vm684, %vm685
    %v687 = vsel %vm686, %v670, %v575
    %v688 = vsel %vm686, %v674, %v583
    %v689 = vsel %vm686, %v678, %v591
    %v690 = vsel %vm686, %v682, %v599
    %vm691 = vcmask 1043456
    %v694 = vsel %vm691, %v687, %v608
    %v697 = vsel %vm691, %v688, %v609
    %v700 = vsel %vm691, %v689, %v610
    %v703 = vsel %vm691, %v690, %v611
    %v704 = vld [vmem:[%s1] sm:$0xf]
    %v705 = vld [vmem:[%s1 + $0x4] sm:$0xf]
    %v708 = vunpack.c.l.b16 %v704
    %v709 = vunpack.c.l.b16 %v705
    %v710 = vpack.c.b16 %v709, %v708
    %vm711 = vcmask 220160
    %v713 = vsel %vm711, %v710, 0
    %vm715 = vcmask 1044480
    %v716 = vsel %vm715, 4294967295, 65535
    %v717 = vsel %vm643, %v716, 0
    %v718 = vand.u32 %v694, %v717
    %v720 = vand.u32 %v697, %v717
    %v722 = vand.u32 %v700, %v717
    %v724 = vand.u32 %v703, %v717
    %726 = vmatprep.subr.bf16.mxu0 %v664
    %727 = vmatpush1.bf16.msra.mxu0 %v663
    %728 = vmatprep.subr.bf16.mxu0 %v720
    %729 = vmatpush1.bf16.msra.mxu0 %v718
    %730 = vmatprep.subr.bf16.mxu0 0
    %731 = vmatpush1.bf16.msra.mxu0 0
    %732 = vmatprep.subr.bf16.mxu0 0
    %733 = vmatpush1.bf16.msra.mxu0 0
    %734 = vmatprep.subr.bf16.mxu0 0
    %735 = vmatpush1.bf16.msra.mxu0 0
    %736 = vmatprep.subr.bf16.mxu0 0
    %737 = vmatpush1.bf16.msra.mxu0 0
    %738 = vmatprep.subr.bf16.mxu0 0
    %739 = vmatpush1.bf16.msra.mxu0 0
    %740 = vmatprep.subr.bf16.mxu0 0
    %741 = vmatpush1.bf16.msra.mxu0 0
    %742 = vmatprep.subr.bf16.mxu0 0
    %743 = vmatpush1.bf16.msra.mxu0 0
    %744 = vmatprep.subr.bf16.mxu0 0
    %745 = vmatpush1.bf16.msra.mxu0 0
    %746 = vmatprep.subr.bf16.mxu0 0
    %747 = vmatpush1.bf16.msra.mxu0 0
    %748 = vmatprep.subr.bf16.mxu0 0
    %749 = vmatpush1.bf16.msra.mxu0 0
    %750 = vmatprep.subr.bf16.mxu0 0
    %751 = vmatpush1.bf16.msra.mxu0 0
    %752 = vmatprep.subr.bf16.mxu0 0
    %753 = vmatpush1.bf16.msra.mxu0 0
    %754 = vmatprep.subr.bf16.mxu0 0
    %755 = vmatpush1.bf16.msra.mxu0 0
    %756 = vmatprep.subr.bf16.mxu0 0
    %757 = vmatpush1.bf16.msra.mxu0 0
    %758 = vmatprep.mubr.bf16.mxu0 0
    %759 = vmatmul.mubr.bf16.gmra.mrb[0].mxu0 %v713
    %v760 = vpop.f32.mrb[0].mxu0
    %v761 = vadd.f32 0.0, %v760
    %v762 = vpop.f32.mrb[0].mxu0
    %v763 = vadd.f32 0.0, %v762
    %v764 = vpop.f32.mrb[0].mxu0
    %v765 = vadd.f32 0.0, %v764
    %v766 = vpop.f32.mrb[0].mxu0
    %v767 = vadd.f32 0.0, %v766
    %768 = vdwg.mxu0
    %769 = vmatprep.subr.bf16.mxu0 %v666
    %770 = vmatpush1.bf16.msra.mxu0 %v665
    %771 = vmatprep.subr.bf16.mxu0 %v724
    %772 = vmatpush1.bf16.msra.mxu0 %v722
    %773 = vmatprep.subr.bf16.mxu0 0
    %774 = vmatpush1.bf16.msra.mxu0 0
    %775 = vmatprep.subr.bf16.mxu0 0
    %776 = vmatpush1.bf16.msra.mxu0 0
    %777 = vmatprep.subr.bf16.mxu0 0
    %778 = vmatpush1.bf16.msra.mxu0 0
    %779 = vmatprep.subr.bf16.mxu0 0
    %780 = vmatpush1.bf16.msra.mxu0 0
    %781 = vmatprep.subr.bf16.mxu0 0
    %782 = vmatpush1.bf16.msra.mxu0 0
    %783 = vmatprep.subr.bf16.mxu0 0
    %784 = vmatpush1.bf16.msra.mxu0 0
    %785 = vmatprep.subr.bf16.mxu0 0
    %786 = vmatpush1.bf16.msra.mxu0 0
    %787 = vmatprep.subr.bf16.mxu0 0
    %788 = vmatpush1.bf16.msra.mxu0 0
    %789 = vmatprep.subr.bf16.mxu0 0
    %790 = vmatpush1.bf16.msra.mxu0 0
    %791 = vmatprep.subr.bf16.mxu0 0
    %792 = vmatpush1.bf16.msra.mxu0 0
    %793 = vmatprep.subr.bf16.mxu0 0
    %794 = vmatpush1.bf16.msra.mxu0 0
    %795 = vmatprep.subr.bf16.mxu0 0
    %796 = vmatpush1.bf16.msra.mxu0 0
    %797 = vmatprep.subr.bf16.mxu0 0
    %798 = vmatpush1.bf16.msra.mxu0 0
    %799 = vmatprep.subr.bf16.mxu0 0
    %800 = vmatpush1.bf16.msra.mxu0 0
    %801 = vmatprep.mubr.bf16.mxu0 0
    %802 = vmatmul.mubr.bf16.gmra.mrb[0].mxu0 %v713
    %v803 = vpop.f32.mrb[0].mxu0
    %v804 = vadd.f32 0.0, %v803
    %v805 = vpop.f32.mrb[0].mxu0
    %v806 = vadd.f32 0.0, %v805
    %v807 = vpop.f32.mrb[0].mxu0
    %v808 = vadd.f32 0.0, %v807
    %v809 = vpop.f32.mrb[0].mxu0
    %v810 = vadd.f32 0.0, %v809
    %811 = vdwg.mxu0
    %v812 = vadd.f32 %v761, %v763
    %v813 = vadd.f32 %v812, %v804
    %v814 = vadd.f32 %v813, %v806
    %815 = vadd.xlane.f32.xlu0 %v814
    %v816 = vpop.xlane.xlu0 %815
    %v817 = vadd.f32 %v765, %v767
    %v818 = vadd.f32 %v817, %v808
    %v819 = vadd.f32 %v818, %v810
    %820 = vadd.xlane.f32.xlu0 %v819
    %v821 = vpop.xlane.xlu0 %820
    %v822 = vmul.f32 %v816, 0.001953125
    %v823 = vmul.f32 %v821, 0.001953125
    %v824 = vsub.f32 %v761, %v822
    %v825 = vsub.f32 %v763, %v822
    %v826 = vsub.f32 %v804, %v822
    %v827 = vsub.f32 %v806, %v822
    %v828 = vsub.f32 %v765, %v823
    %v829 = vsub.f32 %v767, %v823
    %v830 = vsub.f32 %v808, %v823
    %v831 = vsub.f32 %v810, %v823
    %v832 = vmul.f32 %v824, %v824
    %v833 = vmul.f32 %v825, %v825
    %v834 = vmul.f32 %v826, %v826
    %v835 = vmul.f32 %v827, %v827
    %v836 = vmul.f32 %v828, %v828
    %v837 = vmul.f32 %v829, %v829
    %v838 = vmul.f32 %v830, %v830
    %v839 = vmul.f32 %v831, %v831
    %v840 = vadd.f32 %v832, %v833
    %v841 = vadd.f32 %v840, %v834
    %v842 = vadd.f32 %v841, %v835
    %843 = vadd.xlane.f32.xlu0 %v842
    %v844 = vpop.xlane.xlu0 %843
    %v845 = vadd.f32 %v836, %v837
    %v846 = vadd.f32 %v845, %v838
    %v847 = vadd.f32 %v846, %v839
    %848 = vadd.xlane.f32.xlu0 %v847
    %v849 = vpop.xlane.xlu0 %848
    %v850 = vmul.f32 %v844, 0.001953125
    %v851 = vmul.f32 %v849, 0.001953125
    %v852 = vld [vmem:[%s2] sm:$0xff]
    %v853 = vld [vmem:[%s2 + $0x8] sm:$0xff]
    %v854 = vadd.f32 %v850, 1e-05
    %v855 = vadd.f32 %v851, 1e-05
    %v856 = vrsqrt.pop %v854
    %v857 = vrsqrt.pop %v855
    %v858 = vmul.f32 %v852, %v856
    %v859 = vmul.f32 %v853, %v857
    %861 = vset.pattern.permute.xlu0 0
    %862 = vperm.xlu0 %861, %v858
    %v863 = vpop.permute.xlu0 %862
    %866 = vset.pattern.permute.xlu0 0
    %867 = vperm.xlu0 %866, %v859
    %v868 = vpop.permute.xlu0 %867
    %v870 = vmul.f32 %v824, %v863
    %v871 = vmul.f32 %v825, %v863
    %v872 = vmul.f32 %v826, %v863
    %v873 = vmul.f32 %v827, %v863
    %v874 = vmul.f32 %v828, %v868
    %v875 = vmul.f32 %v829, %v868
    %v876 = vmul.f32 %v830, %v868
    %v877 = vmul.f32 %v831, %v868
    %v878 = vld [vmem:[%s3] sm:$0xff]
    %v879 = vld [vmem:[%s3 + $0x8] sm:$0xff]
    %881 = vset.pattern.permute.xlu0 0
    %882 = vperm.xlu0 %881, %v878
    %v883 = vpop.permute.xlu0 %882
    %886 = vset.pattern.permute.xlu0 0
    %887 = vperm.xlu0 %886, %v879
    %v888 = vpop.permute.xlu0 %887
    %v890 = vadd.f32 %v870, %v883
    %v891 = vadd.f32 %v871, %v883
    %v892 = vadd.f32 %v872, %v883
    %v893 = vadd.f32 %v873, %v883
    %v894 = vadd.f32 %v874, %v888
    %v895 = vadd.f32 %v875, %v888
    %v896 = vadd.f32 %v876, %v888
    %v897 = vadd.f32 %v877, %v888
    %v898 = vmax.f32 %v890, 0.0
    %v899 = vmax.f32 %v891, 0.0
    %v900 = vmax.f32 %v892, 0.0
    %v901 = vmax.f32 %v893, 0.0
    %v902 = vmax.f32 %v894, 0.0
    %v903 = vmax.f32 %v895, 0.0
    %v904 = vmax.f32 %v896, 0.0
    %v905 = vmax.f32 %v897, 0.0
    %906 = vst [vmem:[%s18] sm:$0xff] %v898
    %907 = vst [vmem:[%s18 + $0x8] sm:$0xff] %v899
    %908 = vst [vmem:[%s18 + $0x10] sm:$0xff] %v900
    %909 = vst [vmem:[%s18 + $0x18] sm:$0xff] %v901
    %910 = vst [vmem:[%s18 + $0x20] sm:$0xff] %v902
    %911 = vst [vmem:[%s18 + $0x28] sm:$0xff] %v903
    %912 = vst [vmem:[%s18 + $0x30] sm:$0xff] %v904
    %913 = vst [vmem:[%s18 + $0x38] sm:$0xff] %v905
    %914 = vrot.lane.b32.xlu0 %v898, 17
    %v915 = vpop.permute.xlu0 %914
    %916 = vrot.lane.b32.xlu0 %v902, 17
    %v917 = vpop.permute.xlu0 %916
    %918 = vrot.lane.b32.xlu0 %v899, 17
    %v919 = vpop.permute.xlu0 %918
    %920 = vrot.lane.b32.xlu0 %v903, 17
    %v921 = vpop.permute.xlu0 %920
    %922 = vrot.lane.b32.xlu0 %v900, 17
    %v923 = vpop.permute.xlu0 %922
    %924 = vrot.lane.b32.xlu0 %v904, 17
    %v925 = vpop.permute.xlu0 %924
    %926 = vrot.lane.b32.xlu0 %v901, 17
    %v927 = vpop.permute.xlu0 %926
    %928 = vrot.lane.b32.xlu0 %v905, 17
    %v929 = vpop.permute.xlu0 %928
    %v930 = vsel %vm212, %v923, %v927
    %v931 = vsel %vm212, %v925, %v929
    %v932 = vsel %vm212, %v919, %v923
    %v933 = vsel %vm212, %v921, %v925
    %v934 = vsel %vm212, %v915, %v919
    %v935 = vsel %vm212, %v917, %v921
    %v936 = vsel %vm212, %v927, %v915
    %v937 = vsel %vm212, %v929, %v917
    %v938 = vsel %vm221, %v936, 0.0
    %v939 = vsel %vm222, %v934, 0.0
    %v940 = vsel %vm223, %v932, 0.0
    %v941 = vsel %vm224, %v930, 0.0
    %v942 = vsel %vm221, %v937, 0.0
    %v943 = vsel %vm222, %v935, 0.0
    %v944 = vsel %vm223, %v933, 0.0
    %v945 = vsel %vm224, %v931, 0.0
    %v946 = vpack.c.bf16 %v942, %v938
    %v947 = vpack.c.bf16 %v943, %v939
    %v948 = vpack.c.bf16 %v944, %v940
    %v949 = vpack.c.bf16 %v945, %v941
    %950 = vrot.lane.b32.xlu0 %v898, 16
    %v951 = vpop.permute.xlu0 %950
    %952 = vrot.lane.b32.xlu0 %v902, 16
    %v953 = vpop.permute.xlu0 %952
    %954 = vrot.lane.b32.xlu0 %v899, 16
    %v955 = vpop.permute.xlu0 %954
    %956 = vrot.lane.b32.xlu0 %v903, 16
    %v957 = vpop.permute.xlu0 %956
    %958 = vrot.lane.b32.xlu0 %v900, 16
    %v959 = vpop.permute.xlu0 %958
    %960 = vrot.lane.b32.xlu0 %v904, 16
    %v961 = vpop.permute.xlu0 %960
    %962 = vrot.lane.b32.xlu0 %v901, 16
    %v963 = vpop.permute.xlu0 %962
    %964 = vrot.lane.b32.xlu0 %v905, 16
    %v965 = vpop.permute.xlu0 %964
    %v966 = vsel %vm241, %v959, %v963
    %v967 = vsel %vm241, %v961, %v965
    %v968 = vsel %vm241, %v955, %v959
    %v969 = vsel %vm241, %v957, %v961
    %v970 = vsel %vm241, %v951, %v955
    %v971 = vsel %vm241, %v953, %v957
    %v972 = vsel %vm241, %v963, %v951
    %v973 = vsel %vm241, %v965, %v953
    %v974 = vsel %vm250, %v972, 0.0
    %v975 = vsel %vm251, %v970, 0.0
    %v976 = vsel %vm252, %v968, 0.0
    %v977 = vsel %vm253, %v966, 0.0
    %v978 = vsel %vm250, %v973, 0.0
    %v979 = vsel %vm251, %v971, 0.0
    %v980 = vsel %vm252, %v969, 0.0
    %v981 = vsel %vm253, %v967, 0.0
    %v982 = vpack.c.bf16 %v978, %v974
    %v983 = vpack.c.bf16 %v979, %v975
    %v984 = vpack.c.bf16 %v980, %v976
    %v985 = vpack.c.bf16 %v981, %v977
    %986 = vrot.lane.b32.xlu0 %v898, 15
    %v987 = vpop.permute.xlu0 %986
    %988 = vrot.lane.b32.xlu0 %v902, 15
    %v989 = vpop.permute.xlu0 %988
    %990 = vrot.lane.b32.xlu0 %v899, 15
    %v991 = vpop.permute.xlu0 %990
    %992 = vrot.lane.b32.xlu0 %v903, 15
    %v993 = vpop.permute.xlu0 %992
    %994 = vrot.lane.b32.xlu0 %v900, 15
    %v995 = vpop.permute.xlu0 %994
    %996 = vrot.lane.b32.xlu0 %v904, 15
    %v997 = vpop.permute.xlu0 %996
    %998 = vrot.lane.b32.xlu0 %v901, 15
    %v999 = vpop.permute.xlu0 %998
    %1000 = vrot.lane.b32.xlu0 %v905, 15
    %v1001 = vpop.permute.xlu0 %1000
    %v1002 = vsel %vm270, %v995, %v999
    %v1003 = vsel %vm270, %v997, %v1001
    %v1004 = vsel %vm270, %v991, %v995
    %v1005 = vsel %vm270, %v993, %v997
    %v1006 = vsel %vm270, %v987, %v991
    %v1007 = vsel %vm270, %v989, %v993
    %v1008 = vsel %vm270, %v999, %v987
    %v1009 = vsel %vm270, %v1001, %v989
    %v1010 = vsel %vm279, %v1008, 0.0
    %v1011 = vsel %vm280, %v1006, 0.0
    %v1012 = vsel %vm281, %v1004, 0.0
    %v1013 = vsel %vm282, %v1002, 0.0
    %v1014 = vsel %vm279, %v1009, 0.0
    %v1015 = vsel %vm280, %v1007, 0.0
    %v1016 = vsel %vm281, %v1005, 0.0
    %v1017 = vsel %vm282, %v1003, 0.0
    %v1018 = vpack.c.bf16 %v1014, %v1010
    %v1019 = vpack.c.bf16 %v1015, %v1011
    %v1020 = vpack.c.bf16 %v1016, %v1012
    %v1021 = vpack.c.bf16 %v1017, %v1013
    %1022 = vrot.lane.b32.xlu0 %v898, 1
    %v1023 = vpop.permute.xlu0 %1022
    %1024 = vrot.lane.b32.xlu0 %v902, 1
    %v1025 = vpop.permute.xlu0 %1024
    %1026 = vrot.lane.b32.xlu0 %v899, 1
    %v1027 = vpop.permute.xlu0 %1026
    %1028 = vrot.lane.b32.xlu0 %v903, 1
    %v1029 = vpop.permute.xlu0 %1028
    %1030 = vrot.lane.b32.xlu0 %v900, 1
    %v1031 = vpop.permute.xlu0 %1030
    %1032 = vrot.lane.b32.xlu0 %v904, 1
    %v1033 = vpop.permute.xlu0 %1032
    %1034 = vrot.lane.b32.xlu0 %v901, 1
    %v1035 = vpop.permute.xlu0 %1034
    %1036 = vrot.lane.b32.xlu0 %v905, 1
    %v1037 = vpop.permute.xlu0 %1036
    %v1038 = vsel %vm299, %v1031, %v1035
    %v1039 = vsel %vm299, %v1033, %v1037
    %v1040 = vsel %vm299, %v1027, %v1031
    %v1041 = vsel %vm299, %v1029, %v1033
    %v1042 = vsel %vm299, %v1023, %v1027
    %v1043 = vsel %vm299, %v1025, %v1029
    %v1044 = vsel %vm299, %v1035, %v1023
    %v1045 = vsel %vm299, %v1037, %v1025
    %v1046 = vsel %vm308, %v1044, 0.0
    %v1047 = vsel %vm309, %v1042, 0.0
    %v1048 = vsel %vm310, %v1040, 0.0
    %v1049 = vsel %vm311, %v1038, 0.0
    %v1050 = vsel %vm308, %v1045, 0.0
    %v1051 = vsel %vm309, %v1043, 0.0
    %v1052 = vsel %vm310, %v1041, 0.0
    %v1053 = vsel %vm311, %v1039, 0.0
    %v1054 = vpack.c.bf16 %v1050, %v1046
    %v1055 = vpack.c.bf16 %v1051, %v1047
    %v1056 = vpack.c.bf16 %v1052, %v1048
    %v1057 = vpack.c.bf16 %v1053, %v1049
    %v1058 = vpack.c.bf16 %v902, %v898
    %v1059 = vpack.c.bf16 %v903, %v899
    %v1060 = vpack.c.bf16 %v904, %v900
    %v1061 = vpack.c.bf16 %v905, %v901
    %1062 = vrot.lane.b32.xlu0 %v898, 127
    %v1063 = vpop.permute.xlu0 %1062
    %1064 = vrot.lane.b32.xlu0 %v902, 127
    %v1065 = vpop.permute.xlu0 %1064
    %1066 = vrot.lane.b32.xlu0 %v899, 127
    %v1067 = vpop.permute.xlu0 %1066
    %1068 = vrot.lane.b32.xlu0 %v903, 127
    %v1069 = vpop.permute.xlu0 %1068
    %1070 = vrot.lane.b32.xlu0 %v900, 127
    %v1071 = vpop.permute.xlu0 %1070
    %1072 = vrot.lane.b32.xlu0 %v904, 127
    %v1073 = vpop.permute.xlu0 %1072
    %1074 = vrot.lane.b32.xlu0 %v901, 127
    %v1075 = vpop.permute.xlu0 %1074
    %1076 = vrot.lane.b32.xlu0 %v905, 127
    %v1077 = vpop.permute.xlu0 %1076
    %v1078 = vsel %vm332, %v1071, %v1075
    %v1079 = vsel %vm332, %v1073, %v1077
    %v1080 = vsel %vm332, %v1067, %v1071
    %v1081 = vsel %vm332, %v1069, %v1073
    %v1082 = vsel %vm332, %v1063, %v1067
    %v1083 = vsel %vm332, %v1065, %v1069
    %v1084 = vsel %vm332, %v1075, %v1063
    %v1085 = vsel %vm332, %v1077, %v1065
    %v1086 = vsel %vm341, %v1082, 0.0
    %v1087 = vsel %vm342, %v1080, 0.0
    %v1088 = vsel %vm343, %v1078, 0.0
    %v1089 = vsel %vm344, %v1084, 0.0
    %v1090 = vsel %vm341, %v1083, 0.0
    %v1091 = vsel %vm342, %v1081, 0.0
    %v1092 = vsel %vm343, %v1079, 0.0
    %v1093 = vsel %vm344, %v1085, 0.0
    %v1094 = vpack.c.bf16 %v1090, %v1086
    %v1095 = vpack.c.bf16 %v1091, %v1087
    %v1096 = vpack.c.bf16 %v1092, %v1088
    %v1097 = vpack.c.bf16 %v1093, %v1089
    %1098 = vrot.lane.b32.xlu0 %v898, 113
    %v1099 = vpop.permute.xlu0 %1098
    %1100 = vrot.lane.b32.xlu0 %v902, 113
    %v1101 = vpop.permute.xlu0 %1100
    %1102 = vrot.lane.b32.xlu0 %v899, 113
    %v1103 = vpop.permute.xlu0 %1102
    %1104 = vrot.lane.b32.xlu0 %v903, 113
    %v1105 = vpop.permute.xlu0 %1104
    %1106 = vrot.lane.b32.xlu0 %v900, 113
    %v1107 = vpop.permute.xlu0 %1106
    %1108 = vrot.lane.b32.xlu0 %v904, 113
    %v1109 = vpop.permute.xlu0 %1108
    %1110 = vrot.lane.b32.xlu0 %v901, 113
    %v1111 = vpop.permute.xlu0 %1110
    %1112 = vrot.lane.b32.xlu0 %v905, 113
    %v1113 = vpop.permute.xlu0 %1112
    %v1114 = vsel %vm361, %v1107, %v1111
    %v1115 = vsel %vm361, %v1109, %v1113
    %v1116 = vsel %vm361, %v1103, %v1107
    %v1117 = vsel %vm361, %v1105, %v1109
    %v1118 = vsel %vm361, %v1099, %v1103
    %v1119 = vsel %vm361, %v1101, %v1105
    %v1120 = vsel %vm361, %v1111, %v1099
    %v1121 = vsel %vm361, %v1113, %v1101
    %v1122 = vsel %vm370, %v1118, 0.0
    %v1123 = vsel %vm371, %v1116, 0.0
    %v1124 = vsel %vm372, %v1114, 0.0
    %v1125 = vsel %vm373, %v1120, 0.0
    %v1126 = vsel %vm370, %v1119, 0.0
    %v1127 = vsel %vm371, %v1117, 0.0
    %v1128 = vsel %vm372, %v1115, 0.0
    %v1129 = vsel %vm373, %v1121, 0.0
    %v1130 = vpack.c.bf16 %v1126, %v1122
    %v1131 = vpack.c.bf16 %v1127, %v1123
    %v1132 = vpack.c.bf16 %v1128, %v1124
    %v1133 = vpack.c.bf16 %v1129, %v1125
    %1134 = vrot.lane.b32.xlu0 %v898, 112
    %v1135 = vpop.permute.xlu0 %1134
    %1136 = vrot.lane.b32.xlu0 %v902, 112
    %v1137 = vpop.permute.xlu0 %1136
    %1138 = vrot.lane.b32.xlu0 %v899, 112
    %v1139 = vpop.permute.xlu0 %1138
    %1140 = vrot.lane.b32.xlu0 %v903, 112
    %v1141 = vpop.permute.xlu0 %1140
    %1142 = vrot.lane.b32.xlu0 %v900, 112
    %v1143 = vpop.permute.xlu0 %1142
    %1144 = vrot.lane.b32.xlu0 %v904, 112
    %v1145 = vpop.permute.xlu0 %1144
    %1146 = vrot.lane.b32.xlu0 %v901, 112
    %v1147 = vpop.permute.xlu0 %1146
    %1148 = vrot.lane.b32.xlu0 %v905, 112
    %v1149 = vpop.permute.xlu0 %1148
    %v1150 = vsel %vm390, %v1143, %v1147
    %v1151 = vsel %vm390, %v1145, %v1149
    %v1152 = vsel %vm390, %v1139, %v1143
    %v1153 = vsel %vm390, %v1141, %v1145
    %v1154 = vsel %vm390, %v1135, %v1139
    %v1155 = vsel %vm390, %v1137, %v1141
    %v1156 = vsel %vm390, %v1147, %v1135
    %v1157 = vsel %vm390, %v1149, %v1137
    %v1158 = vsel %vm399, %v1154, 0.0
    %v1159 = vsel %vm400, %v1152, 0.0
    %v1160 = vsel %vm401, %v1150, 0.0
    %v1161 = vsel %vm402, %v1156, 0.0
    %v1162 = vsel %vm399, %v1155, 0.0
    %v1163 = vsel %vm400, %v1153, 0.0
    %v1164 = vsel %vm401, %v1151, 0.0
    %v1165 = vsel %vm402, %v1157, 0.0
    %v1166 = vpack.c.bf16 %v1162, %v1158
    %v1167 = vpack.c.bf16 %v1163, %v1159
    %v1168 = vpack.c.bf16 %v1164, %v1160
    %v1169 = vpack.c.bf16 %v1165, %v1161
    %1170 = vrot.lane.b32.xlu0 %v898, 111
    %v1171 = vpop.permute.xlu0 %1170
    %1172 = vrot.lane.b32.xlu0 %v902, 111
    %v1173 = vpop.permute.xlu0 %1172
    %1174 = vrot.lane.b32.xlu0 %v899, 111
    %v1175 = vpop.permute.xlu0 %1174
    %1176 = vrot.lane.b32.xlu0 %v903, 111
    %v1177 = vpop.permute.xlu0 %1176
    %1178 = vrot.lane.b32.xlu0 %v900, 111
    %v1179 = vpop.permute.xlu0 %1178
    %1180 = vrot.lane.b32.xlu0 %v904, 111
    %v1181 = vpop.permute.xlu0 %1180
    %1182 = vrot.lane.b32.xlu0 %v901, 111
    %v1183 = vpop.permute.xlu0 %1182
    %1184 = vrot.lane.b32.xlu0 %v905, 111
    %v1185 = vpop.permute.xlu0 %1184
    %v1186 = vsel %vm419, %v1179, %v1183
    %v1187 = vsel %vm419, %v1181, %v1185
    %v1188 = vsel %vm419, %v1175, %v1179
    %v1189 = vsel %vm419, %v1177, %v1181
    %v1190 = vsel %vm419, %v1171, %v1175
    %v1191 = vsel %vm419, %v1173, %v1177
    %v1192 = vsel %vm419, %v1183, %v1171
    %v1193 = vsel %vm419, %v1185, %v1173
    %v1194 = vsel %vm428, %v1190, 0.0
    %v1195 = vsel %vm429, %v1188, 0.0
    %v1196 = vsel %vm430, %v1186, 0.0
    %v1197 = vsel %vm431, %v1192, 0.0
    %v1198 = vsel %vm428, %v1191, 0.0
    %v1199 = vsel %vm429, %v1189, 0.0
    %v1200 = vsel %vm430, %v1187, 0.0
    %v1201 = vsel %vm431, %v1193, 0.0
    %v1202 = vpack.c.bf16 %v1198, %v1194
    %v1203 = vpack.c.bf16 %v1199, %v1195
    %v1204 = vpack.c.bf16 %v1200, %v1196
    %v1205 = vpack.c.bf16 %v1201, %v1197
    %v1206 = vld [vmem:[%s4] sm:$0xff]
    %v1207 = vld [vmem:[%s4 + $0x8] sm:$0xff]
    %v1210 = vunpack.c.l.b16 %v1206
    %v1211 = vunpack.c.h.b16 %v1206
    %v1212 = vunpack.c.l.b16 %v1207
    %v1213 = vunpack.c.h.b16 %v1207
    %v1214 = vpack.c.b16 %v1212, %v1210
    %v1215 = vpack.c.b16 %v1213, %v1211
    %vm1217 = vcmask 130048
    %v1219 = vsel %vm1217, %v1215, 0
    %1221 = vmatprep.subr.bf16.mxu0 %v947
    %1222 = vmatpush1.bf16.msra.mxu0 %v946
    %1223 = vmatprep.subr.bf16.mxu0 %v983
    %1224 = vmatpush1.bf16.msra.mxu0 %v982
    %1225 = vmatprep.subr.bf16.mxu0 %v1019
    %1226 = vmatpush1.bf16.msra.mxu0 %v1018
    %1227 = vmatprep.subr.bf16.mxu0 %v1055
    %1228 = vmatpush1.bf16.msra.mxu0 %v1054
    %1229 = vmatprep.subr.bf16.mxu0 %v1059
    %1230 = vmatpush1.bf16.msra.mxu0 %v1058
    %1231 = vmatprep.subr.bf16.mxu0 %v1095
    %1232 = vmatpush1.bf16.msra.mxu0 %v1094
    %1233 = vmatprep.subr.bf16.mxu0 %v1131
    %1234 = vmatpush1.bf16.msra.mxu0 %v1130
    %1235 = vmatprep.subr.bf16.mxu0 %v1167
    %1236 = vmatpush1.bf16.msra.mxu0 %v1166
    %1237 = vmatprep.subr.bf16.mxu0 %v1203
    %1238 = vmatpush1.bf16.msra.mxu0 %v1202
    %1239 = vmatprep.subr.bf16.mxu0 0
    %1240 = vmatpush1.bf16.msra.mxu0 0
    %1241 = vmatprep.subr.bf16.mxu0 0
    %1242 = vmatpush1.bf16.msra.mxu0 0
    %1243 = vmatprep.subr.bf16.mxu0 0
    %1244 = vmatpush1.bf16.msra.mxu0 0
    %1245 = vmatprep.subr.bf16.mxu0 0
    %1246 = vmatpush1.bf16.msra.mxu0 0
    %1247 = vmatprep.subr.bf16.mxu0 0
    %1248 = vmatpush1.bf16.msra.mxu0 0
    %1249 = vmatprep.subr.bf16.mxu0 0
    %1250 = vmatpush1.bf16.msra.mxu0 0
    %1251 = vmatprep.subr.bf16.mxu0 0
    %1252 = vmatpush1.bf16.msra.mxu0 0
    %1253 = vmatprep.mubr.bf16.mxu0 %v1219
    %1254 = vmatmul.mubr.bf16.gmra.mrb[0].mxu0 %v1214
    %v1255 = vpop.f32.mrb[0].mxu0
    %v1256 = vadd.f32 0.0, %v1255
    %v1257 = vpop.f32.mrb[0].mxu0
    %v1258 = vadd.f32 0.0, %v1257
    %v1259 = vpop.f32.mrb[0].mxu0
    %v1260 = vadd.f32 0.0, %v1259
    %v1261 = vpop.f32.mrb[0].mxu0
    %v1262 = vadd.f32 0.0, %v1261
    %1263 = vdwg.mxu0
    %1264 = vmatprep.subr.bf16.mxu0 %v949
    %1265 = vmatpush1.bf16.msra.mxu0 %v948
    %1266 = vmatprep.subr.bf16.mxu0 %v985
    %1267 = vmatpush1.bf16.msra.mxu0 %v984
    %1268 = vmatprep.subr.bf16.mxu0 %v1021
    %1269 = vmatpush1.bf16.msra.mxu0 %v1020
    %1270 = vmatprep.subr.bf16.mxu0 %v1057
    %1271 = vmatpush1.bf16.msra.mxu0 %v1056
    %1272 = vmatprep.subr.bf16.mxu0 %v1061
    %1273 = vmatpush1.bf16.msra.mxu0 %v1060
    %1274 = vmatprep.subr.bf16.mxu0 %v1097
    %1275 = vmatpush1.bf16.msra.mxu0 %v1096
    %1276 = vmatprep.subr.bf16.mxu0 %v1133
    %1277 = vmatpush1.bf16.msra.mxu0 %v1132
    %1278 = vmatprep.subr.bf16.mxu0 %v1169
    %1279 = vmatpush1.bf16.msra.mxu0 %v1168
    %1280 = vmatprep.subr.bf16.mxu0 %v1205
    %1281 = vmatpush1.bf16.msra.mxu0 %v1204
    %1282 = vmatprep.subr.bf16.mxu0 0
    %1283 = vmatpush1.bf16.msra.mxu0 0
    %1284 = vmatprep.subr.bf16.mxu0 0
    %1285 = vmatpush1.bf16.msra.mxu0 0
    %1286 = vmatprep.subr.bf16.mxu0 0
    %1287 = vmatpush1.bf16.msra.mxu0 0
    %1288 = vmatprep.subr.bf16.mxu0 0
    %1289 = vmatpush1.bf16.msra.mxu0 0
    %1290 = vmatprep.subr.bf16.mxu0 0
    %1291 = vmatpush1.bf16.msra.mxu0 0
    %1292 = vmatprep.subr.bf16.mxu0 0
    %1293 = vmatpush1.bf16.msra.mxu0 0
    %1294 = vmatprep.subr.bf16.mxu0 0
    %1295 = vmatpush1.bf16.msra.mxu0 0
    %1296 = vmatprep.mubr.bf16.mxu0 %v1219
    %1297 = vmatmul.mubr.bf16.gmra.mrb[0].mxu0 %v1214
    %v1298 = vpop.f32.mrb[0].mxu0
    %v1299 = vadd.f32 0.0, %v1298
    %v1300 = vpop.f32.mrb[0].mxu0
    %v1301 = vadd.f32 0.0, %v1300
    %v1302 = vpop.f32.mrb[0].mxu0
    %v1303 = vadd.f32 0.0, %v1302
    %v1304 = vpop.f32.mrb[0].mxu0
    %v1305 = vadd.f32 0.0, %v1304
    %1306 = vdwg.mxu0
    %v1307 = vadd.f32 %v1256, %v1258
    %v1308 = vadd.f32 %v1307, %v1299
    %v1309 = vadd.f32 %v1308, %v1301
    %1310 = vadd.xlane.f32.xlu0 %v1309
    %v1311 = vpop.xlane.xlu0 %1310
    %v1312 = vadd.f32 %v1260, %v1262
    %v1313 = vadd.f32 %v1312, %v1303
    %v1314 = vadd.f32 %v1313, %v1305
    %1315 = vadd.xlane.f32.xlu0 %v1314
    %v1316 = vpop.xlane.xlu0 %1315
    %v1317 = vmul.f32 %v1311, 0.001953125
    %v1318 = vmul.f32 %v1316, 0.001953125
    %v1319 = vsub.f32 %v1256, %v1317
    %v1320 = vsub.f32 %v1258, %v1317
    %v1321 = vsub.f32 %v1299, %v1317
    %v1322 = vsub.f32 %v1301, %v1317
    %v1323 = vsub.f32 %v1260, %v1318
    %v1324 = vsub.f32 %v1262, %v1318
    %v1325 = vsub.f32 %v1303, %v1318
    %v1326 = vsub.f32 %v1305, %v1318
    %v1327 = vmul.f32 %v1319, %v1319
    %v1328 = vmul.f32 %v1320, %v1320
    %v1329 = vmul.f32 %v1321, %v1321
    %v1330 = vmul.f32 %v1322, %v1322
    %v1331 = vmul.f32 %v1323, %v1323
    %v1332 = vmul.f32 %v1324, %v1324
    %v1333 = vmul.f32 %v1325, %v1325
    %v1334 = vmul.f32 %v1326, %v1326
    %v1335 = vadd.f32 %v1327, %v1328
    %v1336 = vadd.f32 %v1335, %v1329
    %v1337 = vadd.f32 %v1336, %v1330
    %1338 = vadd.xlane.f32.xlu0 %v1337
    %v1339 = vpop.xlane.xlu0 %1338
    %v1340 = vadd.f32 %v1331, %v1332
    %v1341 = vadd.f32 %v1340, %v1333
    %v1342 = vadd.f32 %v1341, %v1334
    %1343 = vadd.xlane.f32.xlu0 %v1342
    %v1344 = vpop.xlane.xlu0 %1343
    %v1345 = vmul.f32 %v1339, 0.001953125
    %v1346 = vmul.f32 %v1344, 0.001953125
    %v1347 = vld [vmem:[%s5] sm:$0xff]
    %v1348 = vld [vmem:[%s5 + $0x8] sm:$0xff]
    %v1349 = vadd.f32 %v1345, 1e-05
    %v1350 = vadd.f32 %v1346, 1e-05
    %v1351 = vrsqrt.pop %v1349
    %v1352 = vrsqrt.pop %v1350
    %v1353 = vmul.f32 %v1347, %v1351
    %v1354 = vmul.f32 %v1348, %v1352
    %1356 = vset.pattern.permute.xlu0 0
    %1357 = vperm.xlu0 %1356, %v1353
    %v1358 = vpop.permute.xlu0 %1357
    %1361 = vset.pattern.permute.xlu0 0
    %1362 = vperm.xlu0 %1361, %v1354
    %v1363 = vpop.permute.xlu0 %1362
    %v1365 = vmul.f32 %v1319, %v1358
    %v1366 = vmul.f32 %v1320, %v1358
    %v1367 = vmul.f32 %v1321, %v1358
    %v1368 = vmul.f32 %v1322, %v1358
    %v1369 = vmul.f32 %v1323, %v1363
    %v1370 = vmul.f32 %v1324, %v1363
    %v1371 = vmul.f32 %v1325, %v1363
    %v1372 = vmul.f32 %v1326, %v1363
    %v1373 = vld [vmem:[%s6] sm:$0xff]
    %v1374 = vld [vmem:[%s6 + $0x8] sm:$0xff]
    %1376 = vset.pattern.permute.xlu0 0
    %1377 = vperm.xlu0 %1376, %v1373
    %v1378 = vpop.permute.xlu0 %1377
    %1381 = vset.pattern.permute.xlu0 0
    %1382 = vperm.xlu0 %1381, %v1374
    %v1383 = vpop.permute.xlu0 %1382
    %v1385 = vadd.f32 %v1365, %v1378
    %v1386 = vadd.f32 %v1366, %v1378
    %v1387 = vadd.f32 %v1367, %v1378
    %v1388 = vadd.f32 %v1368, %v1378
    %v1389 = vadd.f32 %v1369, %v1383
    %v1390 = vadd.f32 %v1370, %v1383
    %v1391 = vadd.f32 %v1371, %v1383
    %v1392 = vadd.f32 %v1372, %v1383
    %v1393 = vmax.f32 %v1385, 0.0
    %v1394 = vmax.f32 %v1386, 0.0
    %v1395 = vmax.f32 %v1387, 0.0
    %v1396 = vmax.f32 %v1388, 0.0
    %v1397 = vmax.f32 %v1389, 0.0
    %v1398 = vmax.f32 %v1390, 0.0
    %v1399 = vmax.f32 %v1391, 0.0
    %v1400 = vmax.f32 %v1392, 0.0
    %1401 = vrot.lane.b32.xlu0 %v1393, 17
    %v1402 = vpop.permute.xlu0 %1401
    %1403 = vrot.lane.b32.xlu0 %v1397, 17
    %v1404 = vpop.permute.xlu0 %1403
    %1405 = vrot.lane.b32.xlu0 %v1394, 17
    %v1406 = vpop.permute.xlu0 %1405
    %1407 = vrot.lane.b32.xlu0 %v1398, 17
    %v1408 = vpop.permute.xlu0 %1407
    %1409 = vrot.lane.b32.xlu0 %v1395, 17
    %v1410 = vpop.permute.xlu0 %1409
    %1411 = vrot.lane.b32.xlu0 %v1399, 17
    %v1412 = vpop.permute.xlu0 %1411
    %1413 = vrot.lane.b32.xlu0 %v1396, 17
    %v1414 = vpop.permute.xlu0 %1413
    %1415 = vrot.lane.b32.xlu0 %v1400, 17
    %v1416 = vpop.permute.xlu0 %1415
    %v1417 = vsel %vm212, %v1410, %v1414
    %v1418 = vsel %vm212, %v1412, %v1416
    %v1419 = vsel %vm212, %v1406, %v1410
    %v1420 = vsel %vm212, %v1408, %v1412
    %v1421 = vsel %vm212, %v1402, %v1406
    %v1422 = vsel %vm212, %v1404, %v1408
    %v1423 = vsel %vm212, %v1414, %v1402
    %v1424 = vsel %vm212, %v1416, %v1404
    %v1425 = vsel %vm221, %v1423, 0.0
    %v1426 = vsel %vm222, %v1421, 0.0
    %v1427 = vsel %vm223, %v1419, 0.0
    %v1428 = vsel %vm224, %v1417, 0.0
    %v1429 = vsel %vm221, %v1424, 0.0
    %v1430 = vsel %vm222, %v1422, 0.0
    %v1431 = vsel %vm223, %v1420, 0.0
    %v1432 = vsel %vm224, %v1418, 0.0
    %v1433 = vpack.c.bf16 %v1429, %v1425
    %v1434 = vpack.c.bf16 %v1430, %v1426
    %v1435 = vpack.c.bf16 %v1431, %v1427
    %v1436 = vpack.c.bf16 %v1432, %v1428
    %1437 = vrot.lane.b32.xlu0 %v1393, 16
    %v1438 = vpop.permute.xlu0 %1437
    %1439 = vrot.lane.b32.xlu0 %v1397, 16
    %v1440 = vpop.permute.xlu0 %1439
    %1441 = vrot.lane.b32.xlu0 %v1394, 16
    %v1442 = vpop.permute.xlu0 %1441
    %1443 = vrot.lane.b32.xlu0 %v1398, 16
    %v1444 = vpop.permute.xlu0 %1443
    %1445 = vrot.lane.b32.xlu0 %v1395, 16
    %v1446 = vpop.permute.xlu0 %1445
    %1447 = vrot.lane.b32.xlu0 %v1399, 16
    %v1448 = vpop.permute.xlu0 %1447
    %1449 = vrot.lane.b32.xlu0 %v1396, 16
    %v1450 = vpop.permute.xlu0 %1449
    %1451 = vrot.lane.b32.xlu0 %v1400, 16
    %v1452 = vpop.permute.xlu0 %1451
    %v1453 = vsel %vm241, %v1446, %v1450
    %v1454 = vsel %vm241, %v1448, %v1452
    %v1455 = vsel %vm241, %v1442, %v1446
    %v1456 = vsel %vm241, %v1444, %v1448
    %v1457 = vsel %vm241, %v1438, %v1442
    %v1458 = vsel %vm241, %v1440, %v1444
    %v1459 = vsel %vm241, %v1450, %v1438
    %v1460 = vsel %vm241, %v1452, %v1440
    %v1461 = vsel %vm250, %v1459, 0.0
    %v1462 = vsel %vm251, %v1457, 0.0
    %v1463 = vsel %vm252, %v1455, 0.0
    %v1464 = vsel %vm253, %v1453, 0.0
    %v1465 = vsel %vm250, %v1460, 0.0
    %v1466 = vsel %vm251, %v1458, 0.0
    %v1467 = vsel %vm252, %v1456, 0.0
    %v1468 = vsel %vm253, %v1454, 0.0
    %v1469 = vpack.c.bf16 %v1465, %v1461
    %v1470 = vpack.c.bf16 %v1466, %v1462
    %v1471 = vpack.c.bf16 %v1467, %v1463
    %v1472 = vpack.c.bf16 %v1468, %v1464
    %1473 = vrot.lane.b32.xlu0 %v1393, 15
    %v1474 = vpop.permute.xlu0 %1473
    %1475 = vrot.lane.b32.xlu0 %v1397, 15
    %v1476 = vpop.permute.xlu0 %1475
    %1477 = vrot.lane.b32.xlu0 %v1394, 15
    %v1478 = vpop.permute.xlu0 %1477
    %1479 = vrot.lane.b32.xlu0 %v1398, 15
    %v1480 = vpop.permute.xlu0 %1479
    %1481 = vrot.lane.b32.xlu0 %v1395, 15
    %v1482 = vpop.permute.xlu0 %1481
    %1483 = vrot.lane.b32.xlu0 %v1399, 15
    %v1484 = vpop.permute.xlu0 %1483
    %1485 = vrot.lane.b32.xlu0 %v1396, 15
    %v1486 = vpop.permute.xlu0 %1485
    %1487 = vrot.lane.b32.xlu0 %v1400, 15
    %v1488 = vpop.permute.xlu0 %1487
    %v1489 = vsel %vm270, %v1482, %v1486
    %v1490 = vsel %vm270, %v1484, %v1488
    %v1491 = vsel %vm270, %v1478, %v1482
    %v1492 = vsel %vm270, %v1480, %v1484
    %v1493 = vsel %vm270, %v1474, %v1478
    %v1494 = vsel %vm270, %v1476, %v1480
    %v1495 = vsel %vm270, %v1486, %v1474
    %v1496 = vsel %vm270, %v1488, %v1476
    %v1497 = vsel %vm279, %v1495, 0.0
    %v1498 = vsel %vm280, %v1493, 0.0
    %v1499 = vsel %vm281, %v1491, 0.0
    %v1500 = vsel %vm282, %v1489, 0.0
    %v1501 = vsel %vm279, %v1496, 0.0
    %v1502 = vsel %vm280, %v1494, 0.0
    %v1503 = vsel %vm281, %v1492, 0.0
    %v1504 = vsel %vm282, %v1490, 0.0
    %v1505 = vpack.c.bf16 %v1501, %v1497
    %v1506 = vpack.c.bf16 %v1502, %v1498
    %v1507 = vpack.c.bf16 %v1503, %v1499
    %v1508 = vpack.c.bf16 %v1504, %v1500
    %1509 = vrot.lane.b32.xlu0 %v1393, 1
    %v1510 = vpop.permute.xlu0 %1509
    %1511 = vrot.lane.b32.xlu0 %v1397, 1
    %v1512 = vpop.permute.xlu0 %1511
    %1513 = vrot.lane.b32.xlu0 %v1394, 1
    %v1514 = vpop.permute.xlu0 %1513
    %1515 = vrot.lane.b32.xlu0 %v1398, 1
    %v1516 = vpop.permute.xlu0 %1515
    %1517 = vrot.lane.b32.xlu0 %v1395, 1
    %v1518 = vpop.permute.xlu0 %1517
    %1519 = vrot.lane.b32.xlu0 %v1399, 1
    %v1520 = vpop.permute.xlu0 %1519
    %1521 = vrot.lane.b32.xlu0 %v1396, 1
    %v1522 = vpop.permute.xlu0 %1521
    %1523 = vrot.lane.b32.xlu0 %v1400, 1
    %v1524 = vpop.permute.xlu0 %1523
    %v1525 = vsel %vm299, %v1518, %v1522
    %v1526 = vsel %vm299, %v1520, %v1524
    %v1527 = vsel %vm299, %v1514, %v1518
    %v1528 = vsel %vm299, %v1516, %v1520
    %v1529 = vsel %vm299, %v1510, %v1514
    %v1530 = vsel %vm299, %v1512, %v1516
    %v1531 = vsel %vm299, %v1522, %v1510
    %v1532 = vsel %vm299, %v1524, %v1512
    %v1533 = vsel %vm308, %v1531, 0.0
    %v1534 = vsel %vm309, %v1529, 0.0
    %v1535 = vsel %vm310, %v1527, 0.0
    %v1536 = vsel %vm311, %v1525, 0.0
    %v1537 = vsel %vm308, %v1532, 0.0
    %v1538 = vsel %vm309, %v1530, 0.0
    %v1539 = vsel %vm310, %v1528, 0.0
    %v1540 = vsel %vm311, %v1526, 0.0
    %v1541 = vpack.c.bf16 %v1537, %v1533
    %v1542 = vpack.c.bf16 %v1538, %v1534
    %v1543 = vpack.c.bf16 %v1539, %v1535
    %v1544 = vpack.c.bf16 %v1540, %v1536
    %v1545 = vpack.c.bf16 %v1397, %v1393
    %v1546 = vpack.c.bf16 %v1398, %v1394
    %v1547 = vpack.c.bf16 %v1399, %v1395
    %v1548 = vpack.c.bf16 %v1400, %v1396
    %1549 = vrot.lane.b32.xlu0 %v1393, 127
    %v1550 = vpop.permute.xlu0 %1549
    %1551 = vrot.lane.b32.xlu0 %v1397, 127
    %v1552 = vpop.permute.xlu0 %1551
    %1553 = vrot.lane.b32.xlu0 %v1394, 127
    %v1554 = vpop.permute.xlu0 %1553
    %1555 = vrot.lane.b32.xlu0 %v1398, 127
    %v1556 = vpop.permute.xlu0 %1555
    %1557 = vrot.lane.b32.xlu0 %v1395, 127
    %v1558 = vpop.permute.xlu0 %1557
    %1559 = vrot.lane.b32.xlu0 %v1399, 127
    %v1560 = vpop.permute.xlu0 %1559
    %1561 = vrot.lane.b32.xlu0 %v1396, 127
    %v1562 = vpop.permute.xlu0 %1561
    %1563 = vrot.lane.b32.xlu0 %v1400, 127
    %v1564 = vpop.permute.xlu0 %1563
    %v1565 = vsel %vm332, %v1558, %v1562
    %v1566 = vsel %vm332, %v1560, %v1564
    %v1567 = vsel %vm332, %v1554, %v1558
    %v1568 = vsel %vm332, %v1556, %v1560
    %v1569 = vsel %vm332, %v1550, %v1554
    %v1570 = vsel %vm332, %v1552, %v1556
    %v1571 = vsel %vm332, %v1562, %v1550
    %v1572 = vsel %vm332, %v1564, %v1552
    %v1573 = vsel %vm341, %v1569, 0.0
    %v1574 = vsel %vm342, %v1567, 0.0
    %v1575 = vsel %vm343, %v1565, 0.0
    %v1576 = vsel %vm344, %v1571, 0.0
    %v1577 = vsel %vm341, %v1570, 0.0
    %v1578 = vsel %vm342, %v1568, 0.0
    %v1579 = vsel %vm343, %v1566, 0.0
    %v1580 = vsel %vm344, %v1572, 0.0
    %v1581 = vpack.c.bf16 %v1577, %v1573
    %v1582 = vpack.c.bf16 %v1578, %v1574
    %v1583 = vpack.c.bf16 %v1579, %v1575
    %v1584 = vpack.c.bf16 %v1580, %v1576
    %1585 = vrot.lane.b32.xlu0 %v1393, 113
    %v1586 = vpop.permute.xlu0 %1585
    %1587 = vrot.lane.b32.xlu0 %v1397, 113
    %v1588 = vpop.permute.xlu0 %1587
    %1589 = vrot.lane.b32.xlu0 %v1394, 113
    %v1590 = vpop.permute.xlu0 %1589
    %1591 = vrot.lane.b32.xlu0 %v1398, 113
    %v1592 = vpop.permute.xlu0 %1591
    %1593 = vrot.lane.b32.xlu0 %v1395, 113
    %v1594 = vpop.permute.xlu0 %1593
    %1595 = vrot.lane.b32.xlu0 %v1399, 113
    %v1596 = vpop.permute.xlu0 %1595
    %1597 = vrot.lane.b32.xlu0 %v1396, 113
    %v1598 = vpop.permute.xlu0 %1597
    %1599 = vrot.lane.b32.xlu0 %v1400, 113
    %v1600 = vpop.permute.xlu0 %1599
    %v1601 = vsel %vm361, %v1594, %v1598
    %v1602 = vsel %vm361, %v1596, %v1600
    %v1603 = vsel %vm361, %v1590, %v1594
    %v1604 = vsel %vm361, %v1592, %v1596
    %v1605 = vsel %vm361, %v1586, %v1590
    %v1606 = vsel %vm361, %v1588, %v1592
    %v1607 = vsel %vm361, %v1598, %v1586
    %v1608 = vsel %vm361, %v1600, %v1588
    %v1609 = vsel %vm370, %v1605, 0.0
    %v1610 = vsel %vm371, %v1603, 0.0
    %v1611 = vsel %vm372, %v1601, 0.0
    %v1612 = vsel %vm373, %v1607, 0.0
    %v1613 = vsel %vm370, %v1606, 0.0
    %v1614 = vsel %vm371, %v1604, 0.0
    %v1615 = vsel %vm372, %v1602, 0.0
    %v1616 = vsel %vm373, %v1608, 0.0
    %v1617 = vpack.c.bf16 %v1613, %v1609
    %v1618 = vpack.c.bf16 %v1614, %v1610
    %v1619 = vpack.c.bf16 %v1615, %v1611
    %v1620 = vpack.c.bf16 %v1616, %v1612
    %1621 = vrot.lane.b32.xlu0 %v1393, 112
    %v1622 = vpop.permute.xlu0 %1621
    %1623 = vrot.lane.b32.xlu0 %v1397, 112
    %v1624 = vpop.permute.xlu0 %1623
    %1625 = vrot.lane.b32.xlu0 %v1394, 112
    %v1626 = vpop.permute.xlu0 %1625
    %1627 = vrot.lane.b32.xlu0 %v1398, 112
    %v1628 = vpop.permute.xlu0 %1627
    %1629 = vrot.lane.b32.xlu0 %v1395, 112
    %v1630 = vpop.permute.xlu0 %1629
    %1631 = vrot.lane.b32.xlu0 %v1399, 112
    %v1632 = vpop.permute.xlu0 %1631
    %1633 = vrot.lane.b32.xlu0 %v1396, 112
    %v1634 = vpop.permute.xlu0 %1633
    %1635 = vrot.lane.b32.xlu0 %v1400, 112
    %v1636 = vpop.permute.xlu0 %1635
    %v1637 = vsel %vm390, %v1630, %v1634
    %v1638 = vsel %vm390, %v1632, %v1636
    %v1639 = vsel %vm390, %v1626, %v1630
    %v1640 = vsel %vm390, %v1628, %v1632
    %v1641 = vsel %vm390, %v1622, %v1626
    %v1642 = vsel %vm390, %v1624, %v1628
    %v1643 = vsel %vm390, %v1634, %v1622
    %v1644 = vsel %vm390, %v1636, %v1624
    %v1645 = vsel %vm399, %v1641, 0.0
    %v1646 = vsel %vm400, %v1639, 0.0
    %v1647 = vsel %vm401, %v1637, 0.0
    %v1648 = vsel %vm402, %v1643, 0.0
    %v1649 = vsel %vm399, %v1642, 0.0
    %v1650 = vsel %vm400, %v1640, 0.0
    %v1651 = vsel %vm401, %v1638, 0.0
    %v1652 = vsel %vm402, %v1644, 0.0
    %v1653 = vpack.c.bf16 %v1649, %v1645
    %v1654 = vpack.c.bf16 %v1650, %v1646
    %v1655 = vpack.c.bf16 %v1651, %v1647
    %v1656 = vpack.c.bf16 %v1652, %v1648
    %1657 = vrot.lane.b32.xlu0 %v1393, 111
    %v1658 = vpop.permute.xlu0 %1657
    %1659 = vrot.lane.b32.xlu0 %v1397, 111
    %v1660 = vpop.permute.xlu0 %1659
    %1661 = vrot.lane.b32.xlu0 %v1394, 111
    %v1662 = vpop.permute.xlu0 %1661
    %1663 = vrot.lane.b32.xlu0 %v1398, 111
    %v1664 = vpop.permute.xlu0 %1663
    %1665 = vrot.lane.b32.xlu0 %v1395, 111
    %v1666 = vpop.permute.xlu0 %1665
    %1667 = vrot.lane.b32.xlu0 %v1399, 111
    %v1668 = vpop.permute.xlu0 %1667
    %1669 = vrot.lane.b32.xlu0 %v1396, 111
    %v1670 = vpop.permute.xlu0 %1669
    %1671 = vrot.lane.b32.xlu0 %v1400, 111
    %v1672 = vpop.permute.xlu0 %1671
    %v1673 = vsel %vm419, %v1666, %v1670
    %v1674 = vsel %vm419, %v1668, %v1672
    %v1675 = vsel %vm419, %v1662, %v1666
    %v1676 = vsel %vm419, %v1664, %v1668
    %v1677 = vsel %vm419, %v1658, %v1662
    %v1678 = vsel %vm419, %v1660, %v1664
    %v1679 = vsel %vm419, %v1670, %v1658
    %v1680 = vsel %vm419, %v1672, %v1660
    %v1681 = vsel %vm428, %v1677, 0.0
    %v1682 = vsel %vm429, %v1675, 0.0
    %v1683 = vsel %vm430, %v1673, 0.0
    %v1684 = vsel %vm431, %v1679, 0.0
    %v1685 = vsel %vm428, %v1678, 0.0
    %v1686 = vsel %vm429, %v1676, 0.0
    %v1687 = vsel %vm430, %v1674, 0.0
    %v1688 = vsel %vm431, %v1680, 0.0
    %v1689 = vpack.c.bf16 %v1685, %v1681
    %v1690 = vpack.c.bf16 %v1686, %v1682
    %v1691 = vpack.c.bf16 %v1687, %v1683
    %v1692 = vpack.c.bf16 %v1688, %v1684
    %v1693 = vld [vmem:[%s7] sm:$0xff]
    %v1694 = vld [vmem:[%s7 + $0x8] sm:$0xff]
    %v1697 = vunpack.c.l.b16 %v1693
    %v1698 = vunpack.c.h.b16 %v1693
    %v1699 = vunpack.c.l.b16 %v1694
    %v1700 = vunpack.c.h.b16 %v1694
    %v1701 = vpack.c.b16 %v1699, %v1697
    %v1702 = vpack.c.b16 %v1700, %v1698
    %v1705 = vsel %vm1217, %v1702, 0
    %1707 = vmatprep.subr.bf16.mxu0 %v1434
    %1708 = vmatpush1.bf16.msra.mxu0 %v1433
    %1709 = vmatprep.subr.bf16.mxu0 %v1470
    %1710 = vmatpush1.bf16.msra.mxu0 %v1469
    %1711 = vmatprep.subr.bf16.mxu0 %v1506
    %1712 = vmatpush1.bf16.msra.mxu0 %v1505
    %1713 = vmatprep.subr.bf16.mxu0 %v1542
    %1714 = vmatpush1.bf16.msra.mxu0 %v1541
    %1715 = vmatprep.subr.bf16.mxu0 %v1546
    %1716 = vmatpush1.bf16.msra.mxu0 %v1545
    %1717 = vmatprep.subr.bf16.mxu0 %v1582
    %1718 = vmatpush1.bf16.msra.mxu0 %v1581
    %1719 = vmatprep.subr.bf16.mxu0 %v1618
    %1720 = vmatpush1.bf16.msra.mxu0 %v1617
    %1721 = vmatprep.subr.bf16.mxu0 %v1654
    %1722 = vmatpush1.bf16.msra.mxu0 %v1653
    %1723 = vmatprep.subr.bf16.mxu0 %v1690
    %1724 = vmatpush1.bf16.msra.mxu0 %v1689
    %1725 = vmatprep.subr.bf16.mxu0 0
    %1726 = vmatpush1.bf16.msra.mxu0 0
    %1727 = vmatprep.subr.bf16.mxu0 0
    %1728 = vmatpush1.bf16.msra.mxu0 0
    %1729 = vmatprep.subr.bf16.mxu0 0
    %1730 = vmatpush1.bf16.msra.mxu0 0
    %1731 = vmatprep.subr.bf16.mxu0 0
    %1732 = vmatpush1.bf16.msra.mxu0 0
    %1733 = vmatprep.subr.bf16.mxu0 0
    %1734 = vmatpush1.bf16.msra.mxu0 0
    %1735 = vmatprep.subr.bf16.mxu0 0
    %1736 = vmatpush1.bf16.msra.mxu0 0
    %1737 = vmatprep.subr.bf16.mxu0 0
    %1738 = vmatpush1.bf16.msra.mxu0 0
    %1739 = vmatprep.mubr.bf16.mxu0 %v1705
    %1740 = vmatmul.mubr.bf16.gmra.mrb[0].mxu0 %v1701
    %v1741 = vpop.f32.mrb[0].mxu0
    %v1742 = vadd.f32 0.0, %v1741
    %v1743 = vpop.f32.mrb[0].mxu0
    %v1744 = vadd.f32 0.0, %v1743
    %v1745 = vpop.f32.mrb[0].mxu0
    %v1746 = vadd.f32 0.0, %v1745
    %v1747 = vpop.f32.mrb[0].mxu0
    %v1748 = vadd.f32 0.0, %v1747
    %1749 = vdwg.mxu0
    %1750 = vmatprep.subr.bf16.mxu0 %v1436
    %1751 = vmatpush1.bf16.msra.mxu0 %v1435
    %1752 = vmatprep.subr.bf16.mxu0 %v1472
    %1753 = vmatpush1.bf16.msra.mxu0 %v1471
    %1754 = vmatprep.subr.bf16.mxu0 %v1508
    %1755 = vmatpush1.bf16.msra.mxu0 %v1507
    %1756 = vmatprep.subr.bf16.mxu0 %v1544
    %1757 = vmatpush1.bf16.msra.mxu0 %v1543
    %1758 = vmatprep.subr.bf16.mxu0 %v1548
    %1759 = vmatpush1.bf16.msra.mxu0 %v1547
    %1760 = vmatprep.subr.bf16.mxu0 %v1584
    %1761 = vmatpush1.bf16.msra.mxu0 %v1583
    %1762 = vmatprep.subr.bf16.mxu0 %v1620
    %1763 = vmatpush1.bf16.msra.mxu0 %v1619
    %1764 = vmatprep.subr.bf16.mxu0 %v1656
    %1765 = vmatpush1.bf16.msra.mxu0 %v1655
    %1766 = vmatprep.subr.bf16.mxu0 %v1692
    %1767 = vmatpush1.bf16.msra.mxu0 %v1691
    %1768 = vmatprep.subr.bf16.mxu0 0
    %1769 = vmatpush1.bf16.msra.mxu0 0
    %1770 = vmatprep.subr.bf16.mxu0 0
    %1771 = vmatpush1.bf16.msra.mxu0 0
    %1772 = vmatprep.subr.bf16.mxu0 0
    %1773 = vmatpush1.bf16.msra.mxu0 0
    %1774 = vmatprep.subr.bf16.mxu0 0
    %1775 = vmatpush1.bf16.msra.mxu0 0
    %1776 = vmatprep.subr.bf16.mxu0 0
    %1777 = vmatpush1.bf16.msra.mxu0 0
    %1778 = vmatprep.subr.bf16.mxu0 0
    %1779 = vmatpush1.bf16.msra.mxu0 0
    %1780 = vmatprep.subr.bf16.mxu0 0
    %1781 = vmatpush1.bf16.msra.mxu0 0
    %1782 = vmatprep.mubr.bf16.mxu0 %v1705
    %1783 = vmatmul.mubr.bf16.gmra.mrb[0].mxu0 %v1701
    %v1784 = vpop.f32.mrb[0].mxu0
    %v1785 = vadd.f32 0.0, %v1784
    %v1786 = vpop.f32.mrb[0].mxu0
    %v1787 = vadd.f32 0.0, %v1786
    %v1788 = vpop.f32.mrb[0].mxu0
    %v1789 = vadd.f32 0.0, %v1788
    %v1790 = vpop.f32.mrb[0].mxu0
    %v1791 = vadd.f32 0.0, %v1790
    %1792 = vdwg.mxu0
    %v1793 = vadd.f32 %v1742, %v1744
    %v1794 = vadd.f32 %v1793, %v1785
    %v1795 = vadd.f32 %v1794, %v1787
    %1796 = vadd.xlane.f32.xlu0 %v1795
    %v1797 = vpop.xlane.xlu0 %1796
    %v1798 = vadd.f32 %v1746, %v1748
    %v1799 = vadd.f32 %v1798, %v1789
    %v1800 = vadd.f32 %v1799, %v1791
    %1801 = vadd.xlane.f32.xlu0 %v1800
    %v1802 = vpop.xlane.xlu0 %1801
    %v1803 = vmul.f32 %v1797, 0.001953125
    %v1804 = vmul.f32 %v1802, 0.001953125
    %v1805 = vsub.f32 %v1742, %v1803
    %v1806 = vsub.f32 %v1744, %v1803
    %v1807 = vsub.f32 %v1785, %v1803
    %v1808 = vsub.f32 %v1787, %v1803
    %v1809 = vsub.f32 %v1746, %v1804
    %v1810 = vsub.f32 %v1748, %v1804
    %v1811 = vsub.f32 %v1789, %v1804
    %v1812 = vsub.f32 %v1791, %v1804
    %v1813 = vmul.f32 %v1805, %v1805
    %v1814 = vmul.f32 %v1806, %v1806
    %v1815 = vmul.f32 %v1807, %v1807
    %v1816 = vmul.f32 %v1808, %v1808
    %v1817 = vmul.f32 %v1809, %v1809
    %v1818 = vmul.f32 %v1810, %v1810
    %v1819 = vmul.f32 %v1811, %v1811
    %v1820 = vmul.f32 %v1812, %v1812
    %v1821 = vadd.f32 %v1813, %v1814
    %v1822 = vadd.f32 %v1821, %v1815
    %v1823 = vadd.f32 %v1822, %v1816
    %1824 = vadd.xlane.f32.xlu0 %v1823
    %v1825 = vpop.xlane.xlu0 %1824
    %v1826 = vadd.f32 %v1817, %v1818
    %v1827 = vadd.f32 %v1826, %v1819
    %v1828 = vadd.f32 %v1827, %v1820
    %1829 = vadd.xlane.f32.xlu0 %v1828
    %v1830 = vpop.xlane.xlu0 %1829
    %v1831 = vmul.f32 %v1825, 0.001953125
    %v1832 = vmul.f32 %v1830, 0.001953125
    %v1833 = vld [vmem:[%s8] sm:$0xff]
    %v1834 = vld [vmem:[%s8 + $0x8] sm:$0xff]
    %v1835 = vadd.f32 %v1831, 1e-05
    %v1836 = vadd.f32 %v1832, 1e-05
    %v1837 = vrsqrt.pop %v1835
    %v1838 = vrsqrt.pop %v1836
    %v1839 = vmul.f32 %v1833, %v1837
    %v1840 = vmul.f32 %v1834, %v1838
    %1842 = vset.pattern.permute.xlu0 0
    %1843 = vperm.xlu0 %1842, %v1839
    %v1844 = vpop.permute.xlu0 %1843
    %1847 = vset.pattern.permute.xlu0 0
    %1848 = vperm.xlu0 %1847, %v1840
    %v1849 = vpop.permute.xlu0 %1848
    %v1851 = vmul.f32 %v1805, %v1844
    %v1852 = vmul.f32 %v1806, %v1844
    %v1853 = vmul.f32 %v1807, %v1844
    %v1854 = vmul.f32 %v1808, %v1844
    %v1855 = vmul.f32 %v1809, %v1849
    %v1856 = vmul.f32 %v1810, %v1849
    %v1857 = vmul.f32 %v1811, %v1849
    %v1858 = vmul.f32 %v1812, %v1849
    %v1859 = vld [vmem:[%s9] sm:$0xff]
    %v1860 = vld [vmem:[%s9 + $0x8] sm:$0xff]
    %1862 = vset.pattern.permute.xlu0 0
    %1863 = vperm.xlu0 %1862, %v1859
    %v1864 = vpop.permute.xlu0 %1863
    %1867 = vset.pattern.permute.xlu0 0
    %1868 = vperm.xlu0 %1867, %v1860
    %v1869 = vpop.permute.xlu0 %1868
    %v1871 = vadd.f32 %v1851, %v1864
    %v1872 = vadd.f32 %v1852, %v1864
    %v1873 = vadd.f32 %v1853, %v1864
    %v1874 = vadd.f32 %v1854, %v1864
    %v1875 = vadd.f32 %v1855, %v1869
    %v1876 = vadd.f32 %v1856, %v1869
    %v1877 = vadd.f32 %v1857, %v1869
    %v1878 = vadd.f32 %v1858, %v1869
    %v1879 = vadd.f32 %v1871, %v898
    %v1880 = vadd.f32 %v1872, %v899
    %v1881 = vadd.f32 %v1873, %v900
    %v1882 = vadd.f32 %v1874, %v901
    %v1883 = vadd.f32 %v1875, %v902
    %v1884 = vadd.f32 %v1876, %v903
    %v1885 = vadd.f32 %v1877, %v904
    %v1886 = vadd.f32 %v1878, %v905
    %v1887 = vmax.f32 %v1879, 0.0
    %v1888 = vmax.f32 %v1880, 0.0
    %v1889 = vmax.f32 %v1881, 0.0
    %v1890 = vmax.f32 %v1882, 0.0
    %v1891 = vmax.f32 %v1883, 0.0
    %v1892 = vmax.f32 %v1884, 0.0
    %v1893 = vmax.f32 %v1885, 0.0
    %v1894 = vmax.f32 %v1886, 0.0
    %1895 = vrot.lane.b32.xlu0 %v1887, 17
    %v1896 = vpop.permute.xlu0 %1895
    %1897 = vrot.lane.b32.xlu0 %v1891, 17
    %v1898 = vpop.permute.xlu0 %1897
    %1899 = vrot.lane.b32.xlu0 %v1888, 17
    %v1900 = vpop.permute.xlu0 %1899
    %1901 = vrot.lane.b32.xlu0 %v1892, 17
    %v1902 = vpop.permute.xlu0 %1901
    %1903 = vrot.lane.b32.xlu0 %v1889, 17
    %v1904 = vpop.permute.xlu0 %1903
    %1905 = vrot.lane.b32.xlu0 %v1893, 17
    %v1906 = vpop.permute.xlu0 %1905
    %1907 = vrot.lane.b32.xlu0 %v1890, 17
    %v1908 = vpop.permute.xlu0 %1907
    %1909 = vrot.lane.b32.xlu0 %v1894, 17
    %v1910 = vpop.permute.xlu0 %1909
    %v1911 = vsel %vm212, %v1904, %v1908
    %v1912 = vsel %vm212, %v1906, %v1910
    %v1913 = vsel %vm212, %v1900, %v1904
    %v1914 = vsel %vm212, %v1902, %v1906
    %v1915 = vsel %vm212, %v1896, %v1900
    %v1916 = vsel %vm212, %v1898, %v1902
    %v1917 = vsel %vm212, %v1908, %v1896
    %v1918 = vsel %vm212, %v1910, %v1898
    %v1919 = vsel %vm221, %v1917, 0.0
    %v1920 = vsel %vm222, %v1915, 0.0
    %v1921 = vsel %vm223, %v1913, 0.0
    %v1922 = vsel %vm224, %v1911, 0.0
    %v1923 = vsel %vm221, %v1918, 0.0
    %v1924 = vsel %vm222, %v1916, 0.0
    %v1925 = vsel %vm223, %v1914, 0.0
    %v1926 = vsel %vm224, %v1912, 0.0
    %v1927 = vpack.c.bf16 %v1923, %v1919
    %v1928 = vpack.c.bf16 %v1924, %v1920
    %v1929 = vpack.c.bf16 %v1925, %v1921
    %v1930 = vpack.c.bf16 %v1926, %v1922
    %1931 = vrot.lane.b32.xlu0 %v1887, 16
    %v1932 = vpop.permute.xlu0 %1931
    %1933 = vrot.lane.b32.xlu0 %v1891, 16
    %v1934 = vpop.permute.xlu0 %1933
    %1935 = vrot.lane.b32.xlu0 %v1888, 16
    %v1936 = vpop.permute.xlu0 %1935
    %1937 = vrot.lane.b32.xlu0 %v1892, 16
    %v1938 = vpop.permute.xlu0 %1937
    %1939 = vrot.lane.b32.xlu0 %v1889, 16
    %v1940 = vpop.permute.xlu0 %1939
    %1941 = vrot.lane.b32.xlu0 %v1893, 16
    %v1942 = vpop.permute.xlu0 %1941
    %1943 = vrot.lane.b32.xlu0 %v1890, 16
    %v1944 = vpop.permute.xlu0 %1943
    %1945 = vrot.lane.b32.xlu0 %v1894, 16
    %v1946 = vpop.permute.xlu0 %1945
    %v1947 = vsel %vm241, %v1940, %v1944
    %v1948 = vsel %vm241, %v1942, %v1946
    %v1949 = vsel %vm241, %v1936, %v1940
    %v1950 = vsel %vm241, %v1938, %v1942
    %v1951 = vsel %vm241, %v1932, %v1936
    %v1952 = vsel %vm241, %v1934, %v1938
    %v1953 = vsel %vm241, %v1944, %v1932
    %v1954 = vsel %vm241, %v1946, %v1934
    %v1955 = vsel %vm250, %v1953, 0.0
    %v1956 = vsel %vm251, %v1951, 0.0
    %v1957 = vsel %vm252, %v1949, 0.0
    %v1958 = vsel %vm253, %v1947, 0.0
    %v1959 = vsel %vm250, %v1954, 0.0
    %v1960 = vsel %vm251, %v1952, 0.0
    %v1961 = vsel %vm252, %v1950, 0.0
    %v1962 = vsel %vm253, %v1948, 0.0
    %v1963 = vpack.c.bf16 %v1959, %v1955
    %v1964 = vpack.c.bf16 %v1960, %v1956
    %v1965 = vpack.c.bf16 %v1961, %v1957
    %v1966 = vpack.c.bf16 %v1962, %v1958
    %1967 = vrot.lane.b32.xlu0 %v1887, 15
    %v1968 = vpop.permute.xlu0 %1967
    %1969 = vrot.lane.b32.xlu0 %v1891, 15
    %v1970 = vpop.permute.xlu0 %1969
    %1971 = vrot.lane.b32.xlu0 %v1888, 15
    %v1972 = vpop.permute.xlu0 %1971
    %1973 = vrot.lane.b32.xlu0 %v1892, 15
    %v1974 = vpop.permute.xlu0 %1973
    %1975 = vrot.lane.b32.xlu0 %v1889, 15
    %v1976 = vpop.permute.xlu0 %1975
    %1977 = vrot.lane.b32.xlu0 %v1893, 15
    %v1978 = vpop.permute.xlu0 %1977
    %1979 = vrot.lane.b32.xlu0 %v1890, 15
    %v1980 = vpop.permute.xlu0 %1979
    %1981 = vrot.lane.b32.xlu0 %v1894, 15
    %v1982 = vpop.permute.xlu0 %1981
    %v1983 = vsel %vm270, %v1976, %v1980
    %v1984 = vsel %vm270, %v1978, %v1982
    %v1985 = vsel %vm270, %v1972, %v1976
    %v1986 = vsel %vm270, %v1974, %v1978
    %v1987 = vsel %vm270, %v1968, %v1972
    %v1988 = vsel %vm270, %v1970, %v1974
    %v1989 = vsel %vm270, %v1980, %v1968
    %v1990 = vsel %vm270, %v1982, %v1970
    %v1991 = vsel %vm279, %v1989, 0.0
    %v1992 = vsel %vm280, %v1987, 0.0
    %v1993 = vsel %vm281, %v1985, 0.0
    %v1994 = vsel %vm282, %v1983, 0.0
    %v1995 = vsel %vm279, %v1990, 0.0
    %v1996 = vsel %vm280, %v1988, 0.0
    %v1997 = vsel %vm281, %v1986, 0.0
    %v1998 = vsel %vm282, %v1984, 0.0
    %v1999 = vpack.c.bf16 %v1995, %v1991
    %v2000 = vpack.c.bf16 %v1996, %v1992
    %v2001 = vpack.c.bf16 %v1997, %v1993
    %v2002 = vpack.c.bf16 %v1998, %v1994
    %2003 = vrot.lane.b32.xlu0 %v1887, 1
    %v2004 = vpop.permute.xlu0 %2003
    %2005 = vrot.lane.b32.xlu0 %v1891, 1
    %v2006 = vpop.permute.xlu0 %2005
    %2007 = vrot.lane.b32.xlu0 %v1888, 1
    %v2008 = vpop.permute.xlu0 %2007
    %2009 = vrot.lane.b32.xlu0 %v1892, 1
    %v2010 = vpop.permute.xlu0 %2009
    %2011 = vrot.lane.b32.xlu0 %v1889, 1
    %v2012 = vpop.permute.xlu0 %2011
    %2013 = vrot.lane.b32.xlu0 %v1893, 1
    %v2014 = vpop.permute.xlu0 %2013
    %2015 = vrot.lane.b32.xlu0 %v1890, 1
    %v2016 = vpop.permute.xlu0 %2015
    %2017 = vrot.lane.b32.xlu0 %v1894, 1
    %v2018 = vpop.permute.xlu0 %2017
    %v2019 = vsel %vm299, %v2012, %v2016
    %v2020 = vsel %vm299, %v2014, %v2018
    %v2021 = vsel %vm299, %v2008, %v2012
    %v2022 = vsel %vm299, %v2010, %v2014
    %v2023 = vsel %vm299, %v2004, %v2008
    %v2024 = vsel %vm299, %v2006, %v2010
    %v2025 = vsel %vm299, %v2016, %v2004
    %v2026 = vsel %vm299, %v2018, %v2006
    %v2027 = vsel %vm308, %v2025, 0.0
    %v2028 = vsel %vm309, %v2023, 0.0
    %v2029 = vsel %vm310, %v2021, 0.0
    %v2030 = vsel %vm311, %v2019, 0.0
    %v2031 = vsel %vm308, %v2026, 0.0
    %v2032 = vsel %vm309, %v2024, 0.0
    %v2033 = vsel %vm310, %v2022, 0.0
    %v2034 = vsel %vm311, %v2020, 0.0
    %v2035 = vpack.c.bf16 %v2031, %v2027
    %v2036 = vpack.c.bf16 %v2032, %v2028
    %v2037 = vpack.c.bf16 %v2033, %v2029
    %v2038 = vpack.c.bf16 %v2034, %v2030
    %v2039 = vpack.c.bf16 %v1891, %v1887
    %v2040 = vpack.c.bf16 %v1892, %v1888
    %v2041 = vpack.c.bf16 %v1893, %v1889
    %v2042 = vpack.c.bf16 %v1894, %v1890
    %2043 = vrot.lane.b32.xlu0 %v1887, 127
    %v2044 = vpop.permute.xlu0 %2043
    %2045 = vrot.lane.b32.xlu0 %v1891, 127
    %v2046 = vpop.permute.xlu0 %2045
    %2047 = vrot.lane.b32.xlu0 %v1888, 127
    %v2048 = vpop.permute.xlu0 %2047
    %2049 = vrot.lane.b32.xlu0 %v1892, 127
    %v2050 = vpop.permute.xlu0 %2049
    %2051 = vrot.lane.b32.xlu0 %v1889, 127
    %v2052 = vpop.permute.xlu0 %2051
    %2053 = vrot.lane.b32.xlu0 %v1893, 127
    %v2054 = vpop.permute.xlu0 %2053
    %2055 = vrot.lane.b32.xlu0 %v1890, 127
    %v2056 = vpop.permute.xlu0 %2055
    %2057 = vrot.lane.b32.xlu0 %v1894, 127
    %v2058 = vpop.permute.xlu0 %2057
    %v2059 = vsel %vm332, %v2052, %v2056
    %v2060 = vsel %vm332, %v2054, %v2058
    %v2061 = vsel %vm332, %v2048, %v2052
    %v2062 = vsel %vm332, %v2050, %v2054
    %v2063 = vsel %vm332, %v2044, %v2048
    %v2064 = vsel %vm332, %v2046, %v2050
    %v2065 = vsel %vm332, %v2056, %v2044
    %v2066 = vsel %vm332, %v2058, %v2046
    %v2067 = vsel %vm341, %v2063, 0.0
    %v2068 = vsel %vm342, %v2061, 0.0
    %v2069 = vsel %vm343, %v2059, 0.0
    %v2070 = vsel %vm344, %v2065, 0.0
    %v2071 = vsel %vm341, %v2064, 0.0
    %v2072 = vsel %vm342, %v2062, 0.0
    %v2073 = vsel %vm343, %v2060, 0.0
    %v2074 = vsel %vm344, %v2066, 0.0
    %v2075 = vpack.c.bf16 %v2071, %v2067
    %v2076 = vpack.c.bf16 %v2072, %v2068
    %v2077 = vpack.c.bf16 %v2073, %v2069
    %v2078 = vpack.c.bf16 %v2074, %v2070
    %2079 = vrot.lane.b32.xlu0 %v1887, 113
    %v2080 = vpop.permute.xlu0 %2079
    %2081 = vrot.lane.b32.xlu0 %v1891, 113
    %v2082 = vpop.permute.xlu0 %2081
    %2083 = vrot.lane.b32.xlu0 %v1888, 113
    %v2084 = vpop.permute.xlu0 %2083
    %2085 = vrot.lane.b32.xlu0 %v1892, 113
    %v2086 = vpop.permute.xlu0 %2085
    %2087 = vrot.lane.b32.xlu0 %v1889, 113
    %v2088 = vpop.permute.xlu0 %2087
    %2089 = vrot.lane.b32.xlu0 %v1893, 113
    %v2090 = vpop.permute.xlu0 %2089
    %2091 = vrot.lane.b32.xlu0 %v1890, 113
    %v2092 = vpop.permute.xlu0 %2091
    %2093 = vrot.lane.b32.xlu0 %v1894, 113
    %v2094 = vpop.permute.xlu0 %2093
    %v2095 = vsel %vm361, %v2088, %v2092
    %v2096 = vsel %vm361, %v2090, %v2094
    %v2097 = vsel %vm361, %v2084, %v2088
    %v2098 = vsel %vm361, %v2086, %v2090
    %v2099 = vsel %vm361, %v2080, %v2084
    %v2100 = vsel %vm361, %v2082, %v2086
    %v2101 = vsel %vm361, %v2092, %v2080
    %v2102 = vsel %vm361, %v2094, %v2082
    %v2103 = vsel %vm370, %v2099, 0.0
    %v2104 = vsel %vm371, %v2097, 0.0
    %v2105 = vsel %vm372, %v2095, 0.0
    %v2106 = vsel %vm373, %v2101, 0.0
    %v2107 = vsel %vm370, %v2100, 0.0
    %v2108 = vsel %vm371, %v2098, 0.0
    %v2109 = vsel %vm372, %v2096, 0.0
    %v2110 = vsel %vm373, %v2102, 0.0
    %v2111 = vpack.c.bf16 %v2107, %v2103
    %v2112 = vpack.c.bf16 %v2108, %v2104
    %v2113 = vpack.c.bf16 %v2109, %v2105
    %v2114 = vpack.c.bf16 %v2110, %v2106
    %2115 = vrot.lane.b32.xlu0 %v1887, 112
    %v2116 = vpop.permute.xlu0 %2115
    %2117 = vrot.lane.b32.xlu0 %v1891, 112
    %v2118 = vpop.permute.xlu0 %2117
    %2119 = vrot.lane.b32.xlu0 %v1888, 112
    %v2120 = vpop.permute.xlu0 %2119
    %2121 = vrot.lane.b32.xlu0 %v1892, 112
    %v2122 = vpop.permute.xlu0 %2121
    %2123 = vrot.lane.b32.xlu0 %v1889, 112
    %v2124 = vpop.permute.xlu0 %2123
    %2125 = vrot.lane.b32.xlu0 %v1893, 112
    %v2126 = vpop.permute.xlu0 %2125
    %2127 = vrot.lane.b32.xlu0 %v1890, 112
    %v2128 = vpop.permute.xlu0 %2127
    %2129 = vrot.lane.b32.xlu0 %v1894, 112
    %v2130 = vpop.permute.xlu0 %2129
    %v2131 = vsel %vm390, %v2124, %v2128
    %v2132 = vsel %vm390, %v2126, %v2130
    %v2133 = vsel %vm390, %v2120, %v2124
    %v2134 = vsel %vm390, %v2122, %v2126
    %v2135 = vsel %vm390, %v2116, %v2120
    %v2136 = vsel %vm390, %v2118, %v2122
    %v2137 = vsel %vm390, %v2128, %v2116
    %v2138 = vsel %vm390, %v2130, %v2118
    %v2139 = vsel %vm399, %v2135, 0.0
    %v2140 = vsel %vm400, %v2133, 0.0
    %v2141 = vsel %vm401, %v2131, 0.0
    %v2142 = vsel %vm402, %v2137, 0.0
    %v2143 = vsel %vm399, %v2136, 0.0
    %v2144 = vsel %vm400, %v2134, 0.0
    %v2145 = vsel %vm401, %v2132, 0.0
    %v2146 = vsel %vm402, %v2138, 0.0
    %v2147 = vpack.c.bf16 %v2143, %v2139
    %v2148 = vpack.c.bf16 %v2144, %v2140
    %v2149 = vpack.c.bf16 %v2145, %v2141
    %v2150 = vpack.c.bf16 %v2146, %v2142
    %2151 = vrot.lane.b32.xlu0 %v1887, 111
    %v2152 = vpop.permute.xlu0 %2151
    %2153 = vrot.lane.b32.xlu0 %v1891, 111
    %v2154 = vpop.permute.xlu0 %2153
    %2155 = vrot.lane.b32.xlu0 %v1888, 111
    %v2156 = vpop.permute.xlu0 %2155
    %2157 = vrot.lane.b32.xlu0 %v1892, 111
    %v2158 = vpop.permute.xlu0 %2157
    %2159 = vrot.lane.b32.xlu0 %v1889, 111
    %v2160 = vpop.permute.xlu0 %2159
    %2161 = vrot.lane.b32.xlu0 %v1893, 111
    %v2162 = vpop.permute.xlu0 %2161
    %2163 = vrot.lane.b32.xlu0 %v1890, 111
    %v2164 = vpop.permute.xlu0 %2163
    %2165 = vrot.lane.b32.xlu0 %v1894, 111
    %v2166 = vpop.permute.xlu0 %2165
    %v2167 = vsel %vm419, %v2160, %v2164
    %v2168 = vsel %vm419, %v2162, %v2166
    %v2169 = vsel %vm419, %v2156, %v2160
    %v2170 = vsel %vm419, %v2158, %v2162
    %v2171 = vsel %vm419, %v2152, %v2156
    %v2172 = vsel %vm419, %v2154, %v2158
    %v2173 = vsel %vm419, %v2164, %v2152
    %v2174 = vsel %vm419, %v2166, %v2154
    %v2175 = vsel %vm428, %v2171, 0.0
    %v2176 = vsel %vm429, %v2169, 0.0
    %v2177 = vsel %vm430, %v2167, 0.0
    %v2178 = vsel %vm431, %v2173, 0.0
    %v2179 = vsel %vm428, %v2172, 0.0
    %v2180 = vsel %vm429, %v2170, 0.0
    %v2181 = vsel %vm430, %v2168, 0.0
    %v2182 = vsel %vm431, %v2174, 0.0
    %v2183 = vpack.c.bf16 %v2179, %v2175
    %v2184 = vpack.c.bf16 %v2180, %v2176
    %v2185 = vpack.c.bf16 %v2181, %v2177
    %v2186 = vpack.c.bf16 %v2182, %v2178
    %v2187 = vld [vmem:[%s10] sm:$0xff]
    %v2188 = vld [vmem:[%s10 + $0x8] sm:$0xff]
    %v2191 = vunpack.c.l.b16 %v2187
    %v2192 = vunpack.c.h.b16 %v2187
    %v2193 = vunpack.c.l.b16 %v2188
    %v2194 = vunpack.c.h.b16 %v2188
    %v2195 = vpack.c.b16 %v2193, %v2191
    %v2196 = vpack.c.b16 %v2194, %v2192
    %v2199 = vsel %vm1217, %v2196, 0
    %2201 = vmatprep.subr.bf16.mxu0 %v1928
    %2202 = vmatpush1.bf16.msra.mxu0 %v1927
    %2203 = vmatprep.subr.bf16.mxu0 %v1964
    %2204 = vmatpush1.bf16.msra.mxu0 %v1963
    %2205 = vmatprep.subr.bf16.mxu0 %v2000
    %2206 = vmatpush1.bf16.msra.mxu0 %v1999
    %2207 = vmatprep.subr.bf16.mxu0 %v2036
    %2208 = vmatpush1.bf16.msra.mxu0 %v2035
    %2209 = vmatprep.subr.bf16.mxu0 %v2040
    %2210 = vmatpush1.bf16.msra.mxu0 %v2039
    %2211 = vmatprep.subr.bf16.mxu0 %v2076
    %2212 = vmatpush1.bf16.msra.mxu0 %v2075
    %2213 = vmatprep.subr.bf16.mxu0 %v2112
    %2214 = vmatpush1.bf16.msra.mxu0 %v2111
    %2215 = vmatprep.subr.bf16.mxu0 %v2148
    %2216 = vmatpush1.bf16.msra.mxu0 %v2147
    %2217 = vmatprep.subr.bf16.mxu0 %v2184
    %2218 = vmatpush1.bf16.msra.mxu0 %v2183
    %2219 = vmatprep.subr.bf16.mxu0 0
    %2220 = vmatpush1.bf16.msra.mxu0 0
    %2221 = vmatprep.subr.bf16.mxu0 0
    %2222 = vmatpush1.bf16.msra.mxu0 0
    %2223 = vmatprep.subr.bf16.mxu0 0
    %2224 = vmatpush1.bf16.msra.mxu0 0
    %2225 = vmatprep.subr.bf16.mxu0 0
    %2226 = vmatpush1.bf16.msra.mxu0 0
    %2227 = vmatprep.subr.bf16.mxu0 0
    %2228 = vmatpush1.bf16.msra.mxu0 0
    %2229 = vmatprep.subr.bf16.mxu0 0
    %2230 = vmatpush1.bf16.msra.mxu0 0
    %2231 = vmatprep.subr.bf16.mxu0 0
    %2232 = vmatpush1.bf16.msra.mxu0 0
    %2233 = vmatprep.mubr.bf16.mxu0 %v2199
    %2234 = vmatmul.mubr.bf16.gmra.mrb[0].mxu0 %v2195
    %v2235 = vpop.f32.mrb[0].mxu0
    %v2236 = vadd.f32 0.0, %v2235
    %v2237 = vpop.f32.mrb[0].mxu0
    %v2238 = vadd.f32 0.0, %v2237
    %v2239 = vpop.f32.mrb[0].mxu0
    %v2240 = vadd.f32 0.0, %v2239
    %v2241 = vpop.f32.mrb[0].mxu0
    %v2242 = vadd.f32 0.0, %v2241
    %2243 = vdwg.mxu0
    %2244 = vmatprep.subr.bf16.mxu0 %v1930
    %2245 = vmatpush1.bf16.msra.mxu0 %v1929
    %2246 = vmatprep.subr.bf16.mxu0 %v1966
    %2247 = vmatpush1.bf16.msra.mxu0 %v1965
    %2248 = vmatprep.subr.bf16.mxu0 %v2002
    %2249 = vmatpush1.bf16.msra.mxu0 %v2001
    %2250 = vmatprep.subr.bf16.mxu0 %v2038
    %2251 = vmatpush1.bf16.msra.mxu0 %v2037
    %2252 = vmatprep.subr.bf16.mxu0 %v2042
    %2253 = vmatpush1.bf16.msra.mxu0 %v2041
    %2254 = vmatprep.subr.bf16.mxu0 %v2078
    %2255 = vmatpush1.bf16.msra.mxu0 %v2077
    %2256 = vmatprep.subr.bf16.mxu0 %v2114
    %2257 = vmatpush1.bf16.msra.mxu0 %v2113
    %2258 = vmatprep.subr.bf16.mxu0 %v2150
    %2259 = vmatpush1.bf16.msra.mxu0 %v2149
    %2260 = vmatprep.subr.bf16.mxu0 %v2186
    %2261 = vmatpush1.bf16.msra.mxu0 %v2185
    %2262 = vmatprep.subr.bf16.mxu0 0
    %2263 = vmatpush1.bf16.msra.mxu0 0
    %2264 = vmatprep.subr.bf16.mxu0 0
    %2265 = vmatpush1.bf16.msra.mxu0 0
    %2266 = vmatprep.subr.bf16.mxu0 0
    %2267 = vmatpush1.bf16.msra.mxu0 0
    %2268 = vmatprep.subr.bf16.mxu0 0
    %2269 = vmatpush1.bf16.msra.mxu0 0
    %2270 = vmatprep.subr.bf16.mxu0 0
    %2271 = vmatpush1.bf16.msra.mxu0 0
    %2272 = vmatprep.subr.bf16.mxu0 0
    %2273 = vmatpush1.bf16.msra.mxu0 0
    %2274 = vmatprep.subr.bf16.mxu0 0
    %2275 = vmatpush1.bf16.msra.mxu0 0
    %2276 = vmatprep.mubr.bf16.mxu0 %v2199
    %2277 = vmatmul.mubr.bf16.gmra.mrb[0].mxu0 %v2195
    %v2278 = vpop.f32.mrb[0].mxu0
    %v2279 = vadd.f32 0.0, %v2278
    %v2280 = vpop.f32.mrb[0].mxu0
    %v2281 = vadd.f32 0.0, %v2280
    %v2282 = vpop.f32.mrb[0].mxu0
    %v2283 = vadd.f32 0.0, %v2282
    %v2284 = vpop.f32.mrb[0].mxu0
    %v2285 = vadd.f32 0.0, %v2284
    %2286 = vdwg.mxu0
    %v2287 = vadd.f32 %v2236, %v2238
    %v2288 = vadd.f32 %v2287, %v2279
    %v2289 = vadd.f32 %v2288, %v2281
    %2290 = vadd.xlane.f32.xlu0 %v2289
    %v2291 = vpop.xlane.xlu0 %2290
    %v2292 = vadd.f32 %v2240, %v2242
    %v2293 = vadd.f32 %v2292, %v2283
    %v2294 = vadd.f32 %v2293, %v2285
    %2295 = vadd.xlane.f32.xlu0 %v2294
    %v2296 = vpop.xlane.xlu0 %2295
    %v2297 = vmul.f32 %v2291, 0.001953125
    %v2298 = vmul.f32 %v2296, 0.001953125
    %v2299 = vsub.f32 %v2236, %v2297
    %v2300 = vsub.f32 %v2238, %v2297
    %v2301 = vsub.f32 %v2279, %v2297
    %v2302 = vsub.f32 %v2281, %v2297
    %v2303 = vsub.f32 %v2240, %v2298
    %v2304 = vsub.f32 %v2242, %v2298
    %v2305 = vsub.f32 %v2283, %v2298
    %v2306 = vsub.f32 %v2285, %v2298
    %v2307 = vmul.f32 %v2299, %v2299
    %v2308 = vmul.f32 %v2300, %v2300
    %v2309 = vmul.f32 %v2301, %v2301
    %v2310 = vmul.f32 %v2302, %v2302
    %v2311 = vmul.f32 %v2303, %v2303
    %v2312 = vmul.f32 %v2304, %v2304
    %v2313 = vmul.f32 %v2305, %v2305
    %v2314 = vmul.f32 %v2306, %v2306
    %v2315 = vadd.f32 %v2307, %v2308
    %v2316 = vadd.f32 %v2315, %v2309
    %v2317 = vadd.f32 %v2316, %v2310
    %2318 = vadd.xlane.f32.xlu0 %v2317
    %v2319 = vpop.xlane.xlu0 %2318
    %v2320 = vadd.f32 %v2311, %v2312
    %v2321 = vadd.f32 %v2320, %v2313
    %v2322 = vadd.f32 %v2321, %v2314
    %2323 = vadd.xlane.f32.xlu0 %v2322
    %v2324 = vpop.xlane.xlu0 %2323
    %v2325 = vmul.f32 %v2319, 0.001953125
    %v2326 = vmul.f32 %v2324, 0.001953125
    %v2327 = vld [vmem:[%s11] sm:$0xff]
    %v2328 = vld [vmem:[%s11 + $0x8] sm:$0xff]
    %v2329 = vadd.f32 %v2325, 1e-05
    %v2330 = vadd.f32 %v2326, 1e-05
    %v2331 = vrsqrt.pop %v2329
    %v2332 = vrsqrt.pop %v2330
    %v2333 = vmul.f32 %v2327, %v2331
    %v2334 = vmul.f32 %v2328, %v2332
    %2336 = vset.pattern.permute.xlu0 0
    %2337 = vperm.xlu0 %2336, %v2333
    %v2338 = vpop.permute.xlu0 %2337
    %2341 = vset.pattern.permute.xlu0 0
    %2342 = vperm.xlu0 %2341, %v2334
    %v2343 = vpop.permute.xlu0 %2342
    %v2345 = vmul.f32 %v2299, %v2338
    %v2346 = vmul.f32 %v2300, %v2338
    %v2347 = vmul.f32 %v2301, %v2338
    %v2348 = vmul.f32 %v2302, %v2338
    %v2349 = vmul.f32 %v2303, %v2343
    %v2350 = vmul.f32 %v2304, %v2343
    %v2351 = vmul.f32 %v2305, %v2343
    %v2352 = vmul.f32 %v2306, %v2343
    %v2353 = vld [vmem:[%s12] sm:$0xff]
    %v2354 = vld [vmem:[%s12 + $0x8] sm:$0xff]
    %2356 = vset.pattern.permute.xlu0 0
    %2357 = vperm.xlu0 %2356, %v2353
    %v2358 = vpop.permute.xlu0 %2357
    %2361 = vset.pattern.permute.xlu0 0
    %2362 = vperm.xlu0 %2361, %v2354
    %v2363 = vpop.permute.xlu0 %2362
    %v2365 = vadd.f32 %v2345, %v2358
    %v2366 = vadd.f32 %v2346, %v2358
    %v2367 = vadd.f32 %v2347, %v2358
    %v2368 = vadd.f32 %v2348, %v2358
    %v2369 = vadd.f32 %v2349, %v2363
    %v2370 = vadd.f32 %v2350, %v2363
    %v2371 = vadd.f32 %v2351, %v2363
    %v2372 = vadd.f32 %v2352, %v2363
    %v2373 = vmax.f32 %v2365, 0.0
    %v2374 = vmax.f32 %v2366, 0.0
    %v2375 = vmax.f32 %v2367, 0.0
    %v2376 = vmax.f32 %v2368, 0.0
    %v2377 = vmax.f32 %v2369, 0.0
    %v2378 = vmax.f32 %v2370, 0.0
    %v2379 = vmax.f32 %v2371, 0.0
    %v2380 = vmax.f32 %v2372, 0.0
    %2381 = vrot.lane.b32.xlu0 %v2373, 17
    %v2382 = vpop.permute.xlu0 %2381
    %2383 = vrot.lane.b32.xlu0 %v2377, 17
    %v2384 = vpop.permute.xlu0 %2383
    %2385 = vrot.lane.b32.xlu0 %v2374, 17
    %v2386 = vpop.permute.xlu0 %2385
    %2387 = vrot.lane.b32.xlu0 %v2378, 17
    %v2388 = vpop.permute.xlu0 %2387
    %2389 = vrot.lane.b32.xlu0 %v2375, 17
    %v2390 = vpop.permute.xlu0 %2389
    %2391 = vrot.lane.b32.xlu0 %v2379, 17
    %v2392 = vpop.permute.xlu0 %2391
    %2393 = vrot.lane.b32.xlu0 %v2376, 17
    %v2394 = vpop.permute.xlu0 %2393
    %2395 = vrot.lane.b32.xlu0 %v2380, 17
    %v2396 = vpop.permute.xlu0 %2395
    %v2397 = vsel %vm212, %v2390, %v2394
    %v2398 = vsel %vm212, %v2392, %v2396
    %v2399 = vsel %vm212, %v2386, %v2390
    %v2400 = vsel %vm212, %v2388, %v2392
    %v2401 = vsel %vm212, %v2382, %v2386
    %v2402 = vsel %vm212, %v2384, %v2388
    %v2403 = vsel %vm212, %v2394, %v2382
    %v2404 = vsel %vm212, %v2396, %v2384
    %v2405 = vsel %vm221, %v2403, 0.0
    %v2406 = vsel %vm222, %v2401, 0.0
    %v2407 = vsel %vm223, %v2399, 0.0
    %v2408 = vsel %vm224, %v2397, 0.0
    %v2409 = vsel %vm221, %v2404, 0.0
    %v2410 = vsel %vm222, %v2402, 0.0
    %v2411 = vsel %vm223, %v2400, 0.0
    %v2412 = vsel %vm224, %v2398, 0.0
    %v2413 = vpack.c.bf16 %v2409, %v2405
    %v2414 = vpack.c.bf16 %v2410, %v2406
    %v2415 = vpack.c.bf16 %v2411, %v2407
    %v2416 = vpack.c.bf16 %v2412, %v2408
    %2417 = vrot.lane.b32.xlu0 %v2373, 16
    %v2418 = vpop.permute.xlu0 %2417
    %2419 = vrot.lane.b32.xlu0 %v2377, 16
    %v2420 = vpop.permute.xlu0 %2419
    %2421 = vrot.lane.b32.xlu0 %v2374, 16
    %v2422 = vpop.permute.xlu0 %2421
    %2423 = vrot.lane.b32.xlu0 %v2378, 16
    %v2424 = vpop.permute.xlu0 %2423
    %2425 = vrot.lane.b32.xlu0 %v2375, 16
    %v2426 = vpop.permute.xlu0 %2425
    %2427 = vrot.lane.b32.xlu0 %v2379, 16
    %v2428 = vpop.permute.xlu0 %2427
    %2429 = vrot.lane.b32.xlu0 %v2376, 16
    %v2430 = vpop.permute.xlu0 %2429
    %2431 = vrot.lane.b32.xlu0 %v2380, 16
    %v2432 = vpop.permute.xlu0 %2431
    %v2433 = vsel %vm241, %v2426, %v2430
    %v2434 = vsel %vm241, %v2428, %v2432
    %v2435 = vsel %vm241, %v2422, %v2426
    %v2436 = vsel %vm241, %v2424, %v2428
    %v2437 = vsel %vm241, %v2418, %v2422
    %v2438 = vsel %vm241, %v2420, %v2424
    %v2439 = vsel %vm241, %v2430, %v2418
    %v2440 = vsel %vm241, %v2432, %v2420
    %v2441 = vsel %vm250, %v2439, 0.0
    %v2442 = vsel %vm251, %v2437, 0.0
    %v2443 = vsel %vm252, %v2435, 0.0
    %v2444 = vsel %vm253, %v2433, 0.0
    %v2445 = vsel %vm250, %v2440, 0.0
    %v2446 = vsel %vm251, %v2438, 0.0
    %v2447 = vsel %vm252, %v2436, 0.0
    %v2448 = vsel %vm253, %v2434, 0.0
    %v2449 = vpack.c.bf16 %v2445, %v2441
    %v2450 = vpack.c.bf16 %v2446, %v2442
    %v2451 = vpack.c.bf16 %v2447, %v2443
    %v2452 = vpack.c.bf16 %v2448, %v2444
    %2453 = vrot.lane.b32.xlu0 %v2373, 15
    %v2454 = vpop.permute.xlu0 %2453
    %2455 = vrot.lane.b32.xlu0 %v2377, 15
    %v2456 = vpop.permute.xlu0 %2455
    %2457 = vrot.lane.b32.xlu0 %v2374, 15
    %v2458 = vpop.permute.xlu0 %2457
    %2459 = vrot.lane.b32.xlu0 %v2378, 15
    %v2460 = vpop.permute.xlu0 %2459
    %2461 = vrot.lane.b32.xlu0 %v2375, 15
    %v2462 = vpop.permute.xlu0 %2461
    %2463 = vrot.lane.b32.xlu0 %v2379, 15
    %v2464 = vpop.permute.xlu0 %2463
    %2465 = vrot.lane.b32.xlu0 %v2376, 15
    %v2466 = vpop.permute.xlu0 %2465
    %2467 = vrot.lane.b32.xlu0 %v2380, 15
    %v2468 = vpop.permute.xlu0 %2467
    %v2469 = vsel %vm270, %v2462, %v2466
    %v2470 = vsel %vm270, %v2464, %v2468
    %v2471 = vsel %vm270, %v2458, %v2462
    %v2472 = vsel %vm270, %v2460, %v2464
    %v2473 = vsel %vm270, %v2454, %v2458
    %v2474 = vsel %vm270, %v2456, %v2460
    %v2475 = vsel %vm270, %v2466, %v2454
    %v2476 = vsel %vm270, %v2468, %v2456
    %v2477 = vsel %vm279, %v2475, 0.0
    %v2478 = vsel %vm280, %v2473, 0.0
    %v2479 = vsel %vm281, %v2471, 0.0
    %v2480 = vsel %vm282, %v2469, 0.0
    %v2481 = vsel %vm279, %v2476, 0.0
    %v2482 = vsel %vm280, %v2474, 0.0
    %v2483 = vsel %vm281, %v2472, 0.0
    %v2484 = vsel %vm282, %v2470, 0.0
    %v2485 = vpack.c.bf16 %v2481, %v2477
    %v2486 = vpack.c.bf16 %v2482, %v2478
    %v2487 = vpack.c.bf16 %v2483, %v2479
    %v2488 = vpack.c.bf16 %v2484, %v2480
    %2489 = vrot.lane.b32.xlu0 %v2373, 1
    %v2490 = vpop.permute.xlu0 %2489
    %2491 = vrot.lane.b32.xlu0 %v2377, 1
    %v2492 = vpop.permute.xlu0 %2491
    %2493 = vrot.lane.b32.xlu0 %v2374, 1
    %v2494 = vpop.permute.xlu0 %2493
    %2495 = vrot.lane.b32.xlu0 %v2378, 1
    %v2496 = vpop.permute.xlu0 %2495
    %2497 = vrot.lane.b32.xlu0 %v2375, 1
    %v2498 = vpop.permute.xlu0 %2497
    %2499 = vrot.lane.b32.xlu0 %v2379, 1
    %v2500 = vpop.permute.xlu0 %2499
    %2501 = vrot.lane.b32.xlu0 %v2376, 1
    %v2502 = vpop.permute.xlu0 %2501
    %2503 = vrot.lane.b32.xlu0 %v2380, 1
    %v2504 = vpop.permute.xlu0 %2503
    %v2505 = vsel %vm299, %v2498, %v2502
    %v2506 = vsel %vm299, %v2500, %v2504
    %v2507 = vsel %vm299, %v2494, %v2498
    %v2508 = vsel %vm299, %v2496, %v2500
    %v2509 = vsel %vm299, %v2490, %v2494
    %v2510 = vsel %vm299, %v2492, %v2496
    %v2511 = vsel %vm299, %v2502, %v2490
    %v2512 = vsel %vm299, %v2504, %v2492
    %v2513 = vsel %vm308, %v2511, 0.0
    %v2514 = vsel %vm309, %v2509, 0.0
    %v2515 = vsel %vm310, %v2507, 0.0
    %v2516 = vsel %vm311, %v2505, 0.0
    %v2517 = vsel %vm308, %v2512, 0.0
    %v2518 = vsel %vm309, %v2510, 0.0
    %v2519 = vsel %vm310, %v2508, 0.0
    %v2520 = vsel %vm311, %v2506, 0.0
    %v2521 = vpack.c.bf16 %v2517, %v2513
    %v2522 = vpack.c.bf16 %v2518, %v2514
    %v2523 = vpack.c.bf16 %v2519, %v2515
    %v2524 = vpack.c.bf16 %v2520, %v2516
    %v2525 = vpack.c.bf16 %v2377, %v2373
    %v2526 = vpack.c.bf16 %v2378, %v2374
    %v2527 = vpack.c.bf16 %v2379, %v2375
    %v2528 = vpack.c.bf16 %v2380, %v2376
    %2529 = vrot.lane.b32.xlu0 %v2373, 127
    %v2530 = vpop.permute.xlu0 %2529
    %2531 = vrot.lane.b32.xlu0 %v2377, 127
    %v2532 = vpop.permute.xlu0 %2531
    %2533 = vrot.lane.b32.xlu0 %v2374, 127
    %v2534 = vpop.permute.xlu0 %2533
    %2535 = vrot.lane.b32.xlu0 %v2378, 127
    %v2536 = vpop.permute.xlu0 %2535
    %2537 = vrot.lane.b32.xlu0 %v2375, 127
    %v2538 = vpop.permute.xlu0 %2537
    %2539 = vrot.lane.b32.xlu0 %v2379, 127
    %v2540 = vpop.permute.xlu0 %2539
    %2541 = vrot.lane.b32.xlu0 %v2376, 127
    %v2542 = vpop.permute.xlu0 %2541
    %2543 = vrot.lane.b32.xlu0 %v2380, 127
    %v2544 = vpop.permute.xlu0 %2543
    %v2545 = vsel %vm332, %v2538, %v2542
    %v2546 = vsel %vm332, %v2540, %v2544
    %v2547 = vsel %vm332, %v2534, %v2538
    %v2548 = vsel %vm332, %v2536, %v2540
    %v2549 = vsel %vm332, %v2530, %v2534
    %v2550 = vsel %vm332, %v2532, %v2536
    %v2551 = vsel %vm332, %v2542, %v2530
    %v2552 = vsel %vm332, %v2544, %v2532
    %v2553 = vsel %vm341, %v2549, 0.0
    %v2554 = vsel %vm342, %v2547, 0.0
    %v2555 = vsel %vm343, %v2545, 0.0
    %v2556 = vsel %vm344, %v2551, 0.0
    %v2557 = vsel %vm341, %v2550, 0.0
    %v2558 = vsel %vm342, %v2548, 0.0
    %v2559 = vsel %vm343, %v2546, 0.0
    %v2560 = vsel %vm344, %v2552, 0.0
    %v2561 = vpack.c.bf16 %v2557, %v2553
    %v2562 = vpack.c.bf16 %v2558, %v2554
    %v2563 = vpack.c.bf16 %v2559, %v2555
    %v2564 = vpack.c.bf16 %v2560, %v2556
    %2565 = vrot.lane.b32.xlu0 %v2373, 113
    %v2566 = vpop.permute.xlu0 %2565
    %2567 = vrot.lane.b32.xlu0 %v2377, 113
    %v2568 = vpop.permute.xlu0 %2567
    %2569 = vrot.lane.b32.xlu0 %v2374, 113
    %v2570 = vpop.permute.xlu0 %2569
    %2571 = vrot.lane.b32.xlu0 %v2378, 113
    %v2572 = vpop.permute.xlu0 %2571
    %2573 = vrot.lane.b32.xlu0 %v2375, 113
    %v2574 = vpop.permute.xlu0 %2573
    %2575 = vrot.lane.b32.xlu0 %v2379, 113
    %v2576 = vpop.permute.xlu0 %2575
    %2577 = vrot.lane.b32.xlu0 %v2376, 113
    %v2578 = vpop.permute.xlu0 %2577
    %2579 = vrot.lane.b32.xlu0 %v2380, 113
    %v2580 = vpop.permute.xlu0 %2579
    %v2581 = vsel %vm361, %v2574, %v2578
    %v2582 = vsel %vm361, %v2576, %v2580
    %v2583 = vsel %vm361, %v2570, %v2574
    %v2584 = vsel %vm361, %v2572, %v2576
    %v2585 = vsel %vm361, %v2566, %v2570
    %v2586 = vsel %vm361, %v2568, %v2572
    %v2587 = vsel %vm361, %v2578, %v2566
    %v2588 = vsel %vm361, %v2580, %v2568
    %v2589 = vsel %vm370, %v2585, 0.0
    %v2590 = vsel %vm371, %v2583, 0.0
    %v2591 = vsel %vm372, %v2581, 0.0
    %v2592 = vsel %vm373, %v2587, 0.0
    %v2593 = vsel %vm370, %v2586, 0.0
    %v2594 = vsel %vm371, %v2584, 0.0
    %v2595 = vsel %vm372, %v2582, 0.0
    %v2596 = vsel %vm373, %v2588, 0.0
    %v2597 = vpack.c.bf16 %v2593, %v2589
    %v2598 = vpack.c.bf16 %v2594, %v2590
    %v2599 = vpack.c.bf16 %v2595, %v2591
    %v2600 = vpack.c.bf16 %v2596, %v2592
    %2601 = vrot.lane.b32.xlu0 %v2373, 112
    %v2602 = vpop.permute.xlu0 %2601
    %2603 = vrot.lane.b32.xlu0 %v2377, 112
    %v2604 = vpop.permute.xlu0 %2603
    %2605 = vrot.lane.b32.xlu0 %v2374, 112
    %v2606 = vpop.permute.xlu0 %2605
    %2607 = vrot.lane.b32.xlu0 %v2378, 112
    %v2608 = vpop.permute.xlu0 %2607
    %2609 = vrot.lane.b32.xlu0 %v2375, 112
    %v2610 = vpop.permute.xlu0 %2609
    %2611 = vrot.lane.b32.xlu0 %v2379, 112
    %v2612 = vpop.permute.xlu0 %2611
    %2613 = vrot.lane.b32.xlu0 %v2376, 112
    %v2614 = vpop.permute.xlu0 %2613
    %2615 = vrot.lane.b32.xlu0 %v2380, 112
    %v2616 = vpop.permute.xlu0 %2615
    %v2617 = vsel %vm390, %v2610, %v2614
    %v2618 = vsel %vm390, %v2612, %v2616
    %v2619 = vsel %vm390, %v2606, %v2610
    %v2620 = vsel %vm390, %v2608, %v2612
    %v2621 = vsel %vm390, %v2602, %v2606
    %v2622 = vsel %vm390, %v2604, %v2608
    %v2623 = vsel %vm390, %v2614, %v2602
    %v2624 = vsel %vm390, %v2616, %v2604
    %v2625 = vsel %vm399, %v2621, 0.0
    %v2626 = vsel %vm400, %v2619, 0.0
    %v2627 = vsel %vm401, %v2617, 0.0
    %v2628 = vsel %vm402, %v2623, 0.0
    %v2629 = vsel %vm399, %v2622, 0.0
    %v2630 = vsel %vm400, %v2620, 0.0
    %v2631 = vsel %vm401, %v2618, 0.0
    %v2632 = vsel %vm402, %v2624, 0.0
    %v2633 = vpack.c.bf16 %v2629, %v2625
    %v2634 = vpack.c.bf16 %v2630, %v2626
    %v2635 = vpack.c.bf16 %v2631, %v2627
    %v2636 = vpack.c.bf16 %v2632, %v2628
    %2637 = vrot.lane.b32.xlu0 %v2373, 111
    %v2638 = vpop.permute.xlu0 %2637
    %2639 = vrot.lane.b32.xlu0 %v2377, 111
    %v2640 = vpop.permute.xlu0 %2639
    %2641 = vrot.lane.b32.xlu0 %v2374, 111
    %v2642 = vpop.permute.xlu0 %2641
    %2643 = vrot.lane.b32.xlu0 %v2378, 111
    %v2644 = vpop.permute.xlu0 %2643
    %2645 = vrot.lane.b32.xlu0 %v2375, 111
    %v2646 = vpop.permute.xlu0 %2645
    %2647 = vrot.lane.b32.xlu0 %v2379, 111
    %v2648 = vpop.permute.xlu0 %2647
    %2649 = vrot.lane.b32.xlu0 %v2376, 111
    %v2650 = vpop.permute.xlu0 %2649
    %2651 = vrot.lane.b32.xlu0 %v2380, 111
    %v2652 = vpop.permute.xlu0 %2651
    %v2653 = vsel %vm419, %v2646, %v2650
    %v2654 = vsel %vm419, %v2648, %v2652
    %v2655 = vsel %vm419, %v2642, %v2646
    %v2656 = vsel %vm419, %v2644, %v2648
    %v2657 = vsel %vm419, %v2638, %v2642
    %v2658 = vsel %vm419, %v2640, %v2644
    %v2659 = vsel %vm419, %v2650, %v2638
    %v2660 = vsel %vm419, %v2652, %v2640
    %v2661 = vsel %vm428, %v2657, 0.0
    %v2662 = vsel %vm429, %v2655, 0.0
    %v2663 = vsel %vm430, %v2653, 0.0
    %v2664 = vsel %vm431, %v2659, 0.0
    %v2665 = vsel %vm428, %v2658, 0.0
    %v2666 = vsel %vm429, %v2656, 0.0
    %v2667 = vsel %vm430, %v2654, 0.0
    %v2668 = vsel %vm431, %v2660, 0.0
    %v2669 = vpack.c.bf16 %v2665, %v2661
    %v2670 = vpack.c.bf16 %v2666, %v2662
    %v2671 = vpack.c.bf16 %v2667, %v2663
    %v2672 = vpack.c.bf16 %v2668, %v2664
    %v2673 = vld [vmem:[%s13] sm:$0xff]
    %v2674 = vld [vmem:[%s13 + $0x8] sm:$0xff]
    %v2677 = vunpack.c.l.b16 %v2673
    %v2678 = vunpack.c.h.b16 %v2673
    %v2679 = vunpack.c.l.b16 %v2674
    %v2680 = vunpack.c.h.b16 %v2674
    %v2681 = vpack.c.b16 %v2679, %v2677
    %v2682 = vpack.c.b16 %v2680, %v2678
    %v2685 = vsel %vm1217, %v2682, 0
    %2687 = vmatprep.subr.bf16.mxu0 %v2414
    %2688 = vmatpush1.bf16.msra.mxu0 %v2413
    %2689 = vmatprep.subr.bf16.mxu0 %v2450
    %2690 = vmatpush1.bf16.msra.mxu0 %v2449
    %2691 = vmatprep.subr.bf16.mxu0 %v2486
    %2692 = vmatpush1.bf16.msra.mxu0 %v2485
    %2693 = vmatprep.subr.bf16.mxu0 %v2522
    %2694 = vmatpush1.bf16.msra.mxu0 %v2521
    %2695 = vmatprep.subr.bf16.mxu0 %v2526
    %2696 = vmatpush1.bf16.msra.mxu0 %v2525
    %2697 = vmatprep.subr.bf16.mxu0 %v2562
    %2698 = vmatpush1.bf16.msra.mxu0 %v2561
    %2699 = vmatprep.subr.bf16.mxu0 %v2598
    %2700 = vmatpush1.bf16.msra.mxu0 %v2597
    %2701 = vmatprep.subr.bf16.mxu0 %v2634
    %2702 = vmatpush1.bf16.msra.mxu0 %v2633
    %2703 = vmatprep.subr.bf16.mxu0 %v2670
    %2704 = vmatpush1.bf16.msra.mxu0 %v2669
    %2705 = vmatprep.subr.bf16.mxu0 0
    %2706 = vmatpush1.bf16.msra.mxu0 0
    %2707 = vmatprep.subr.bf16.mxu0 0
    %2708 = vmatpush1.bf16.msra.mxu0 0
    %2709 = vmatprep.subr.bf16.mxu0 0
    %2710 = vmatpush1.bf16.msra.mxu0 0
    %2711 = vmatprep.subr.bf16.mxu0 0
    %2712 = vmatpush1.bf16.msra.mxu0 0
    %2713 = vmatprep.subr.bf16.mxu0 0
    %2714 = vmatpush1.bf16.msra.mxu0 0
    %2715 = vmatprep.subr.bf16.mxu0 0
    %2716 = vmatpush1.bf16.msra.mxu0 0
    %2717 = vmatprep.subr.bf16.mxu0 0
    %2718 = vmatpush1.bf16.msra.mxu0 0
    %2719 = vmatprep.mubr.bf16.mxu0 %v2685
    %2720 = vmatmul.mubr.bf16.gmra.mrb[0].mxu0 %v2681
    %v2721 = vpop.f32.mrb[0].mxu0
    %v2722 = vadd.f32 0.0, %v2721
    %v2723 = vpop.f32.mrb[0].mxu0
    %v2724 = vadd.f32 0.0, %v2723
    %v2725 = vpop.f32.mrb[0].mxu0
    %v2726 = vadd.f32 0.0, %v2725
    %v2727 = vpop.f32.mrb[0].mxu0
    %v2728 = vadd.f32 0.0, %v2727
    %2729 = vdwg.mxu0
    %2730 = vmatprep.subr.bf16.mxu0 %v2416
    %2731 = vmatpush1.bf16.msra.mxu0 %v2415
    %2732 = vmatprep.subr.bf16.mxu0 %v2452
    %2733 = vmatpush1.bf16.msra.mxu0 %v2451
    %2734 = vmatprep.subr.bf16.mxu0 %v2488
    %2735 = vmatpush1.bf16.msra.mxu0 %v2487
    %2736 = vmatprep.subr.bf16.mxu0 %v2524
    %2737 = vmatpush1.bf16.msra.mxu0 %v2523
    %2738 = vmatprep.subr.bf16.mxu0 %v2528
    %2739 = vmatpush1.bf16.msra.mxu0 %v2527
    %2740 = vmatprep.subr.bf16.mxu0 %v2564
    %2741 = vmatpush1.bf16.msra.mxu0 %v2563
    %2742 = vmatprep.subr.bf16.mxu0 %v2600
    %2743 = vmatpush1.bf16.msra.mxu0 %v2599
    %2744 = vmatprep.subr.bf16.mxu0 %v2636
    %2745 = vmatpush1.bf16.msra.mxu0 %v2635
    %2746 = vmatprep.subr.bf16.mxu0 %v2672
    %2747 = vmatpush1.bf16.msra.mxu0 %v2671
    %2748 = vmatprep.subr.bf16.mxu0 0
    %2749 = vmatpush1.bf16.msra.mxu0 0
    %2750 = vmatprep.subr.bf16.mxu0 0
    %2751 = vmatpush1.bf16.msra.mxu0 0
    %2752 = vmatprep.subr.bf16.mxu0 0
    %2753 = vmatpush1.bf16.msra.mxu0 0
    %2754 = vmatprep.subr.bf16.mxu0 0
    %2755 = vmatpush1.bf16.msra.mxu0 0
    %2756 = vmatprep.subr.bf16.mxu0 0
    %2757 = vmatpush1.bf16.msra.mxu0 0
    %2758 = vmatprep.subr.bf16.mxu0 0
    %2759 = vmatpush1.bf16.msra.mxu0 0
    %2760 = vmatprep.subr.bf16.mxu0 0
    %2761 = vmatpush1.bf16.msra.mxu0 0
    %2762 = vmatprep.mubr.bf16.mxu0 %v2685
    %2763 = vmatmul.mubr.bf16.gmra.mrb[0].mxu0 %v2681
    %v2764 = vpop.f32.mrb[0].mxu0
    %v2765 = vadd.f32 0.0, %v2764
    %v2766 = vpop.f32.mrb[0].mxu0
    %v2767 = vadd.f32 0.0, %v2766
    %v2768 = vpop.f32.mrb[0].mxu0
    %v2769 = vadd.f32 0.0, %v2768
    %v2770 = vpop.f32.mrb[0].mxu0
    %v2771 = vadd.f32 0.0, %v2770
    %2772 = vdwg.mxu0
    %v2773 = vadd.f32 %v2722, %v2724
    %v2774 = vadd.f32 %v2773, %v2765
    %v2775 = vadd.f32 %v2774, %v2767
    %2776 = vadd.xlane.f32.xlu0 %v2775
    %v2777 = vpop.xlane.xlu0 %2776
    %v2778 = vadd.f32 %v2726, %v2728
    %v2779 = vadd.f32 %v2778, %v2769
    %v2780 = vadd.f32 %v2779, %v2771
    %2781 = vadd.xlane.f32.xlu0 %v2780
    %v2782 = vpop.xlane.xlu0 %2781
    %v2783 = vmul.f32 %v2777, 0.001953125
    %v2784 = vmul.f32 %v2782, 0.001953125
    %v2785 = vsub.f32 %v2722, %v2783
    %v2786 = vsub.f32 %v2724, %v2783
    %v2787 = vsub.f32 %v2765, %v2783
    %v2788 = vsub.f32 %v2767, %v2783
    %v2789 = vsub.f32 %v2726, %v2784
    %v2790 = vsub.f32 %v2728, %v2784
    %v2791 = vsub.f32 %v2769, %v2784
    %v2792 = vsub.f32 %v2771, %v2784
    %v2793 = vmul.f32 %v2785, %v2785
    %v2794 = vmul.f32 %v2786, %v2786
    %v2795 = vmul.f32 %v2787, %v2787
    %v2796 = vmul.f32 %v2788, %v2788
    %v2797 = vmul.f32 %v2789, %v2789
    %v2798 = vmul.f32 %v2790, %v2790
    %v2799 = vmul.f32 %v2791, %v2791
    %v2800 = vmul.f32 %v2792, %v2792
    %v2801 = vadd.f32 %v2793, %v2794
    %v2802 = vadd.f32 %v2801, %v2795
    %v2803 = vadd.f32 %v2802, %v2796
    %2804 = vadd.xlane.f32.xlu0 %v2803
    %v2805 = vpop.xlane.xlu0 %2804
    %v2806 = vadd.f32 %v2797, %v2798
    %v2807 = vadd.f32 %v2806, %v2799
    %v2808 = vadd.f32 %v2807, %v2800
    %2809 = vadd.xlane.f32.xlu0 %v2808
    %v2810 = vpop.xlane.xlu0 %2809
    %v2811 = vmul.f32 %v2805, 0.001953125
    %v2812 = vmul.f32 %v2810, 0.001953125
    %v2813 = vld [vmem:[%s14] sm:$0xff]
    %v2814 = vld [vmem:[%s14 + $0x8] sm:$0xff]
    %v2815 = vadd.f32 %v2811, 1e-05
    %v2816 = vadd.f32 %v2812, 1e-05
    %v2817 = vrsqrt.pop %v2815
    %v2818 = vrsqrt.pop %v2816
    %v2819 = vmul.f32 %v2813, %v2817
    %v2820 = vmul.f32 %v2814, %v2818
    %2822 = vset.pattern.permute.xlu0 0
    %2823 = vperm.xlu0 %2822, %v2819
    %v2824 = vpop.permute.xlu0 %2823
    %2827 = vset.pattern.permute.xlu0 0
    %2828 = vperm.xlu0 %2827, %v2820
    %v2829 = vpop.permute.xlu0 %2828
    %v2831 = vmul.f32 %v2785, %v2824
    %v2832 = vmul.f32 %v2786, %v2824
    %v2833 = vmul.f32 %v2787, %v2824
    %v2834 = vmul.f32 %v2788, %v2824
    %v2835 = vmul.f32 %v2789, %v2829
    %v2836 = vmul.f32 %v2790, %v2829
    %v2837 = vmul.f32 %v2791, %v2829
    %v2838 = vmul.f32 %v2792, %v2829
    %v2839 = vld [vmem:[%s15] sm:$0xff]
    %v2840 = vld [vmem:[%s15 + $0x8] sm:$0xff]
    %2842 = vset.pattern.permute.xlu0 0
    %2843 = vperm.xlu0 %2842, %v2839
    %v2844 = vpop.permute.xlu0 %2843
    %2847 = vset.pattern.permute.xlu0 0
    %2848 = vperm.xlu0 %2847, %v2840
    %v2849 = vpop.permute.xlu0 %2848
    %v2851 = vadd.f32 %v2831, %v2844
    %v2852 = vadd.f32 %v2832, %v2844
    %v2853 = vadd.f32 %v2833, %v2844
    %v2854 = vadd.f32 %v2834, %v2844
    %v2855 = vadd.f32 %v2835, %v2849
    %v2856 = vadd.f32 %v2836, %v2849
    %v2857 = vadd.f32 %v2837, %v2849
    %v2858 = vadd.f32 %v2838, %v2849
    %v2859 = vadd.f32 %v2851, %v1887
    %v2860 = vadd.f32 %v2852, %v1888
    %v2861 = vadd.f32 %v2853, %v1889
    %v2862 = vadd.f32 %v2854, %v1890
    %v2863 = vadd.f32 %v2855, %v1891
    %v2864 = vadd.f32 %v2856, %v1892
    %v2865 = vadd.f32 %v2857, %v1893
    %v2866 = vadd.f32 %v2858, %v1894
    %v2867 = vmax.f32 %v2859, 0.0
    %v2868 = vmax.f32 %v2860, 0.0
    %v2869 = vmax.f32 %v2861, 0.0
    %v2870 = vmax.f32 %v2862, 0.0
    %v2871 = vmax.f32 %v2863, 0.0
    %v2872 = vmax.f32 %v2864, 0.0
    %v2873 = vmax.f32 %v2865, 0.0
    %v2874 = vmax.f32 %v2866, 0.0
    %v2875 = vadd.f32 %v2867, %v2868
    %2876 = vadd.xlane.f32.xlu0 %v2875
    %v2877 = vpop.xlane.xlu0 %2876
    %v2878 = vadd.f32 %v2871, %v2872
    %2879 = vadd.xlane.f32.xlu0 %v2878
    %v2880 = vpop.xlane.xlu0 %2879
    %v2881 = vadd.f32 %v2869, %v2870
    %2882 = vadd.xlane.f32.xlu0 %v2881
    %v2883 = vpop.xlane.xlu0 %2882
    %v2884 = vadd.f32 %v2873, %v2874
    %2885 = vadd.xlane.f32.xlu0 %v2884
    %v2886 = vpop.xlane.xlu0 %2885
    %vm2887 = vcmask 7168
    %v2888 = vsel %vm2887, %v2877, %v2883
    %v2889 = vsel %vm2887, %v2880, %v2886
    %v2890 = vmul.f32 %v2888, 0.00390625
    %v2891 = vmul.f32 %v2889, 0.00390625
    %v2892 = vpack.c.bf16 %v2891, %v2890
    %v2893 = vld [vmem:[%s16] sm:$0xf]
    %v2894 = vld [vmem:[%s16 + $0x4] sm:$0xf]
    %v2895 = vld [vmem:[%s17] sm:$0x1]
    %v2897 = vlaneseq
    %v2898 = vshrl.u32 %v2897, 7
    %v2899 = vsub.s32 0, %v2898
    %v2900 = vrot.slane %v2895, %v2899
    %2902 = vxpose.xlu0.c.b16.start [1/8] %v2892, 128
    %2903 = vxpose.xlu0.c.b16.cont [2/8] 0, 128
    %2904 = vxpose.xlu0.c.b16.cont [3/8] 0, 128
    %2905 = vxpose.xlu0.c.b16.cont [4/8] 0, 128
    %2906 = vxpose.xlu0.c.b16.cont [5/8] 0, 128
    %2907 = vxpose.xlu0.c.b16.cont [6/8] 0, 128
    %2908 = vxpose.xlu0.c.b16.cont [7/8] 0, 128
    %2909 = vxpose.xlu0.c.b16.end [8/8] 0, 128
    %v2910 = vpop.trf.xlu0
    %v2911 = vpop.trf.xlu0
    %v2912 = vpop.trf.xlu0
    %v2913 = vpop.trf.xlu0
    %v2914 = vpop.trf.xlu0
    %v2915 = vpop.trf.xlu0
    %v2916 = vpop.trf.xlu0
    %v2917 = vpop.trf.xlu0
    %v2920 = vunpack.c.l.b16 %v2893
    %v2921 = vunpack.c.l.b16 %v2894
    %v2922 = vpack.c.b16 %v2921, %v2920
    %v2925 = vsel %vm1217, %v2910, 0
    %2927 = vmatprep.subr.bf16.mxu0 0
    %2928 = vmatpush1.bf16.msra.mxu0 %v2922
    %2929 = vmatprep.subr.bf16.mxu0 0
    %2930 = vmatpush1.bf16.msra.mxu0 0
    %2931 = vmatprep.subr.bf16.mxu0 0
    %2932 = vmatpush1.bf16.msra.mxu0 0
    %2933 = vmatprep.subr.bf16.mxu0 0
    %2934 = vmatpush1.bf16.msra.mxu0 0
    %2935 = vmatprep.subr.bf16.mxu0 0
    %2936 = vmatpush1.bf16.msra.mxu0 0
    %2937 = vmatprep.subr.bf16.mxu0 0
    %2938 = vmatpush1.bf16.msra.mxu0 0
    %2939 = vmatprep.subr.bf16.mxu0 0
    %2940 = vmatpush1.bf16.msra.mxu0 0
    %2941 = vmatprep.subr.bf16.mxu0 0
    %2942 = vmatpush1.bf16.msra.mxu0 0
    %2943 = vmatprep.subr.bf16.mxu0 0
    %2944 = vmatpush1.bf16.msra.mxu0 0
    %2945 = vmatprep.subr.bf16.mxu0 0
    %2946 = vmatpush1.bf16.msra.mxu0 0
    %2947 = vmatprep.subr.bf16.mxu0 0
    %2948 = vmatpush1.bf16.msra.mxu0 0
    %2949 = vmatprep.subr.bf16.mxu0 0
    %2950 = vmatpush1.bf16.msra.mxu0 0
    %2951 = vmatprep.subr.bf16.mxu0 0
    %2952 = vmatpush1.bf16.msra.mxu0 0
    %2953 = vmatprep.subr.bf16.mxu0 0
    %2954 = vmatpush1.bf16.msra.mxu0 0
    %2955 = vmatprep.subr.bf16.mxu0 0
    %2956 = vmatpush1.bf16.msra.mxu0 0
    %2957 = vmatprep.subr.bf16.mxu0 0
    %2958 = vmatpush1.bf16.msra.mxu0 0
    %2959 = vmatprep.mubr.bf16.mxu0 0
    %2960 = vmatmul.mubr.bf16.gmra.mrb[0].mxu0 %v2925
    %v2961 = vpop.f32.mrb[0].mxu0
    %v2962 = vadd.f32 %v2900, %v2961
    %v2963 = vpop.f32.mrb[0].mxu0
    %v2964 = vpop.f32.mrb[0].mxu0
    %v2965 = vpop.f32.mrb[0].mxu0
    %2966 = vdwg.mxu0
    %2967 = vst [vmem:[#allocation2] sm:$0x3] %v2962
    // Predicated region
    $region74: #{resnet_client_gkt_forward.1} parent=1 // pred_check
      _
    $region75: #{resnet_client_gkt_forward.1} parent=1 // pred_check_branch
      %2969 = sbr.rel (0) target = $region77
    $region76: #{resnet_client_gkt_forward.1} parent=1 // pred_region
      _
    $region77: #{resnet_client_gkt_forward.1} parent=1 // pred_fallthru
      _
    // Predicated region
    $region78: #{resnet_client_gkt_forward.1} parent=1 // pred_check
      _
    $region79: #{resnet_client_gkt_forward.1} parent=1 // pred_check_branch
      %2971 = sbr.rel (0) target = $region81
    $region80: #{resnet_client_gkt_forward.1} parent=1 // pred_region
      %s2973 = ssub.s32 32, 32
      %2974 = vsyncadd [#allocation3], %s2973
      %s2976 = sshll.u32 [#allocation2], 4
      %s2977 = int_to_ptr.vmem [resolvable:$true] %s2976
      %2979 = dma.vmem_to_hbm [thread:$0]  %s2977, 32, %s19, [#allocation3]
    $region81: #{resnet_client_gkt_forward.1} parent=1 // pred_fallthru
      _
    // Predicated region
    $region82: #{resnet_client_gkt_forward.1} parent=1 // pred_check
      _
    $region83: #{resnet_client_gkt_forward.1} parent=1 // pred_check_branch
      %2981 = sbr.rel (0) target = $region85
    $region84: #{resnet_client_gkt_forward.1} parent=1 // pred_region
      _
    $region85: #{resnet_client_gkt_forward.1} parent=1 // pred_fallthru
      _
    // Predicated region
    $region86: #{resnet_client_gkt_forward.1} parent=1 // pred_check
      _
    $region87: #{resnet_client_gkt_forward.1} parent=1 // pred_check_branch
      %2983 = sbr.rel (0) target = $region89
    $region88: #{resnet_client_gkt_forward.1} parent=1 // pred_region
      %2984 = dma.done [#allocation3], 32
    $region89: #{resnet_client_gkt_forward.1} parent=1 // pred_fallthru
      _
    %2985 = vsyncpa [#allocation3], 1

</llo_original>
